<compile_context>
chip_gen: v7x
topology: tpu7x:2x2x1
jax: 0.10.0
libtpu: 0.0.40
codegen_flags: <defaults>
</compile_context>

<pallas_src>
import functools

import jax
import jax.numpy as jnp
from jax.experimental import pallas as pl
from jax.experimental.pallas import tpu as pltpu


def _round_up(a, b):
    return (a + b - 1) // b * b


def _cdiv(a, b):
    return -(-a // b)


# --------------------------------------------------------------------------
# Kernels
# --------------------------------------------------------------------------
def _kernel_taps(xm_ref, xh_ref, w_ref, b_ref, o_ref, xs_ref, *, Wp, TRX, HALO):
    """9 separate K=Cin dots (general path, any Cin)."""
    # Stage the contiguous (TRX + HALO) x band once per (n, row-tile); the
    # staging scratch persists across the inner cout-tile grid axis.
    @pl.when(pl.program_id(2) == 0)
    def _stage():
        xs_ref[pl.ds(0, TRX), :] = xm_ref[0].astype(jnp.float32)
        xs_ref[pl.ds(TRX, HALO), :] = xh_ref[0].astype(jnp.float32)

    acc = None
    for tap in range(9):
        dy, dx = divmod(tap, 3)
        off = dy * Wp + dx
        lhs = xs_ref[pl.ds(off, TRX), :].astype(jnp.bfloat16)
        c = jnp.dot(lhs, w_ref[tap], preferred_element_type=jnp.float32)
        acc = c if acc is None else acc + c

    y = jnp.maximum(acc + b_ref[...], 0.0)          # (TRX, TCo) + (1, TCo)
    o_ref[...] = y[None].astype(o_ref.dtype)


def _kernel_packed(xm_ref, xh_ref, w_ref, b_ref, o_ref, xs_ref, im_ref,
                   *, Wp, TRX, HALO, Cin):
    """Taps packed along K (im2col), single K=9*Cin dot.  Used when
    Cin % 128 == 0 so the im2col column writes are lane-tile aligned."""
    @pl.when(pl.program_id(2) == 0)
    def _stage():
        xs_ref[pl.ds(0, TRX), :] = xm_ref[0].astype(jnp.float32)
        xs_ref[pl.ds(TRX, HALO), :] = xh_ref[0].astype(jnp.float32)
        for tap in range(9):
            dy, dx = divmod(tap, 3)
            off = dy * Wp + dx
            im_ref[:, tap * Cin:(tap + 1) * Cin] = (
                xs_ref[pl.ds(off, TRX), :].astype(jnp.bfloat16))

    acc = jnp.dot(im_ref[...], w_ref[...], preferred_element_type=jnp.float32)
    y = jnp.maximum(acc + b_ref[...], 0.0)
    o_ref[...] = y[None].astype(o_ref.dtype)


# --------------------------------------------------------------------------
# Wrapper
# --------------------------------------------------------------------------
def _pick_row_tile(r_need, halo, cin, tco, pack_taps, budget_bytes):
    # Rough per-output-row resident bytes: x block (bf16, x2 buffers) +
    # output block (bf16, x2 buffers) + f32 staging (+ bf16 im2col).
    per_row = 2 * cin * 2 + 2 * tco * 2 + cin * 4
    if pack_taps:
        per_row += 9 * cin * 2
    fixed = (2 * halo * cin * 2          # halo block, double buffered
             + halo * cin * 4            # halo part of staging scratch
             + 2 * 9 * cin * tco * 2     # weights, double buffered
             + 2 * tco * 4)              # bias
    avail = max(budget_bytes - fixed, halo * per_row)
    trx = (avail // per_row) // halo * halo
    trx = max(trx, halo)
    trx = min(trx, max(halo, (4096 // halo) * halo))   # cap ~4096 rows / tile
    trx = min(trx, _round_up(r_need, halo))            # no bigger than image
    return int(trx)


def block_forward(x_nchw, w_oihw, gamma, beta, running_mean, running_var,
                  eps=1e-5):
    N, Cin, H, W = x_nchw.shape
    Cout = w_oihw.shape[0]
    Wp = W + 2
    LANES = 128
    Coutp = _round_up(Cout, LANES)

    # ---- generation-aware knobs -------------------------------------------
    try:
        info = pltpu.get_tpu_info()
        vmem_cap = int(getattr(info, "vmem_capacity_bytes", 128 * 1024 * 1024))
    except Exception:
        vmem_cap = 64 * 1024 * 1024
    vmem_limit = max(32 * 1024 * 1024,
                     min(int(vmem_cap * 0.8), vmem_cap - 4 * 1024 * 1024))
    try:
        kind = jax.devices()[0].device_kind.lower()
    except Exception:
        kind = ""
    old_gen = any(t in kind for t in ("v2", "v3", "v4", "v5"))
    TCo = 256 if (not old_gen and Coutp % 256 == 0) else 128
    num_co = Coutp // TCo

    pack_taps = (Cin % 128 == 0)

    # ---- row tiling geometry ----------------------------------------------
    HALO = _round_up(2 * Wp + 2, 8)                 # 3x3 window reach, sublane-aligned
    R_need = H * Wp                                 # flat output rows that matter
    TRX = _pick_row_tile(R_need, HALO, Cin, TCo, pack_taps,
                         int(vmem_limit * 0.45))
    ratio = TRX // HALO
    num_rt = _cdiv(R_need, TRX)
    R_out = num_rt * TRX
    X_rows = R_out + HALO                           # rows held in HBM per image

    # ---- parameter folding (plain JAX, one-time prep) ----------------------
    inv_std = jax.lax.rsqrt(running_var.astype(jnp.float32) + eps)
    scale = gamma.astype(jnp.float32) * inv_std                     # (Cout,)
    bias = beta.astype(jnp.float32) - running_mean.astype(jnp.float32) * scale
    w = jnp.transpose(w_oihw, (2, 3, 1, 0)).reshape(9, Cin, Cout)   # tap,Cin,Cout
    w = w.astype(jnp.float32) * scale[None, None, :]
    w = jnp.pad(w, ((0, 0), (0, 0), (0, Coutp - Cout))).astype(jnp.bfloat16)
    if pack_taps:
        w = w.reshape(9 * Cin, Coutp)
    bias_p = jnp.pad(bias, (0, Coutp - Cout)).reshape(1, Coutp)

    # ---- activation prep: NCHW -> NHWC, zero halo, flatten rows, bf16 ------
    x = jnp.transpose(x_nchw, (0, 2, 3, 1)).astype(jnp.bfloat16)    # N,H,W,Cin
    x = jnp.pad(x, ((0, 0), (1, 1), (1, 1), (0, 0)))                # halo = 1
    x = x.reshape(N, (H + 2) * Wp, Cin)
    x = jnp.pad(x, ((0, 0), (0, X_rows - (H + 2) * Wp), (0, 0)))    # tail zeros

    # ---- pallas call --------------------------------------------------------
    in_specs = [
        # main x band for this row tile
        pl.BlockSpec((1, TRX, Cin), lambda n, rt, co: (n, rt, 0)),
        # halo band = first HALO rows of the NEXT row tile (HALO | TRX)
        pl.BlockSpec((1, HALO, Cin), lambda n, rt, co: (n, (rt + 1) * ratio, 0)),
    ]
    if pack_taps:
        in_specs.append(pl.BlockSpec((9 * Cin, TCo), lambda n, rt, co: (0, co)))
        scratch = [pltpu.VMEM((TRX + HALO, Cin), jnp.float32),
                   pltpu.VMEM((TRX, 9 * Cin), jnp.bfloat16)]
        kern = functools.partial(_kernel_packed, Wp=Wp, TRX=TRX, HALO=HALO,
                                 Cin=Cin)
    else:
        in_specs.append(pl.BlockSpec((9, Cin, TCo), lambda n, rt, co: (0, 0, co)))
        scratch = [pltpu.VMEM((TRX + HALO, Cin), jnp.float32)]
        kern = functools.partial(_kernel_taps, Wp=Wp, TRX=TRX, HALO=HALO)
    in_specs.append(pl.BlockSpec((1, TCo), lambda n, rt, co: (0, co)))

    out_flat = pl.pallas_call(
        kern,
        out_shape=jax.ShapeDtypeStruct((N, R_out, Coutp), jnp.bfloat16),
        grid=(N, num_rt, num_co),
        in_specs=in_specs,
        out_specs=pl.BlockSpec((1, TRX, TCo), lambda n, rt, co: (n, rt, co)),
        scratch_shapes=scratch,
        compiler_params=pltpu.CompilerParams(
            # cout innermost + arbitrary: x stays resident across cout tiles,
            # megacore splits on N / row tiles (v7x).
            dimension_semantics=("parallel", "parallel", "arbitrary"),
            vmem_limit_bytes=vmem_limit),
    )(x, x, w, bias_p)

    # Strip row / channel padding: out[y, x] = acc[y*(W+2) + x].
    out = out_flat[:, :H * Wp, :Cout].reshape(N, H, Wp, Cout)[:, :, :W, :]
    return jnp.transpose(out, (0, 3, 1, 2)).astype(jnp.float32)     # NHWC->NCHW


# --------------------------------------------------------------------------
# Reference + test
# --------------------------------------------------------------------------
def reference_forward(x_nchw, w_oihw, gamma, beta, running_mean, running_var,
                      eps=1e-5):
    conv = jax.lax.conv_general_dilated(
        x_nchw, w_oihw, window_strides=(1, 1), padding=((1, 1), (1, 1)),
        dimension_numbers=("NCHW", "OIHW", "NCHW"))
    c = lambda v: v[None, :, None, None]
    bn = (conv - c(running_mean)) / jnp.sqrt(c(running_var) + eps) * c(gamma) \
         + c(beta)
    return jnp.maximum(bn, 0.0)


if __name__ == "__main__":
    key = jax.random.PRNGKey(0)
    k_x, k_w, k_g, k_b, k_m, k_v = jax.random.split(key, 6)

    N, Cin, H, W = 2, 4, 16, 16
    Cout = 8

    x = jax.random.normal(k_x, (N, Cin, H, W), jnp.float32)
    w = jax.random.normal(k_w, (Cout, Cin, 3, 3), jnp.float32) * 0.1
    gamma = 1.0 + 0.1 * jax.random.normal(k_g, (Cout,), jnp.float32)
    beta = 0.1 * jax.random.normal(k_b, (Cout,), jnp.float32)
    running_mean = 0.1 * jax.random.normal(k_m, (Cout,), jnp.float32)
    running_var = jax.random.uniform(k_v, (Cout,), jnp.float32,
                                     minval=0.5, maxval=1.5)

    fwd = jax.jit(block_forward)
    out = fwd(x, w, gamma, beta, running_mean, running_var)
    out = jax.block_until_ready(out)

    ref = reference_forward(x, w, gamma, beta, running_mean, running_var)
    assert out.shape == (N, Cout, H, W), out.shape
    max_err = float(jnp.max(jnp.abs(out - ref)))
    # bf16 activations/weights (f32 accumulation) + bf16 output writeback.
    assert jnp.allclose(out, ref, atol=1e-1, rtol=1e-1), max_err

    print("KERNEL_OK")
</pallas_src>

<mosaic_0001>
module attributes {stable_mosaic.version = 11 : i64} {
  func.func @_kernel_taps(%arg0: i32, %arg1: i32, %arg2: i32, %arg3: memref<1x320x4xbf16, #tpu.memory_space<vmem>>, %arg4: memref<1x40x4xbf16, #tpu.memory_space<vmem>>, %arg5: memref<9x4x128xbf16, #tpu.memory_space<vmem>>, %arg6: memref<1x128xf32, #tpu.memory_space<vmem>>, %arg7: memref<1x320x128xbf16, #tpu.memory_space<vmem>>, %arg8: memref<360x4xf32, #tpu.memory_space<vmem>>) attributes {dimension_semantics = [#tpu.dimension_semantics<parallel>, #tpu.dimension_semantics<parallel>, #tpu.dimension_semantics<arbitrary>], iteration_bounds = array<i64: 2, 1, 1>, scalar_prefetch = 0 : i64, scratch_operands = 1 : i64, tpu.core_type = #tpu.core_type<tc>, window_params = [{transform_indices = @transform_0, window_bounds = array<i64: 1, 320, 4>}, {transform_indices = @transform_1, window_bounds = array<i64: 1, 40, 4>}, {transform_indices = @transform_2, window_bounds = array<i64: 9, 4, 128>}, {transform_indices = @transform_3, window_bounds = array<i64: 1, 128>}, {transform_indices = @transform_4, window_bounds = array<i64: 1, 320, 128>}]} {
    %c0_i32 = arith.constant 0 : i32
    %0 = arith.cmpi eq, %arg2, %c0_i32 : i32
    %1 = arith.extui %0 : i1 to i32
    %c0_i32_0 = arith.constant 0 : i32
    %2 = arith.cmpi ne, %1, %c0_i32_0 : i32
    scf.if %2 {
      %c0_45 = arith.constant 0 : index
      %c0_46 = arith.constant 0 : index
      %c0_47 = arith.constant 0 : index
      %64 = vector.load %arg3[%c0_45, %c0_46, %c0_47] : memref<1x320x4xbf16, #tpu.memory_space<vmem>>, vector<1x320x4xbf16>
      %65 = vector.shape_cast %64 : vector<1x320x4xbf16> to vector<320x4xbf16>
      %66 = arith.extf %65 : vector<320x4xbf16> to vector<320x4xf32>
      %c0_48 = arith.constant 0 : index
      %c0_49 = arith.constant 0 : index
      %67 = vector.load %arg8[%c0_48, %c0_49] : memref<360x4xf32, #tpu.memory_space<vmem>>, vector<320x4xf32>
      tpu.vector_store %arg8[%c0_48, %c0_49], %66 {strides = array<i32>} : memref<360x4xf32, #tpu.memory_space<vmem>>, vector<320x4xf32>,
      %c0_50 = arith.constant 0 : index
      %c0_51 = arith.constant 0 : index
      %c0_52 = arith.constant 0 : index
      %68 = vector.load %arg4[%c0_50, %c0_51, %c0_52] : memref<1x40x4xbf16, #tpu.memory_space<vmem>>, vector<1x40x4xbf16>
      %69 = vector.shape_cast %68 : vector<1x40x4xbf16> to vector<40x4xbf16>
      %70 = arith.extf %69 : vector<40x4xbf16> to vector<40x4xf32>
      %c320 = arith.constant 320 : index
      %c0_53 = arith.constant 0 : index
      %71 = vector.load %arg8[%c320, %c0_53] : memref<360x4xf32, #tpu.memory_space<vmem>>, vector<40x4xf32>
      tpu.vector_store %arg8[%c320, %c0_53], %70 {strides = array<i32>} : memref<360x4xf32, #tpu.memory_space<vmem>>, vector<40x4xf32>,
    } else {
    }
    %c0 = arith.constant 0 : index
    %c0_1 = arith.constant 0 : index
    %3 = vector.load %arg8[%c0, %c0_1] : memref<360x4xf32, #tpu.memory_space<vmem>>, vector<320x4xf32>
    %4 = arith.truncf %3 : vector<320x4xf32> to vector<320x4xbf16>
    %c0_2 = arith.constant 0 : index
    %c0_3 = arith.constant 0 : index
    %c0_4 = arith.constant 0 : index
    %5 = vector.load %arg5[%c0_2, %c0_3, %c0_4] : memref<9x4x128xbf16, #tpu.memory_space<vmem>>, vector<1x4x128xbf16>
    %6 = vector.shape_cast %5 : vector<1x4x128xbf16> to vector<4x128xbf16>
    %cst = arith.constant dense<0.000000e+00> : vector<320x128xf32>
    %7 = tpu.matmul %4, %6, %cst {dimension_numbers = #tpu.dot_dimension_numbers<[1], [0], [0], [1], [0, 0, 1, 1], [], []>} : vector<320x4xbf16>, vector<4x128xbf16>, vector<320x128xf32> -> vector<320x128xf32>
    %c1 = arith.constant 1 : index
    %c0_5 = arith.constant 0 : index
    %8 = vector.load %arg8[%c1, %c0_5] : memref<360x4xf32, #tpu.memory_space<vmem>>, vector<320x4xf32>
    %9 = arith.truncf %8 : vector<320x4xf32> to vector<320x4xbf16>
    %c1_6 = arith.constant 1 : index
    %c0_7 = arith.constant 0 : index
    %c0_8 = arith.constant 0 : index
    %10 = vector.load %arg5[%c1_6, %c0_7, %c0_8] : memref<9x4x128xbf16, #tpu.memory_space<vmem>>, vector<1x4x128xbf16>
    %11 = vector.shape_cast %10 : vector<1x4x128xbf16> to vector<4x128xbf16>
    %cst_9 = arith.constant dense<0.000000e+00> : vector<320x128xf32>
    %12 = tpu.matmul %9, %11, %cst_9 {dimension_numbers = #tpu.dot_dimension_numbers<[1], [0], [0], [1], [0, 0, 1, 1], [], []>} : vector<320x4xbf16>, vector<4x128xbf16>, vector<320x128xf32> -> vector<320x128xf32>
    %13 = arith.addf %7, %12 : vector<320x128xf32>
    %c2 = arith.constant 2 : index
    %c0_10 = arith.constant 0 : index
    %14 = vector.load %arg8[%c2, %c0_10] : memref<360x4xf32, #tpu.memory_space<vmem>>, vector<320x4xf32>
    %15 = arith.truncf %14 : vector<320x4xf32> to vector<320x4xbf16>
    %c2_11 = arith.constant 2 : index
    %c0_12 = arith.constant 0 : index
    %c0_13 = arith.constant 0 : index
    %16 = vector.load %arg5[%c2_11, %c0_12, %c0_13] : memref<9x4x128xbf16, #tpu.memory_space<vmem>>, vector<1x4x128xbf16>
    %17 = vector.shape_cast %16 : vector<1x4x128xbf16> to vector<4x128xbf16>
    %cst_14 = arith.constant dense<0.000000e+00> : vector<320x128xf32>
    %18 = tpu.matmul %15, %17, %cst_14 {dimension_numbers = #tpu.dot_dimension_numbers<[1], [0], [0], [1], [0, 0, 1, 1], [], []>} : vector<320x4xbf16>, vector<4x128xbf16>, vector<320x128xf32> -> vector<320x128xf32>
    %19 = arith.addf %13, %18 : vector<320x128xf32>
    %c18 = arith.constant 18 : index
    %c0_15 = arith.constant 0 : index
    %20 = vector.load %arg8[%c18, %c0_15] : memref<360x4xf32, #tpu.memory_space<vmem>>, vector<320x4xf32>
    %21 = arith.truncf %20 : vector<320x4xf32> to vector<320x4xbf16>
    %c3 = arith.constant 3 : index
    %c0_16 = arith.constant 0 : index
    %c0_17 = arith.constant 0 : index
    %22 = vector.load %arg5[%c3, %c0_16, %c0_17] : memref<9x4x128xbf16, #tpu.memory_space<vmem>>, vector<1x4x128xbf16>
    %23 = vector.shape_cast %22 : vector<1x4x128xbf16> to vector<4x128xbf16>
    %cst_18 = arith.constant dense<0.000000e+00> : vector<320x128xf32>
    %24 = tpu.matmul %21, %23, %cst_18 {dimension_numbers = #tpu.dot_dimension_numbers<[1], [0], [0], [1], [0, 0, 1, 1], [], []>} : vector<320x4xbf16>, vector<4x128xbf16>, vector<320x128xf32> -> vector<320x128xf32>
    %25 = arith.addf %19, %24 : vector<320x128xf32>
    %c19 = arith.constant 19 : index
    %c0_19 = arith.constant 0 : index
    %26 = vector.load %arg8[%c19, %c0_19] : memref<360x4xf32, #tpu.memory_space<vmem>>, vector<320x4xf32>
    %27 = arith.truncf %26 : vector<320x4xf32> to vector<320x4xbf16>
    %c4 = arith.constant 4 : index
    %c0_20 = arith.constant 0 : index
    %c0_21 = arith.constant 0 : index
    %28 = vector.load %arg5[%c4, %c0_20, %c0_21] : memref<9x4x128xbf16, #tpu.memory_space<vmem>>, vector<1x4x128xbf16>
    %29 = vector.shape_cast %28 : vector<1x4x128xbf16> to vector<4x128xbf16>
    %cst_22 = arith.constant dense<0.000000e+00> : vector<320x128xf32>
    %30 = tpu.matmul %27, %29, %cst_22 {dimension_numbers = #tpu.dot_dimension_numbers<[1], [0], [0], [1], [0, 0, 1, 1], [], []>} : vector<320x4xbf16>, vector<4x128xbf16>, vector<320x128xf32> -> vector<320x128xf32>
    %31 = arith.addf %25, %30 : vector<320x128xf32>
    %c20 = arith.constant 20 : index
    %c0_23 = arith.constant 0 : index
    %32 = vector.load %arg8[%c20, %c0_23] : memref<360x4xf32, #tpu.memory_space<vmem>>, vector<320x4xf32>
    %33 = arith.truncf %32 : vector<320x4xf32> to vector<320x4xbf16>
    %c5 = arith.constant 5 : index
    %c0_24 = arith.constant 0 : index
    %c0_25 = arith.constant 0 : index
    %34 = vector.load %arg5[%c5, %c0_24, %c0_25] : memref<9x4x128xbf16, #tpu.memory_space<vmem>>, vector<1x4x128xbf16>
    %35 = vector.shape_cast %34 : vector<1x4x128xbf16> to vector<4x128xbf16>
    %cst_26 = arith.constant dense<0.000000e+00> : vector<320x128xf32>
    %36 = tpu.matmul %33, %35, %cst_26 {dimension_numbers = #tpu.dot_dimension_numbers<[1], [0], [0], [1], [0, 0, 1, 1], [], []>} : vector<320x4xbf16>, vector<4x128xbf16>, vector<320x128xf32> -> vector<320x128xf32>
    %37 = arith.addf %31, %36 : vector<320x128xf32>
    %c36 = arith.constant 36 : index
    %c0_27 = arith.constant 0 : index
    %38 = vector.load %arg8[%c36, %c0_27] : memref<360x4xf32, #tpu.memory_space<vmem>>, vector<320x4xf32>
    %39 = arith.truncf %38 : vector<320x4xf32> to vector<320x4xbf16>
    %c6 = arith.constant 6 : index
    %c0_28 = arith.constant 0 : index
    %c0_29 = arith.constant 0 : index
    %40 = vector.load %arg5[%c6, %c0_28, %c0_29] : memref<9x4x128xbf16, #tpu.memory_space<vmem>>, vector<1x4x128xbf16>
    %41 = vector.shape_cast %40 : vector<1x4x128xbf16> to vector<4x128xbf16>
    %cst_30 = arith.constant dense<0.000000e+00> : vector<320x128xf32>
    %42 = tpu.matmul %39, %41, %cst_30 {dimension_numbers = #tpu.dot_dimension_numbers<[1], [0], [0], [1], [0, 0, 1, 1], [], []>} : vector<320x4xbf16>, vector<4x128xbf16>, vector<320x128xf32> -> vector<320x128xf32>
    %43 = arith.addf %37, %42 : vector<320x128xf32>
    %c37 = arith.constant 37 : index
    %c0_31 = arith.constant 0 : index
    %44 = vector.load %arg8[%c37, %c0_31] : memref<360x4xf32, #tpu.memory_space<vmem>>, vector<320x4xf32>
    %45 = arith.truncf %44 : vector<320x4xf32> to vector<320x4xbf16>
    %c7 = arith.constant 7 : index
    %c0_32 = arith.constant 0 : index
    %c0_33 = arith.constant 0 : index
    %46 = vector.load %arg5[%c7, %c0_32, %c0_33] : memref<9x4x128xbf16, #tpu.memory_space<vmem>>, vector<1x4x128xbf16>
    %47 = vector.shape_cast %46 : vector<1x4x128xbf16> to vector<4x128xbf16>
    %cst_34 = arith.constant dense<0.000000e+00> : vector<320x128xf32>
    %48 = tpu.matmul %45, %47, %cst_34 {dimension_numbers = #tpu.dot_dimension_numbers<[1], [0], [0], [1], [0, 0, 1, 1], [], []>} : vector<320x4xbf16>, vector<4x128xbf16>, vector<320x128xf32> -> vector<320x128xf32>
    %49 = arith.addf %43, %48 : vector<320x128xf32>
    %c38 = arith.constant 38 : index
    %c0_35 = arith.constant 0 : index
    %50 = vector.load %arg8[%c38, %c0_35] : memref<360x4xf32, #tpu.memory_space<vmem>>, vector<320x4xf32>
    %51 = arith.truncf %50 : vector<320x4xf32> to vector<320x4xbf16>
    %c8 = arith.constant 8 : index
    %c0_36 = arith.constant 0 : index
    %c0_37 = arith.constant 0 : index
    %52 = vector.load %arg5[%c8, %c0_36, %c0_37] : memref<9x4x128xbf16, #tpu.memory_space<vmem>>, vector<1x4x128xbf16>
    %53 = vector.shape_cast %52 : vector<1x4x128xbf16> to vector<4x128xbf16>
    %cst_38 = arith.constant dense<0.000000e+00> : vector<320x128xf32>
    %54 = tpu.matmul %51, %53, %cst_38 {dimension_numbers = #tpu.dot_dimension_numbers<[1], [0], [0], [1], [0, 0, 1, 1], [], []>} : vector<320x4xbf16>, vector<4x128xbf16>, vector<320x128xf32> -> vector<320x128xf32>
    %55 = arith.addf %49, %54 : vector<320x128xf32>
    %c0_39 = arith.constant 0 : index
    %c0_40 = arith.constant 0 : index
    %56 = vector.load %arg6[%c0_39, %c0_40] : memref<1x128xf32, #tpu.memory_space<vmem>>, vector<1x128xf32>
    %57 = vector.broadcast %56 : vector<1x128xf32> to vector<320x128xf32>
    %58 = arith.addf %55, %57 : vector<320x128xf32>
    %cst_41 = arith.constant 0.000000e+00 : f32
    %59 = vector.broadcast %cst_41 : f32 to vector<320x128xf32>
    %60 = arith.maximumf %58, %59 : vector<320x128xf32>
    %61 = vector.shape_cast %60 : vector<320x128xf32> to vector<1x320x128xf32>
    %62 = arith.truncf %61 : vector<1x320x128xf32> to vector<1x320x128xbf16>
    %c0_42 = arith.constant 0 : index
    %c0_43 = arith.constant 0 : index
    %c0_44 = arith.constant 0 : index
    %63 = vector.load %arg7[%c0_42, %c0_43, %c0_44] : memref<1x320x128xbf16, #tpu.memory_space<vmem>>, vector<1x320x128xbf16>
    tpu.vector_store %arg7[%c0_42, %c0_43, %c0_44], %62 {strides = array<i32>} : memref<1x320x128xbf16, #tpu.memory_space<vmem>>, vector<1x320x128xbf16>,
    return
  }
  func.func @transform_0(%arg0: i32, %arg1: i32, %arg2: i32) -> (i32, i32, i32) {
    %c0_i32 = arith.constant 0 : i32
    %c0_i32_0 = arith.constant 0 : i32
    return %arg0, %arg1, %c0_i32 : i32, i32, i32
  }
  func.func @transform_1(%arg0: i32, %arg1: i32, %arg2: i32) -> (i32, i32, i32) {
    %c1_i32 = arith.constant 1 : i32
    %0 = arith.addi %arg1, %c1_i32 : i32
    %c8_i32 = arith.constant 8 : i32
    %1 = arith.muli %0, %c8_i32 : i32
    %c0_i32 = arith.constant 0 : i32
    %c0_i32_0 = arith.constant 0 : i32
    return %arg0, %1, %c0_i32 : i32, i32, i32
  }
  func.func @transform_2(%arg0: i32, %arg1: i32, %arg2: i32) -> (i32, i32, i32) {
    %c0_i32 = arith.constant 0 : i32
    %c0_i32_0 = arith.constant 0 : i32
    %c0_i32_1 = arith.constant 0 : i32
    return %c0_i32, %c0_i32_0, %arg2 : i32, i32, i32
  }
  func.func @transform_3(%arg0: i32, %arg1: i32, %arg2: i32) -> (i32, i32) {
    %c0_i32 = arith.constant 0 : i32
    %c0_i32_0 = arith.constant 0 : i32
    return %c0_i32, %arg2 : i32, i32
  }
  func.func @transform_4(%arg0: i32, %arg1: i32, %arg2: i32) -> (i32, i32, i32) {
    %c0_i32 = arith.constant 0 : i32
    return %arg0, %arg1, %arg2 : i32, i32, i32
  }
}

</mosaic_0001>

<llo_original>
// kernel: block_forward.1
$region0: #{block_forward.1}
  #allocation0 [shape = 'u32[]', space=smem, size = 0x4, offset = 0x4, fixed_abs, tag = 'smem constant byte address 0x4 - core index']
  #allocation1 [shape = 'u32[144,128]{1,0:T(1,128)}', space=vmem, size = 0x12000, scoped, tag = 'internal scratch']
  #allocation2 [shape = 'f32[360,4]{1,0:T(8,128)}', space=vmem, size = 0x2d000, scoped, tag = 'scratch operand']
  %s0 = inlined_call_operand.vmem [shape: bf16[2,360,4], index: 0, kind: input, shape index: {}, may-alias: {0,1}]
  %s1 = inlined_call_operand.vmem [shape: bf16[2,360,4], index: 1, kind: input, shape index: {}, may-alias: {0,1}]
  %s2 = inlined_call_operand.vmem [shape: bf16[9,4,128], index: 2, kind: input, shape index: {}]
  %s3 = inlined_call_operand.vmem [shape: f32[1,128], index: 3, kind: input, shape index: {}]
  %s4 = inlined_call_operand.vmem [shape: bf16[2,320,128], index: 4, kind: output, shape index: {}]
  %s5 = sld [smem:[#allocation0]]
  $region53: #{block_forward.1} parent=0
    _
  %s7 = ssub.s32 1, %s5
  %s8 = scalar_select 0, %s7, %s5
  loop: start=0, step=1, limit=4
  $region2: #{block_forward.1} parent=0 // loop_pre_header
    _
  $region3: #{block_forward.1} parent=0 // loop_header
    %s10 = sphi 0, %s14
    %p11 = scmp.ge.s32.totalorder %s10, 4
    %s17 = sphi 0, %s36
    %s18 = sphi 0, %s32
    %s19 = sphi 0, %s28
    %s20 = sphi 0, %s17
    %s21 = sphi 0, %s18
    %s22 = sphi 0, %s19
    %s23 = sphi 0, %s20
    %s24 = sphi 0, %s21
    %s25 = sphi 0, %s22
    %s41 = sphi 0, %s43
    %s44 = sphi 0, %s41
    %s45 = sphi 0, %s44
    %s61 = sphi 0, %s45
    %s73 = sphi 0, %s75
    %s76 = sphi 0, %s73
    %s77 = sphi 0, %s76
    %s93 = sphi 0, %s77
    %s99 = sphi 0, %s101
    %s102 = sphi 0, %s99
    %s103 = sphi 0, %s102
    %s119 = sphi 0, %s103
    %s125 = sphi 0, %s127
    %s128 = sphi 0, %s125
    %s129 = sphi 0, %s128
    %s145 = sphi 0, %s129
    %s155 = sphi 0, %s157
    %s158 = sphi 0, %s155
    %s159 = sphi 0, %s158
    %s175 = sphi 0, %s159
  $region4: #{block_forward.1} parent=0 // loop_header_branch
    %13 = sbr.rel (%p11) target = $region8
  $region5: #{block_forward.1} parent=0 // loop_body
    %s15 = ssub.s32 %s10, 1
    %s16 = ssub.s32 %s10, 2
    %s26 = sadd.s32 1, %s19
    %p27 = scmp.ge.s32.totalorder %s26, 1
    %s28 = scalar_select %p27, 0, %s26
    %s29 = sadd.s32 1, %s18
    %s30 = scalar_select %p27, %s29, %s18
    %p31 = scmp.ge.s32.totalorder %s30, 1
    %s32 = scalar_select %p31, 0, %s30
    %s33 = sadd.s32 1, %s17
    %s34 = scalar_select %p31, %s33, %s17
    %p35 = scmp.ge.s32.totalorder %s34, 2
    %s36 = scalar_select %p35, 0, %s34
    %s37 = ssub.s32 %s17, %s36
    %s38 = ssub.s32 %s18, %s32
    %s39 = sor.u32 %s37, %s38
    %p40 = scmp.eq.s32.totalorder %s39, 0
    %s42 = sadd.s32 %s41, 1
    %s43 = scalar_select %p40, %s41, %s42
    %p46 = pneg %p40
    %p47 = scmp.eq.s32.totalorder %s10, 1
    %p48 = por %p46, %p47
    %p49 = scmp.ne.s32.totalorder %s41, %s44
    %p50 = scmp.eq.s32.totalorder %s10, 0
    %p51 = por %p49, %p50
    %p52 = scmp.ne.s32.totalorder %s41, %s44
    %p53 = scmp.eq.s32.totalorder %s15, 1
    %p54 = por %p52, %p53
    %p55 = scmp.ne.s32.totalorder %s44, %s45
    %p56 = scmp.eq.s32.totalorder %s15, 0
    %p57 = por %p55, %p56
    %p58 = scmp.ne.s32.totalorder %s44, %s45
    %p59 = scmp.eq.s32.totalorder %s16, 1
    %p60 = por %p58, %p59
    %p62 = scmp.ne.s32.totalorder %s45, %s61
    %p63 = scmp.eq.s32.totalorder %s16, 0
    %p64 = por %p62, %p63
    %s65 = sadd.s32 %s18, 1
    %s66 = smul.u32 %s65, 8
    %s67 = sadd.s32 %s32, 1
    %s68 = smul.u32 %s67, 8
    %s69 = ssub.s32 %s17, %s36
    %s70 = ssub.s32 %s66, %s68
    %s71 = sor.u32 %s69, %s70
    %p72 = scmp.eq.s32.totalorder %s71, 0
    %s74 = sadd.s32 %s73, 1
    %s75 = scalar_select %p72, %s73, %s74
    %p78 = pneg %p72
    %p79 = scmp.eq.s32.totalorder %s10, 1
    %p80 = por %p78, %p79
    %p81 = scmp.ne.s32.totalorder %s73, %s76
    %p82 = scmp.eq.s32.totalorder %s10, 0
    %p83 = por %p81, %p82
    %p84 = scmp.ne.s32.totalorder %s73, %s76
    %p85 = scmp.eq.s32.totalorder %s15, 1
    %p86 = por %p84, %p85
    %p87 = scmp.ne.s32.totalorder %s76, %s77
    %p88 = scmp.eq.s32.totalorder %s15, 0
    %p89 = por %p87, %p88
    %p90 = scmp.ne.s32.totalorder %s76, %s77
    %p91 = scmp.eq.s32.totalorder %s16, 1
    %p92 = por %p90, %p91
    %p94 = scmp.ne.s32.totalorder %s77, %s93
    %p95 = scmp.eq.s32.totalorder %s16, 0
    %p96 = por %p94, %p95
    %s97 = ssub.s32 %s19, %s28
    %p98 = scmp.eq.s32.totalorder %s97, 0
    %s100 = sadd.s32 %s99, 1
    %s101 = scalar_select %p98, %s99, %s100
    %p104 = pneg %p98
    %p105 = scmp.eq.s32.totalorder %s10, 1
    %p106 = por %p104, %p105
    %p107 = scmp.ne.s32.totalorder %s99, %s102
    %p108 = scmp.eq.s32.totalorder %s10, 0
    %p109 = por %p107, %p108
    %p110 = scmp.ne.s32.totalorder %s99, %s102
    %p111 = scmp.eq.s32.totalorder %s15, 1
    %p112 = por %p110, %p111
    %p113 = scmp.ne.s32.totalorder %s102, %s103
    %p114 = scmp.eq.s32.totalorder %s15, 0
    %p115 = por %p113, %p114
    %p116 = scmp.ne.s32.totalorder %s102, %s103
    %p117 = scmp.eq.s32.totalorder %s16, 1
    %p118 = por %p116, %p117
    %p120 = scmp.ne.s32.totalorder %s103, %s119
    %p121 = scmp.eq.s32.totalorder %s16, 0
    %p122 = por %p120, %p121
    %s123 = ssub.s32 %s19, %s28
    %p124 = scmp.eq.s32.totalorder %s123, 0
    %s126 = sadd.s32 %s125, 1
    %s127 = scalar_select %p124, %s125, %s126
    %p130 = pneg %p124
    %p131 = scmp.eq.s32.totalorder %s10, 1
    %p132 = por %p130, %p131
    %p133 = scmp.ne.s32.totalorder %s125, %s128
    %p134 = scmp.eq.s32.totalorder %s10, 0
    %p135 = por %p133, %p134
    %p136 = scmp.ne.s32.totalorder %s125, %s128
    %p137 = scmp.eq.s32.totalorder %s15, 1
    %p138 = por %p136, %p137
    %p139 = scmp.ne.s32.totalorder %s128, %s129
    %p140 = scmp.eq.s32.totalorder %s15, 0
    %p141 = por %p139, %p140
    %p142 = scmp.ne.s32.totalorder %s128, %s129
    %p143 = scmp.eq.s32.totalorder %s16, 1
    %p144 = por %p142, %p143
    %p146 = scmp.ne.s32.totalorder %s129, %s145
    %p147 = scmp.eq.s32.totalorder %s16, 0
    %p148 = por %p146, %p147
    %s149 = ssub.s32 %s17, %s36
    %s150 = ssub.s32 %s18, %s32
    %s151 = sor.u32 %s149, %s150
    %s152 = ssub.s32 %s19, %s28
    %s153 = sor.u32 %s151, %s152
    %p154 = scmp.eq.s32.totalorder %s153, 0
    %s156 = sadd.s32 %s155, 1
    %s157 = scalar_select %p154, %s155, %s156
    %p160 = pneg %p154
    %p161 = scmp.eq.s32.totalorder %s10, 1
    %p162 = por %p160, %p161
    %p163 = scmp.ne.s32.totalorder %s155, %s158
    %p164 = scmp.eq.s32.totalorder %s10, 0
    %p165 = por %p163, %p164
    %p166 = scmp.ne.s32.totalorder %s155, %s158
    %p167 = scmp.eq.s32.totalorder %s15, 1
    %p168 = por %p166, %p167
    %p169 = scmp.ne.s32.totalorder %s158, %s159
    %p170 = scmp.eq.s32.totalorder %s15, 0
    %p171 = por %p169, %p170
    %p172 = scmp.ne.s32.totalorder %s158, %s159
    %p173 = scmp.eq.s32.totalorder %s16, 1
    %p174 = por %p172, %p173
    %p176 = scmp.ne.s32.totalorder %s159, %s175
    %p177 = scmp.eq.s32.totalorder %s16, 0
    %p178 = por %p176, %p177
    %p179 = scmp.le.s32.totalorder 1, %s10
    %p180 = scmp.lt.s32.totalorder %s10, 3
    %p181 = pnand %p179, %p180
    %p182 = pneg %p181
    // Predicated region
    $region9: #{block_forward.1} parent=5 // pred_check
      _
    $region10: #{block_forward.1} parent=5 // pred_check_branch
      %184 = sbr.rel (%p181) target = $region12
    $region11: #{block_forward.1} parent=5 // pred_region
      %s185 = ssub.s32 %s10, 1
      // Predicated region
      $region13: #{block_forward.1} parent=11 // pred_check
        %p186 = pneg %p115
      $region14: #{block_forward.1} parent=11 // pred_check_branch
        %188 = sbr.rel (%p186) target = $region16
      $region15: #{block_forward.1} parent=11 // pred_region
        %p189 = scmp.lt.s32.totalorder %s22, 0
        %s190 = scalar_select %p189, %s22, 0
        %s191 = smul.addr %s190, 2
        %s192 = scalar_lea.vmem %s2, %s191
      $region16: #{block_forward.1} parent=11 // pred_fallthru
        _
      // Predicated region
      $region17: #{block_forward.1} parent=11 // pred_check
        %p193 = pneg %p141
      $region18: #{block_forward.1} parent=11 // pred_check_branch
        %195 = sbr.rel (%p193) target = $region20
      $region19: #{block_forward.1} parent=11 // pred_region
        %p196 = scmp.lt.s32.totalorder %s22, 0
        %s197 = scalar_select %p196, %s22, 0
        %s198 = scalar_lea.vmem %s3, %s197
      $region20: #{block_forward.1} parent=11 // pred_fallthru
        _
    $region12: #{block_forward.1} parent=5 // pred_fallthru
      _
    %p199 = scmp.lt.s32.totalorder %s10, 2
    // Predicated region
    $region21: #{block_forward.1} parent=5 // pred_check
      %p200 = pneg %p199
    $region22: #{block_forward.1} parent=5 // pred_check_branch
      %202 = sbr.rel (%p200) target = $region24
    $region23: #{block_forward.1} parent=5 // pred_region
      // Predicated region
      $region25: #{block_forward.1} parent=23 // pred_check
        %p203 = pneg %p51
      $region26: #{block_forward.1} parent=23 // pred_check_branch
        %205 = sbr.rel (%p203) target = $region28
      $region27: #{block_forward.1} parent=23 // pred_region
        %s206 = smul.u32 40, %s18
        %s207 = ssub.s32 45, %s206
        %p208 = scmp.lt.s32.totalorder %s207, 40
        %s209 = scalar_select %p208, %s207, 40
        %s210 = smul.u32 64, %s209
        %p211 = scmp.lt.s32.totalorder %s17, 1
        %s212 = scalar_select %p211, %s17, 1
        %p213 = scmp.lt.s32.totalorder %s206, 44
        %s214 = scalar_select %p213, %s206, 44
        %s215 = smul.addr %s212, 45
        %s216 = sadd.s32 %s214, %s215
        %s217 = smul.addr %s216, 4
        %s218 = scalar_lea.vmem %s0, %s217
        %s219 = smul.u32 40, %s18
        %s220 = ssub.s32 45, %s219
        %p221 = scmp.lt.s32.totalorder %s220, 40
        %s222 = scalar_select %p221, %s220, 40
        %s223 = smul.u32 64, %s222
      $region28: #{block_forward.1} parent=23 // pred_fallthru
        _
      // Predicated region
      $region29: #{block_forward.1} parent=23 // pred_check
        %p224 = pneg %p83
      $region30: #{block_forward.1} parent=23 // pred_check_branch
        %226 = sbr.rel (%p224) target = $region32
      $region31: #{block_forward.1} parent=23 // pred_region
        %s227 = sadd.s32 %s18, 1
        %s228 = smul.u32 %s227, 8
        %s229 = smul.u32 5, %s228
        %p230 = scmp.lt.s32.totalorder %s17, 1
        %s231 = scalar_select %p230, %s17, 1
        %p232 = scmp.lt.s32.totalorder %s229, 44
        %s233 = scalar_select %p232, %s229, 44
        %s234 = smul.addr %s231, 45
        %s235 = sadd.s32 %s233, %s234
        %s236 = smul.addr %s235, 4
        %s237 = scalar_lea.vmem %s1, %s236
        %s238 = sadd.s32 %s18, 1
        %s239 = smul.u32 %s238, 8
        %s240 = smul.u32 5, %s239
      $region32: #{block_forward.1} parent=23 // pred_fallthru
        _
    $region24: #{block_forward.1} parent=5 // pred_fallthru
      _
    %p241 = scmp.le.s32.totalorder 1, %s10
    %p242 = scmp.lt.s32.totalorder %s10, 3
    %p243 = pnand %p241, %p242
    %p244 = pneg %p243
    // Predicated region
    $region33: #{block_forward.1} parent=5 // pred_check
      _
    $region34: #{block_forward.1} parent=5 // pred_check_branch
      %246 = sbr.rel (%p243) target = $region36
    $region35: #{block_forward.1} parent=5 // pred_region
      %s247 = ssub.s32 %s10, 1
      %s248 = smul.u32 40, %s21
      %s249 = ssub.s32 45, %s248
      %p250 = scmp.lt.s32.totalorder %s249, 40
      %s251 = scalar_select %p250, %s249, 40
      %s252 = smul.u32 64, %s251
      %p253 = scmp.lt.s32.totalorder %s20, 1
      %s254 = scalar_select %p253, %s20, 1
      %p255 = scmp.lt.s32.totalorder %s248, 44
      %s256 = scalar_select %p255, %s248, 44
      %s257 = smul.addr %s254, 45
      %s258 = sadd.s32 %s256, %s257
      %s259 = smul.addr %s258, 4
      %s260 = scalar_lea.vmem %s0, %s259
      %p261 = pneg %p57
      %p262 = pneg %p54
      %s263 = sadd.s32 %s21, 1
      %s264 = smul.u32 %s263, 8
      %s265 = smul.u32 5, %s264
      %p266 = scmp.lt.s32.totalorder %s20, 1
      %s267 = scalar_select %p266, %s20, 1
      %p268 = scmp.lt.s32.totalorder %s265, 44
      %s269 = scalar_select %p268, %s265, 44
      %s270 = smul.addr %s267, 45
      %s271 = sadd.s32 %s269, %s270
      %s272 = smul.addr %s271, 4
      %s273 = scalar_lea.vmem %s1, %s272
      %p274 = pneg %p89
      %p275 = pneg %p86
      %p276 = scmp.lt.s32.totalorder %s22, 0
      %s277 = scalar_select %p276, %s22, 0
      %s278 = smul.addr %s277, 2
      %s279 = scalar_lea.vmem %s2, %s278
      %p280 = pneg %p115
      %p281 = pneg %p112
      %p282 = scmp.lt.s32.totalorder %s22, 0
      %s283 = scalar_select %p282, %s22, 0
      %s284 = scalar_lea.vmem %s3, %s283
      %p285 = pneg %p141
      %p286 = pneg %p138
      %p287 = pneg %p171
      %p288 = pneg %p168
      %s289 = smul.u32 40, %s21
      %p290 = scmp.lt.s32.totalorder %s20, 1
      %s291 = scalar_select %p290, %s20, 1
      %p292 = scmp.lt.s32.totalorder %s289, 39
      %s293 = scalar_select %p292, %s289, 39
      %p294 = scmp.lt.s32.totalorder %s22, 0
      %s295 = scalar_select %p294, %s22, 0
      %s296 = sadd.s32 %s295, %s293
      %s297 = smul.addr %s291, 40
      %s298 = sadd.s32 %s296, %s297
      %s299 = smul.addr %s298, 4
      %s300 = scalar_lea.vmem %s4, %s299
      %s301 = smul.u32 40, %s21
      %s302 = ssub.s32 45, %s301
      %p303 = scmp.lt.s32.totalorder %s302, 40
      %s304 = scalar_select %p303, %s302, 40
      %s305 = smul.u32 64, %s304
      %p306 = scmp.lt.s32.totalorder %s20, 1
      %s307 = scalar_select %p306, %s20, 1
      %p308 = scmp.lt.s32.totalorder %s301, 44
      %s309 = scalar_select %p308, %s301, 44
      %s310 = smul.addr %s307, 45
      %s311 = sadd.s32 %s309, %s310
      %s312 = smul.addr %s311, 4
      %s313 = scalar_lea.vmem %s0, %s312
      %s314 = smul.u32 40, %s21
      %s315 = ssub.s32 45, %s314
      %p316 = scmp.lt.s32.totalorder %s315, 40
      %s317 = scalar_select %p316, %s315, 40
      %s318 = smul.u32 64, %s317
      %s319 = sadd.s32 %s21, 1
      %s320 = smul.u32 %s319, 8
      %s321 = smul.u32 5, %s320
      %p322 = scmp.lt.s32.totalorder %s20, 1
      %s323 = scalar_select %p322, %s20, 1
      %p324 = scmp.lt.s32.totalorder %s321, 44
      %s325 = scalar_select %p324, %s321, 44
      %s326 = smul.addr %s323, 45
      %s327 = sadd.s32 %s325, %s326
      %s328 = smul.addr %s327, 4
      %s329 = scalar_lea.vmem %s1, %s328
      %s330 = sadd.s32 %s21, 1
      %s331 = smul.u32 %s330, 8
      %s332 = smul.u32 5, %s331
      %p333 = scmp.lt.s32.totalorder %s22, 0
      %s334 = scalar_select %p333, %s22, 0
      %s335 = smul.addr %s334, 2
      %s336 = scalar_lea.vmem %s2, %s335
      %p337 = scmp.lt.s32.totalorder %s22, 0
      %s338 = scalar_select %p337, %s22, 0
      %s339 = scalar_lea.vmem %s3, %s338
      %s340 = smul.u32 40, %s21
      %p341 = scmp.lt.s32.totalorder %s20, 1
      %s342 = scalar_select %p341, %s20, 1
      %p343 = scmp.lt.s32.totalorder %s340, 39
      %s344 = scalar_select %p343, %s340, 39
      %p345 = scmp.lt.s32.totalorder %s22, 0
      %s346 = scalar_select %p345, %s22, 0
      %s347 = sadd.s32 %s346, %s344
      %s348 = smul.addr %s342, 40
      %s349 = sadd.s32 %s347, %s348
      %s350 = smul.addr %s349, 4
      %s351 = scalar_lea.vmem %s4, %s350
      %s352 = smul.u32 40, %s21
      %p354 = scmp.eq.s32.totalorder %s22, 0
      // Predicated region
      $region37: #{block_forward.1} parent=35 // pred_check
        %p355 = pneg %p354
      $region38: #{block_forward.1} parent=35 // pred_check_branch
        %357 = sbr.rel (%p355) target = $region40
      $region39: #{block_forward.1} parent=35 // pred_region
        %v358 = vld [vmem:[%s313] sm:$0xf]
        %v359 = vld [vmem:[%s313 + $0x4] sm:$0xf]
        %v360 = vld [vmem:[%s313 + $0x8] sm:$0xf]
        %v361 = vld [vmem:[%s313 + $0xc] sm:$0xf]
        %v362 = vld [vmem:[%s313 + $0x10] sm:$0xf]
        %v363 = vld [vmem:[%s313 + $0x14] sm:$0xf]
        %v364 = vld [vmem:[%s313 + $0x18] sm:$0xf]
        %v365 = vld [vmem:[%s313 + $0x1c] sm:$0xf]
        %v366 = vld [vmem:[%s313 + $0x20] sm:$0xf]
        %v367 = vld [vmem:[%s313 + $0x24] sm:$0xf]
        %v368 = vld [vmem:[%s313 + $0x28] sm:$0xf]
        %v369 = vld [vmem:[%s313 + $0x2c] sm:$0xf]
        %v370 = vld [vmem:[%s313 + $0x30] sm:$0xf]
        %v371 = vld [vmem:[%s313 + $0x34] sm:$0xf]
        %v372 = vld [vmem:[%s313 + $0x38] sm:$0xf]
        %v373 = vld [vmem:[%s313 + $0x3c] sm:$0xf]
        %v374 = vld [vmem:[%s313 + $0x40] sm:$0xf]
        %v375 = vld [vmem:[%s313 + $0x44] sm:$0xf]
        %v376 = vld [vmem:[%s313 + $0x48] sm:$0xf]
        %v377 = vld [vmem:[%s313 + $0x4c] sm:$0xf]
        %v378 = vld [vmem:[%s313 + $0x50] sm:$0xf]
        %v379 = vld [vmem:[%s313 + $0x54] sm:$0xf]
        %v380 = vld [vmem:[%s313 + $0x58] sm:$0xf]
        %v381 = vld [vmem:[%s313 + $0x5c] sm:$0xf]
        %v382 = vld [vmem:[%s313 + $0x60] sm:$0xf]
        %v383 = vld [vmem:[%s313 + $0x64] sm:$0xf]
        %v384 = vld [vmem:[%s313 + $0x68] sm:$0xf]
        %v385 = vld [vmem:[%s313 + $0x6c] sm:$0xf]
        %v386 = vld [vmem:[%s313 + $0x70] sm:$0xf]
        %v387 = vld [vmem:[%s313 + $0x74] sm:$0xf]
        %v388 = vld [vmem:[%s313 + $0x78] sm:$0xf]
        %v389 = vld [vmem:[%s313 + $0x7c] sm:$0xf]
        %v390 = vld [vmem:[%s313 + $0x80] sm:$0xf]
        %v391 = vld [vmem:[%s313 + $0x84] sm:$0xf]
        %v392 = vld [vmem:[%s313 + $0x88] sm:$0xf]
        %v393 = vld [vmem:[%s313 + $0x8c] sm:$0xf]
        %v394 = vld [vmem:[%s313 + $0x90] sm:$0xf]
        %v395 = vld [vmem:[%s313 + $0x94] sm:$0xf]
        %v396 = vld [vmem:[%s313 + $0x98] sm:$0xf]
        %v397 = vld [vmem:[%s313 + $0x9c] sm:$0xf]
        %v398 = vunpack.c.l.bf16 %v358
        %v399 = vunpack.c.l.bf16 %v359
        %v400 = vunpack.c.l.bf16 %v360
        %v401 = vunpack.c.l.bf16 %v361
        %v402 = vunpack.c.l.bf16 %v362
        %v403 = vunpack.c.l.bf16 %v363
        %v404 = vunpack.c.l.bf16 %v364
        %v405 = vunpack.c.l.bf16 %v365
        %v406 = vunpack.c.l.bf16 %v366
        %v407 = vunpack.c.l.bf16 %v367
        %v408 = vunpack.c.l.bf16 %v368
        %v409 = vunpack.c.l.bf16 %v369
        %v410 = vunpack.c.l.bf16 %v370
        %v411 = vunpack.c.l.bf16 %v371
        %v412 = vunpack.c.l.bf16 %v372
        %v413 = vunpack.c.l.bf16 %v373
        %v414 = vunpack.c.l.bf16 %v374
        %v415 = vunpack.c.l.bf16 %v375
        %v416 = vunpack.c.l.bf16 %v376
        %v417 = vunpack.c.l.bf16 %v377
        %v418 = vunpack.c.l.bf16 %v378
        %v419 = vunpack.c.l.bf16 %v379
        %v420 = vunpack.c.l.bf16 %v380
        %v421 = vunpack.c.l.bf16 %v381
        %v422 = vunpack.c.l.bf16 %v382
        %v423 = vunpack.c.l.bf16 %v383
        %v424 = vunpack.c.l.bf16 %v384
        %v425 = vunpack.c.l.bf16 %v385
        %v426 = vunpack.c.l.bf16 %v386
        %v427 = vunpack.c.l.bf16 %v387
        %v428 = vunpack.c.l.bf16 %v388
        %v429 = vunpack.c.l.bf16 %v389
        %v430 = vunpack.c.l.bf16 %v390
        %v431 = vunpack.c.l.bf16 %v391
        %v432 = vunpack.c.l.bf16 %v392
        %v433 = vunpack.c.l.bf16 %v393
        %v434 = vunpack.c.l.bf16 %v394
        %v435 = vunpack.c.l.bf16 %v395
        %v436 = vunpack.c.l.bf16 %v396
        %v437 = vunpack.c.l.bf16 %v397
        %vm438 = vcmask 31744
        %439 = vst.msk [vmem:[#allocation2] sm:$0xff] %vm438, %v398
        %440 = vst.msk [vmem:[#allocation2 + $0x8] sm:$0xff] %vm438, %v399
        %441 = vst.msk [vmem:[#allocation2 + $0x10] sm:$0xff] %vm438, %v400
        %442 = vst.msk [vmem:[#allocation2 + $0x18] sm:$0xff] %vm438, %v401
        %443 = vst.msk [vmem:[#allocation2 + $0x20] sm:$0xff] %vm438, %v402
        %444 = vst.msk [vmem:[#allocation2 + $0x28] sm:$0xff] %vm438, %v403
        %445 = vst.msk [vmem:[#allocation2 + $0x30] sm:$0xff] %vm438, %v404
        %446 = vst.msk [vmem:[#allocation2 + $0x38] sm:$0xff] %vm438, %v405
        %447 = vst.msk [vmem:[#allocation2 + $0x40] sm:$0xff] %vm438, %v406
        %448 = vst.msk [vmem:[#allocation2 + $0x48] sm:$0xff] %vm438, %v407
        %449 = vst.msk [vmem:[#allocation2 + $0x50] sm:$0xff] %vm438, %v408
        %450 = vst.msk [vmem:[#allocation2 + $0x58] sm:$0xff] %vm438, %v409
        %451 = vst.msk [vmem:[#allocation2 + $0x60] sm:$0xff] %vm438, %v410
        %452 = vst.msk [vmem:[#allocation2 + $0x68] sm:$0xff] %vm438, %v411
        %453 = vst.msk [vmem:[#allocation2 + $0x70] sm:$0xff] %vm438, %v412
        %454 = vst.msk [vmem:[#allocation2 + $0x78] sm:$0xff] %vm438, %v413
        %455 = vst.msk [vmem:[#allocation2 + $0x80] sm:$0xff] %vm438, %v414
        %456 = vst.msk [vmem:[#allocation2 + $0x88] sm:$0xff] %vm438, %v415
        %457 = vst.msk [vmem:[#allocation2 + $0x90] sm:$0xff] %vm438, %v416
        %458 = vst.msk [vmem:[#allocation2 + $0x98] sm:$0xff] %vm438, %v417
        %459 = vst.msk [vmem:[#allocation2 + $0xa0] sm:$0xff] %vm438, %v418
        %460 = vst.msk [vmem:[#allocation2 + $0xa8] sm:$0xff] %vm438, %v419
        %461 = vst.msk [vmem:[#allocation2 + $0xb0] sm:$0xff] %vm438, %v420
        %462 = vst.msk [vmem:[#allocation2 + $0xb8] sm:$0xff] %vm438, %v421
        %463 = vst.msk [vmem:[#allocation2 + $0xc0] sm:$0xff] %vm438, %v422
        %464 = vst.msk [vmem:[#allocation2 + $0xc8] sm:$0xff] %vm438, %v423
        %465 = vst.msk [vmem:[#allocation2 + $0xd0] sm:$0xff] %vm438, %v424
        %466 = vst.msk [vmem:[#allocation2 + $0xd8] sm:$0xff] %vm438, %v425
        %467 = vst.msk [vmem:[#allocation2 + $0xe0] sm:$0xff] %vm438, %v426
        %468 = vst.msk [vmem:[#allocation2 + $0xe8] sm:$0xff] %vm438, %v427
        %469 = vst.msk [vmem:[#allocation2 + $0xf0] sm:$0xff] %vm438, %v428
        %470 = vst.msk [vmem:[#allocation2 + $0xf8] sm:$0xff] %vm438, %v429
        %471 = vst.msk [vmem:[#allocation2 + $0x100] sm:$0xff] %vm438, %v430
        %472 = vst.msk [vmem:[#allocation2 + $0x108] sm:$0xff] %vm438, %v431
        %473 = vst.msk [vmem:[#allocation2 + $0x110] sm:$0xff] %vm438, %v432
        %474 = vst.msk [vmem:[#allocation2 + $0x118] sm:$0xff] %vm438, %v433
        %475 = vst.msk [vmem:[#allocation2 + $0x120] sm:$0xff] %vm438, %v434
        %476 = vst.msk [vmem:[#allocation2 + $0x128] sm:$0xff] %vm438, %v435
        %477 = vst.msk [vmem:[#allocation2 + $0x130] sm:$0xff] %vm438, %v436
        %478 = vst.msk [vmem:[#allocation2 + $0x138] sm:$0xff] %vm438, %v437
        %v479 = vld [vmem:[%s329] sm:$0xf]
        %v480 = vld [vmem:[%s329 + $0x4] sm:$0xf]
        %v481 = vld [vmem:[%s329 + $0x8] sm:$0xf]
        %v482 = vld [vmem:[%s329 + $0xc] sm:$0xf]
        %v483 = vld [vmem:[%s329 + $0x10] sm:$0xf]
        %v484 = vunpack.c.l.bf16 %v479
        %v485 = vunpack.c.l.bf16 %v480
        %v486 = vunpack.c.l.bf16 %v481
        %v487 = vunpack.c.l.bf16 %v482
        %v488 = vunpack.c.l.bf16 %v483
        %489 = vst.msk [vmem:[#allocation2 + $0x140] sm:$0xff] %vm438, %v484
        %490 = vst.msk [vmem:[#allocation2 + $0x148] sm:$0xff] %vm438, %v485
        %491 = vst.msk [vmem:[#allocation2 + $0x150] sm:$0xff] %vm438, %v486
        %492 = vst.msk [vmem:[#allocation2 + $0x158] sm:$0xff] %vm438, %v487
        %493 = vst.msk [vmem:[#allocation2 + $0x160] sm:$0xff] %vm438, %v488
      $region40: #{block_forward.1} parent=35 // pred_fallthru
        _
      %v494 = vld [vmem:[#allocation2] sm:$0xff]
      %v495 = vld [vmem:[#allocation2 + $0x8] sm:$0xff]
      %v496 = vld [vmem:[#allocation2 + $0x10] sm:$0xff]
      %v497 = vld [vmem:[#allocation2 + $0x18] sm:$0xff]
      %v498 = vld [vmem:[#allocation2 + $0x20] sm:$0xff]
      %v499 = vld [vmem:[#allocation2 + $0x28] sm:$0xff]
      %v500 = vld [vmem:[#allocation2 + $0x30] sm:$0xff]
      %v501 = vld [vmem:[#allocation2 + $0x38] sm:$0xff]
      %v502 = vld [vmem:[#allocation2 + $0x40] sm:$0xff]
      %v503 = vld [vmem:[#allocation2 + $0x48] sm:$0xff]
      %v504 = vld [vmem:[#allocation2 + $0x50] sm:$0xff]
      %v505 = vld [vmem:[#allocation2 + $0x58] sm:$0xff]
      %v506 = vld [vmem:[#allocation2 + $0x60] sm:$0xff]
      %v507 = vld [vmem:[#allocation2 + $0x68] sm:$0xff]
      %v508 = vld [vmem:[#allocation2 + $0x70] sm:$0xff]
      %v509 = vld [vmem:[#allocation2 + $0x78] sm:$0xff]
      %v510 = vld [vmem:[#allocation2 + $0x80] sm:$0xff]
      %v511 = vld [vmem:[#allocation2 + $0x88] sm:$0xff]
      %v512 = vld [vmem:[#allocation2 + $0x90] sm:$0xff]
      %v513 = vld [vmem:[#allocation2 + $0x98] sm:$0xff]
      %v514 = vld [vmem:[#allocation2 + $0xa0] sm:$0xff]
      %v515 = vld [vmem:[#allocation2 + $0xa8] sm:$0xff]
      %v516 = vld [vmem:[#allocation2 + $0xb0] sm:$0xff]
      %v517 = vld [vmem:[#allocation2 + $0xb8] sm:$0xff]
      %v518 = vld [vmem:[#allocation2 + $0xc0] sm:$0xff]
      %v519 = vld [vmem:[#allocation2 + $0xc8] sm:$0xff]
      %v520 = vld [vmem:[#allocation2 + $0xd0] sm:$0xff]
      %v521 = vld [vmem:[#allocation2 + $0xd8] sm:$0xff]
      %v522 = vld [vmem:[#allocation2 + $0xe0] sm:$0xff]
      %v523 = vld [vmem:[#allocation2 + $0xe8] sm:$0xff]
      %v524 = vld [vmem:[#allocation2 + $0xf0] sm:$0xff]
      %v525 = vld [vmem:[#allocation2 + $0xf8] sm:$0xff]
      %v526 = vld [vmem:[#allocation2 + $0x100] sm:$0xff]
      %v527 = vld [vmem:[#allocation2 + $0x108] sm:$0xff]
      %v528 = vld [vmem:[#allocation2 + $0x110] sm:$0xff]
      %v529 = vld [vmem:[#allocation2 + $0x118] sm:$0xff]
      %v530 = vld [vmem:[#allocation2 + $0x120] sm:$0xff]
      %v531 = vld [vmem:[#allocation2 + $0x128] sm:$0xff]
      %v532 = vld [vmem:[#allocation2 + $0x130] sm:$0xff]
      %v533 = vld [vmem:[#allocation2 + $0x138] sm:$0xff]
      %v534 = vpack.c.bf16 %v495, %v494
      %v535 = vpack.c.bf16 %v497, %v496
      %v536 = vpack.c.bf16 %v499, %v498
      %v537 = vpack.c.bf16 %v501, %v500
      %v538 = vpack.c.bf16 %v503, %v502
      %v539 = vpack.c.bf16 %v505, %v504
      %v540 = vpack.c.bf16 %v507, %v506
      %v541 = vpack.c.bf16 %v509, %v508
      %v542 = vpack.c.bf16 %v511, %v510
      %v543 = vpack.c.bf16 %v513, %v512
      %v544 = vpack.c.bf16 %v515, %v514
      %v545 = vpack.c.bf16 %v517, %v516
      %v546 = vpack.c.bf16 %v519, %v518
      %v547 = vpack.c.bf16 %v521, %v520
      %v548 = vpack.c.bf16 %v523, %v522
      %v549 = vpack.c.bf16 %v525, %v524
      %v550 = vpack.c.bf16 %v527, %v526
      %v551 = vpack.c.bf16 %v529, %v528
      %v552 = vpack.c.bf16 %v531, %v530
      %v553 = vpack.c.bf16 %v533, %v532
      %v554 = vld [vmem:[%s336] sm:$0x3]
      %v555 = vld [vmem:[#allocation2 + $0x1] sm:$0xff]
      %v556 = vld [vmem:[#allocation2 + $0x9] sm:$0xff]
      %v557 = vld [vmem:[#allocation2 + $0x11] sm:$0xff]
      %v558 = vld [vmem:[#allocation2 + $0x19] sm:$0xff]
      %v559 = vld [vmem:[#allocation2 + $0x21] sm:$0xff]
      %v560 = vld [vmem:[#allocation2 + $0x29] sm:$0xff]
      %v561 = vld [vmem:[#allocation2 + $0x31] sm:$0xff]
      %v562 = vld [vmem:[#allocation2 + $0x39] sm:$0xff]
      %v563 = vld [vmem:[#allocation2 + $0x41] sm:$0xff]
      %v564 = vld [vmem:[#allocation2 + $0x49] sm:$0xff]
      %v565 = vld [vmem:[#allocation2 + $0x51] sm:$0xff]
      %v566 = vld [vmem:[#allocation2 + $0x59] sm:$0xff]
      %v567 = vld [vmem:[#allocation2 + $0x61] sm:$0xff]
      %v568 = vld [vmem:[#allocation2 + $0x69] sm:$0xff]
      %v569 = vld [vmem:[#allocation2 + $0x71] sm:$0xff]
      %v570 = vld [vmem:[#allocation2 + $0x79] sm:$0xff]
      %v571 = vld [vmem:[#allocation2 + $0x81] sm:$0xff]
      %v572 = vld [vmem:[#allocation2 + $0x89] sm:$0xff]
      %v573 = vld [vmem:[#allocation2 + $0x91] sm:$0xff]
      %v574 = vld [vmem:[#allocation2 + $0x99] sm:$0xff]
      %v575 = vld [vmem:[#allocation2 + $0xa1] sm:$0xff]
      %v576 = vld [vmem:[#allocation2 + $0xa9] sm:$0xff]
      %v577 = vld [vmem:[#allocation2 + $0xb1] sm:$0xff]
      %v578 = vld [vmem:[#allocation2 + $0xb9] sm:$0xff]
      %v579 = vld [vmem:[#allocation2 + $0xc1] sm:$0xff]
      %v580 = vld [vmem:[#allocation2 + $0xc9] sm:$0xff]
      %v581 = vld [vmem:[#allocation2 + $0xd1] sm:$0xff]
      %v582 = vld [vmem:[#allocation2 + $0xd9] sm:$0xff]
      %v583 = vld [vmem:[#allocation2 + $0xe1] sm:$0xff]
      %v584 = vld [vmem:[#allocation2 + $0xe9] sm:$0xff]
      %v585 = vld [vmem:[#allocation2 + $0xf1] sm:$0xff]
      %v586 = vld [vmem:[#allocation2 + $0xf9] sm:$0xff]
      %v587 = vld [vmem:[#allocation2 + $0x101] sm:$0xff]
      %v588 = vld [vmem:[#allocation2 + $0x109] sm:$0xff]
      %v589 = vld [vmem:[#allocation2 + $0x111] sm:$0xff]
      %v590 = vld [vmem:[#allocation2 + $0x119] sm:$0xff]
      %v591 = vld [vmem:[#allocation2 + $0x121] sm:$0xff]
      %v592 = vld [vmem:[#allocation2 + $0x129] sm:$0xff]
      %v593 = vld [vmem:[#allocation2 + $0x131] sm:$0xff]
      %v594 = vld [vmem:[#allocation2 + $0x139] sm:$0xff]
      %v595 = vpack.c.bf16 %v556, %v555
      %v596 = vpack.c.bf16 %v558, %v557
      %v597 = vpack.c.bf16 %v560, %v559
      %v598 = vpack.c.bf16 %v562, %v561
      %v599 = vpack.c.bf16 %v564, %v563
      %v600 = vpack.c.bf16 %v566, %v565
      %v601 = vpack.c.bf16 %v568, %v567
      %v602 = vpack.c.bf16 %v570, %v569
      %v603 = vpack.c.bf16 %v572, %v571
      %v604 = vpack.c.bf16 %v574, %v573
      %v605 = vpack.c.bf16 %v576, %v575
      %v606 = vpack.c.bf16 %v578, %v577
      %v607 = vpack.c.bf16 %v580, %v579
      %v608 = vpack.c.bf16 %v582, %v581
      %v609 = vpack.c.bf16 %v584, %v583
      %v610 = vpack.c.bf16 %v586, %v585
      %v611 = vpack.c.bf16 %v588, %v587
      %v612 = vpack.c.bf16 %v590, %v589
      %v613 = vpack.c.bf16 %v592, %v591
      %v614 = vpack.c.bf16 %v594, %v593
      %s615 = scalar_lea.vmem %s336, 2
      %v616 = vld [vmem:[%s615] sm:$0x3]
      %vm617 = vcmask 31744
      %v619 = vsel %vm617, %v595, 0
      %v622 = vsel %vm617, %v596, 0
      %v625 = vsel %vm617, %v597, 0
      %v628 = vsel %vm617, %v598, 0
      %v631 = vsel %vm617, %v599, 0
      %v634 = vsel %vm617, %v600, 0
      %v637 = vsel %vm617, %v601, 0
      %v640 = vsel %vm617, %v602, 0
      %v643 = vsel %vm617, %v603, 0
      %v646 = vsel %vm617, %v604, 0
      %v649 = vsel %vm617, %v605, 0
      %v652 = vsel %vm617, %v606, 0
      %v655 = vsel %vm617, %v607, 0
      %v658 = vsel %vm617, %v608, 0
      %v661 = vsel %vm617, %v609, 0
      %v664 = vsel %vm617, %v610, 0
      %v667 = vsel %vm617, %v611, 0
      %v670 = vsel %vm617, %v612, 0
      %v673 = vsel %vm617, %v613, 0
      %v676 = vsel %vm617, %v614, 0
      %vm678 = vcmask 1041408
      %v680 = vsel %vm678, %v616, 0
      %682 = vmatprep.subr.bf16.mxu0 0
      %683 = vmatpush1.bf16.msra.mxu0 %v680
      %684 = vmatprep.subr.bf16.mxu0 0
      %685 = vmatpush1.bf16.msra.mxu0 0
      %686 = vmatprep.subr.bf16.mxu0 0
      %687 = vmatpush1.bf16.msra.mxu0 0
      %688 = vmatprep.subr.bf16.mxu0 0
      %689 = vmatpush1.bf16.msra.mxu0 0
      %690 = vmatprep.subr.bf16.mxu0 0
      %691 = vmatpush1.bf16.msra.mxu0 0
      %692 = vmatprep.subr.bf16.mxu0 0
      %693 = vmatpush1.bf16.msra.mxu0 0
      %694 = vmatprep.subr.bf16.mxu0 0
      %695 = vmatpush1.bf16.msra.mxu0 0
      %696 = vmatprep.subr.bf16.mxu0 0
      %697 = vmatpush1.bf16.msra.mxu0 0
      %698 = vmatprep.subr.bf16.mxu0 0
      %699 = vmatpush1.bf16.msra.mxu0 0
      %700 = vmatprep.subr.bf16.mxu0 0
      %701 = vmatpush1.bf16.msra.mxu0 0
      %702 = vmatprep.subr.bf16.mxu0 0
      %703 = vmatpush1.bf16.msra.mxu0 0
      %704 = vmatprep.subr.bf16.mxu0 0
      %705 = vmatpush1.bf16.msra.mxu0 0
      %706 = vmatprep.subr.bf16.mxu0 0
      %707 = vmatpush1.bf16.msra.mxu0 0
      %708 = vmatprep.subr.bf16.mxu0 0
      %709 = vmatpush1.bf16.msra.mxu0 0
      %710 = vmatprep.subr.bf16.mxu0 0
      %711 = vmatpush1.bf16.msra.mxu0 0
      %712 = vmatprep.subr.bf16.mxu0 0
      %713 = vmatpush1.bf16.msra.mxu0 0
      %714 = vmatprep.mubr.bf16.mxu0 0
      %715 = vmatmul.mubr.bf16.gmra.mrb[0].mxu0 %v619
      %v716 = vpop.f32.mrb[0].mxu0
      %v717 = vadd.f32 0.0, %v716
      %v718 = vpop.f32.mrb[0].mxu0
      %v719 = vpop.f32.mrb[0].mxu0
      %v720 = vadd.f32 0.0, %v719
      %v721 = vpop.f32.mrb[0].mxu0
      %722 = vmatprep.mubr.bf16.mxu0 0
      %723 = vmatmul.mubr.bf16.gmra.mrb[0].mxu0 %v622
      %v724 = vpop.f32.mrb[0].mxu0
      %v725 = vadd.f32 0.0, %v724
      %v726 = vpop.f32.mrb[0].mxu0
      %v727 = vpop.f32.mrb[0].mxu0
      %v728 = vadd.f32 0.0, %v727
      %v729 = vpop.f32.mrb[0].mxu0
      %730 = vmatprep.mubr.bf16.mxu0 0
      %731 = vmatmul.mubr.bf16.gmra.mrb[0].mxu0 %v625
      %v732 = vpop.f32.mrb[0].mxu0
      %v733 = vadd.f32 0.0, %v732
      %v734 = vpop.f32.mrb[0].mxu0
      %v735 = vpop.f32.mrb[0].mxu0
      %v736 = vadd.f32 0.0, %v735
      %v737 = vpop.f32.mrb[0].mxu0
      %738 = vmatprep.mubr.bf16.mxu0 0
      %739 = vmatmul.mubr.bf16.gmra.mrb[0].mxu0 %v628
      %v740 = vpop.f32.mrb[0].mxu0
      %v741 = vadd.f32 0.0, %v740
      %v742 = vpop.f32.mrb[0].mxu0
      %v743 = vpop.f32.mrb[0].mxu0
      %v744 = vadd.f32 0.0, %v743
      %v745 = vpop.f32.mrb[0].mxu0
      %746 = vmatprep.mubr.bf16.mxu0 0
      %747 = vmatmul.mubr.bf16.gmra.mrb[0].mxu0 %v631
      %v748 = vpop.f32.mrb[0].mxu0
      %v749 = vadd.f32 0.0, %v748
      %v750 = vpop.f32.mrb[0].mxu0
      %v751 = vpop.f32.mrb[0].mxu0
      %v752 = vadd.f32 0.0, %v751
      %v753 = vpop.f32.mrb[0].mxu0
      %754 = vmatprep.mubr.bf16.mxu0 0
      %755 = vmatmul.mubr.bf16.gmra.mrb[0].mxu0 %v634
      %v756 = vpop.f32.mrb[0].mxu0
      %v757 = vadd.f32 0.0, %v756
      %v758 = vpop.f32.mrb[0].mxu0
      %v759 = vpop.f32.mrb[0].mxu0
      %v760 = vadd.f32 0.0, %v759
      %v761 = vpop.f32.mrb[0].mxu0
      %762 = vmatprep.mubr.bf16.mxu0 0
      %763 = vmatmul.mubr.bf16.gmra.mrb[0].mxu0 %v637
      %v764 = vpop.f32.mrb[0].mxu0
      %v765 = vadd.f32 0.0, %v764
      %v766 = vpop.f32.mrb[0].mxu0
      %v767 = vpop.f32.mrb[0].mxu0
      %v768 = vadd.f32 0.0, %v767
      %v769 = vpop.f32.mrb[0].mxu0
      %770 = vmatprep.mubr.bf16.mxu0 0
      %771 = vmatmul.mubr.bf16.gmra.mrb[0].mxu0 %v640
      %v772 = vpop.f32.mrb[0].mxu0
      %v773 = vadd.f32 0.0, %v772
      %v774 = vpop.f32.mrb[0].mxu0
      %v775 = vpop.f32.mrb[0].mxu0
      %v776 = vadd.f32 0.0, %v775
      %v777 = vpop.f32.mrb[0].mxu0
      %778 = vmatprep.mubr.bf16.mxu0 0
      %779 = vmatmul.mubr.bf16.gmra.mrb[0].mxu0 %v643
      %v780 = vpop.f32.mrb[0].mxu0
      %v781 = vadd.f32 0.0, %v780
      %v782 = vpop.f32.mrb[0].mxu0
      %v783 = vpop.f32.mrb[0].mxu0
      %v784 = vadd.f32 0.0, %v783
      %v785 = vpop.f32.mrb[0].mxu0
      %786 = vmatprep.mubr.bf16.mxu0 0
      %787 = vmatmul.mubr.bf16.gmra.mrb[0].mxu0 %v646
      %v788 = vpop.f32.mrb[0].mxu0
      %v789 = vadd.f32 0.0, %v788
      %v790 = vpop.f32.mrb[0].mxu0
      %v791 = vpop.f32.mrb[0].mxu0
      %v792 = vadd.f32 0.0, %v791
      %v793 = vpop.f32.mrb[0].mxu0
      %794 = vmatprep.mubr.bf16.mxu0 0
      %795 = vmatmul.mubr.bf16.gmra.mrb[0].mxu0 %v649
      %v796 = vpop.f32.mrb[0].mxu0
      %v797 = vadd.f32 0.0, %v796
      %v798 = vpop.f32.mrb[0].mxu0
      %v799 = vpop.f32.mrb[0].mxu0
      %v800 = vadd.f32 0.0, %v799
      %v801 = vpop.f32.mrb[0].mxu0
      %802 = vmatprep.mubr.bf16.mxu0 0
      %803 = vmatmul.mubr.bf16.gmra.mrb[0].mxu0 %v652
      %v804 = vpop.f32.mrb[0].mxu0
      %v805 = vadd.f32 0.0, %v804
      %v806 = vpop.f32.mrb[0].mxu0
      %v807 = vpop.f32.mrb[0].mxu0
      %v808 = vadd.f32 0.0, %v807
      %v809 = vpop.f32.mrb[0].mxu0
      %810 = vmatprep.mubr.bf16.mxu0 0
      %811 = vmatmul.mubr.bf16.gmra.mrb[0].mxu0 %v655
      %v812 = vpop.f32.mrb[0].mxu0
      %v813 = vadd.f32 0.0, %v812
      %v814 = vpop.f32.mrb[0].mxu0
      %v815 = vpop.f32.mrb[0].mxu0
      %v816 = vadd.f32 0.0, %v815
      %v817 = vpop.f32.mrb[0].mxu0
      %818 = vmatprep.mubr.bf16.mxu0 0
      %819 = vmatmul.mubr.bf16.gmra.mrb[0].mxu0 %v658
      %v820 = vpop.f32.mrb[0].mxu0
      %v821 = vadd.f32 0.0, %v820
      %v822 = vpop.f32.mrb[0].mxu0
      %v823 = vpop.f32.mrb[0].mxu0
      %v824 = vadd.f32 0.0, %v823
      %v825 = vpop.f32.mrb[0].mxu0
      %826 = vmatprep.mubr.bf16.mxu0 0
      %827 = vmatmul.mubr.bf16.gmra.mrb[0].mxu0 %v661
      %v828 = vpop.f32.mrb[0].mxu0
      %v829 = vadd.f32 0.0, %v828
      %v830 = vpop.f32.mrb[0].mxu0
      %v831 = vpop.f32.mrb[0].mxu0
      %v832 = vadd.f32 0.0, %v831
      %v833 = vpop.f32.mrb[0].mxu0
      %834 = vmatprep.mubr.bf16.mxu0 0
      %835 = vmatmul.mubr.bf16.gmra.mrb[0].mxu0 %v664
      %v836 = vpop.f32.mrb[0].mxu0
      %v837 = vadd.f32 0.0, %v836
      %v838 = vpop.f32.mrb[0].mxu0
      %v839 = vpop.f32.mrb[0].mxu0
      %v840 = vadd.f32 0.0, %v839
      %v841 = vpop.f32.mrb[0].mxu0
      %842 = vmatprep.mubr.bf16.mxu0 0
      %843 = vmatmul.mubr.bf16.gmra.mrb[0].mxu0 %v667
      %v844 = vpop.f32.mrb[0].mxu0
      %v845 = vadd.f32 0.0, %v844
      %v846 = vpop.f32.mrb[0].mxu0
      %v847 = vpop.f32.mrb[0].mxu0
      %v848 = vadd.f32 0.0, %v847
      %v849 = vpop.f32.mrb[0].mxu0
      %850 = vmatprep.mubr.bf16.mxu0 0
      %851 = vmatmul.mubr.bf16.gmra.mrb[0].mxu0 %v670
      %v852 = vpop.f32.mrb[0].mxu0
      %v853 = vadd.f32 0.0, %v852
      %v854 = vpop.f32.mrb[0].mxu0
      %v855 = vpop.f32.mrb[0].mxu0
      %v856 = vadd.f32 0.0, %v855
      %v857 = vpop.f32.mrb[0].mxu0
      %858 = vmatprep.mubr.bf16.mxu0 0
      %859 = vmatmul.mubr.bf16.gmra.mrb[0].mxu0 %v673
      %v860 = vpop.f32.mrb[0].mxu0
      %v861 = vadd.f32 0.0, %v860
      %v862 = vpop.f32.mrb[0].mxu0
      %v863 = vpop.f32.mrb[0].mxu0
      %v864 = vadd.f32 0.0, %v863
      %v865 = vpop.f32.mrb[0].mxu0
      %866 = vmatprep.mubr.bf16.mxu0 0
      %867 = vmatmul.mubr.bf16.gmra.mrb[0].mxu0 %v676
      %v868 = vpop.f32.mrb[0].mxu0
      %v869 = vadd.f32 0.0, %v868
      %v870 = vpop.f32.mrb[0].mxu0
      %v871 = vpop.f32.mrb[0].mxu0
      %v872 = vadd.f32 0.0, %v871
      %v873 = vpop.f32.mrb[0].mxu0
      %874 = vdwg.mxu0
      %v876 = vsel %vm617, %v534, 0
      %v879 = vsel %vm617, %v535, 0
      %v882 = vsel %vm617, %v536, 0
      %v885 = vsel %vm617, %v537, 0
      %v888 = vsel %vm617, %v538, 0
      %v891 = vsel %vm617, %v539, 0
      %v894 = vsel %vm617, %v540, 0
      %v897 = vsel %vm617, %v541, 0
      %v900 = vsel %vm617, %v542, 0
      %v903 = vsel %vm617, %v543, 0
      %v906 = vsel %vm617, %v544, 0
      %v909 = vsel %vm617, %v545, 0
      %v912 = vsel %vm617, %v546, 0
      %v915 = vsel %vm617, %v547, 0
      %v918 = vsel %vm617, %v548, 0
      %v921 = vsel %vm617, %v549, 0
      %v924 = vsel %vm617, %v550, 0
      %v927 = vsel %vm617, %v551, 0
      %v930 = vsel %vm617, %v552, 0
      %v933 = vsel %vm617, %v553, 0
      %v936 = vsel %vm678, %v554, 0
      %938 = vmatprep.subr.bf16.mxu0 0
      %939 = vmatpush1.bf16.msra.mxu0 %v936
      %940 = vmatprep.subr.bf16.mxu0 0
      %941 = vmatpush1.bf16.msra.mxu0 0
      %942 = vmatprep.subr.bf16.mxu0 0
      %943 = vmatpush1.bf16.msra.mxu0 0
      %944 = vmatprep.subr.bf16.mxu0 0
      %945 = vmatpush1.bf16.msra.mxu0 0
      %946 = vmatprep.subr.bf16.mxu0 0
      %947 = vmatpush1.bf16.msra.mxu0 0
      %948 = vmatprep.subr.bf16.mxu0 0
      %949 = vmatpush1.bf16.msra.mxu0 0
      %950 = vmatprep.subr.bf16.mxu0 0
      %951 = vmatpush1.bf16.msra.mxu0 0
      %952 = vmatprep.subr.bf16.mxu0 0
      %953 = vmatpush1.bf16.msra.mxu0 0
      %954 = vmatprep.subr.bf16.mxu0 0
      %955 = vmatpush1.bf16.msra.mxu0 0
      %956 = vmatprep.subr.bf16.mxu0 0
      %957 = vmatpush1.bf16.msra.mxu0 0
      %958 = vmatprep.subr.bf16.mxu0 0
      %959 = vmatpush1.bf16.msra.mxu0 0
      %960 = vmatprep.subr.bf16.mxu0 0
      %961 = vmatpush1.bf16.msra.mxu0 0
      %962 = vmatprep.subr.bf16.mxu0 0
      %963 = vmatpush1.bf16.msra.mxu0 0
      %964 = vmatprep.subr.bf16.mxu0 0
      %965 = vmatpush1.bf16.msra.mxu0 0
      %966 = vmatprep.subr.bf16.mxu0 0
      %967 = vmatpush1.bf16.msra.mxu0 0
      %968 = vmatprep.subr.bf16.mxu0 0
      %969 = vmatpush1.bf16.msra.mxu0 0
      %970 = vmatprep.mubr.bf16.mxu0 0
      %971 = vmatmul.mubr.bf16.gmra.mrb[0].mxu0 %v876
      %v972 = vpop.f32.mrb[0].mxu0
      %v973 = vadd.f32 %v717, %v972
      %v974 = vpop.f32.mrb[0].mxu0
      %v975 = vpop.f32.mrb[0].mxu0
      %v976 = vadd.f32 %v720, %v975
      %v977 = vpop.f32.mrb[0].mxu0
      %978 = vmatprep.mubr.bf16.mxu0 0
      %979 = vmatmul.mubr.bf16.gmra.mrb[0].mxu0 %v879
      %v980 = vpop.f32.mrb[0].mxu0
      %v981 = vadd.f32 %v725, %v980
      %v982 = vpop.f32.mrb[0].mxu0
      %v983 = vpop.f32.mrb[0].mxu0
      %v984 = vadd.f32 %v728, %v983
      %v985 = vpop.f32.mrb[0].mxu0
      %986 = vmatprep.mubr.bf16.mxu0 0
      %987 = vmatmul.mubr.bf16.gmra.mrb[0].mxu0 %v882
      %v988 = vpop.f32.mrb[0].mxu0
      %v989 = vadd.f32 %v733, %v988
      %v990 = vpop.f32.mrb[0].mxu0
      %v991 = vpop.f32.mrb[0].mxu0
      %v992 = vadd.f32 %v736, %v991
      %v993 = vpop.f32.mrb[0].mxu0
      %994 = vmatprep.mubr.bf16.mxu0 0
      %995 = vmatmul.mubr.bf16.gmra.mrb[0].mxu0 %v885
      %v996 = vpop.f32.mrb[0].mxu0
      %v997 = vadd.f32 %v741, %v996
      %v998 = vpop.f32.mrb[0].mxu0
      %v999 = vpop.f32.mrb[0].mxu0
      %v1000 = vadd.f32 %v744, %v999
      %v1001 = vpop.f32.mrb[0].mxu0
      %1002 = vmatprep.mubr.bf16.mxu0 0
      %1003 = vmatmul.mubr.bf16.gmra.mrb[0].mxu0 %v888
      %v1004 = vpop.f32.mrb[0].mxu0
      %v1005 = vadd.f32 %v749, %v1004
      %v1006 = vpop.f32.mrb[0].mxu0
      %v1007 = vpop.f32.mrb[0].mxu0
      %v1008 = vadd.f32 %v752, %v1007
      %v1009 = vpop.f32.mrb[0].mxu0
      %1010 = vmatprep.mubr.bf16.mxu0 0
      %1011 = vmatmul.mubr.bf16.gmra.mrb[0].mxu0 %v891
      %v1012 = vpop.f32.mrb[0].mxu0
      %v1013 = vadd.f32 %v757, %v1012
      %v1014 = vpop.f32.mrb[0].mxu0
      %v1015 = vpop.f32.mrb[0].mxu0
      %v1016 = vadd.f32 %v760, %v1015
      %v1017 = vpop.f32.mrb[0].mxu0
      %1018 = vmatprep.mubr.bf16.mxu0 0
      %1019 = vmatmul.mubr.bf16.gmra.mrb[0].mxu0 %v894
      %v1020 = vpop.f32.mrb[0].mxu0
      %v1021 = vadd.f32 %v765, %v1020
      %v1022 = vpop.f32.mrb[0].mxu0
      %v1023 = vpop.f32.mrb[0].mxu0
      %v1024 = vadd.f32 %v768, %v1023
      %v1025 = vpop.f32.mrb[0].mxu0
      %1026 = vmatprep.mubr.bf16.mxu0 0
      %1027 = vmatmul.mubr.bf16.gmra.mrb[0].mxu0 %v897
      %v1028 = vpop.f32.mrb[0].mxu0
      %v1029 = vadd.f32 %v773, %v1028
      %v1030 = vpop.f32.mrb[0].mxu0
      %v1031 = vpop.f32.mrb[0].mxu0
      %v1032 = vadd.f32 %v776, %v1031
      %v1033 = vpop.f32.mrb[0].mxu0
      %1034 = vmatprep.mubr.bf16.mxu0 0
      %1035 = vmatmul.mubr.bf16.gmra.mrb[0].mxu0 %v900
      %v1036 = vpop.f32.mrb[0].mxu0
      %v1037 = vadd.f32 %v781, %v1036
      %v1038 = vpop.f32.mrb[0].mxu0
      %v1039 = vpop.f32.mrb[0].mxu0
      %v1040 = vadd.f32 %v784, %v1039
      %v1041 = vpop.f32.mrb[0].mxu0
      %1042 = vmatprep.mubr.bf16.mxu0 0
      %1043 = vmatmul.mubr.bf16.gmra.mrb[0].mxu0 %v903
      %v1044 = vpop.f32.mrb[0].mxu0
      %v1045 = vadd.f32 %v789, %v1044
      %v1046 = vpop.f32.mrb[0].mxu0
      %v1047 = vpop.f32.mrb[0].mxu0
      %v1048 = vadd.f32 %v792, %v1047
      %v1049 = vpop.f32.mrb[0].mxu0
      %1050 = vmatprep.mubr.bf16.mxu0 0
      %1051 = vmatmul.mubr.bf16.gmra.mrb[0].mxu0 %v906
      %v1052 = vpop.f32.mrb[0].mxu0
      %v1053 = vadd.f32 %v797, %v1052
      %v1054 = vpop.f32.mrb[0].mxu0
      %v1055 = vpop.f32.mrb[0].mxu0
      %v1056 = vadd.f32 %v800, %v1055
      %v1057 = vpop.f32.mrb[0].mxu0
      %1058 = vmatprep.mubr.bf16.mxu0 0
      %1059 = vmatmul.mubr.bf16.gmra.mrb[0].mxu0 %v909
      %v1060 = vpop.f32.mrb[0].mxu0
      %v1061 = vadd.f32 %v805, %v1060
      %v1062 = vpop.f32.mrb[0].mxu0
      %v1063 = vpop.f32.mrb[0].mxu0
      %v1064 = vadd.f32 %v808, %v1063
      %v1065 = vpop.f32.mrb[0].mxu0
      %1066 = vmatprep.mubr.bf16.mxu0 0
      %1067 = vmatmul.mubr.bf16.gmra.mrb[0].mxu0 %v912
      %v1068 = vpop.f32.mrb[0].mxu0
      %v1069 = vadd.f32 %v813, %v1068
      %v1070 = vpop.f32.mrb[0].mxu0
      %v1071 = vpop.f32.mrb[0].mxu0
      %v1072 = vadd.f32 %v816, %v1071
      %v1073 = vpop.f32.mrb[0].mxu0
      %1074 = vmatprep.mubr.bf16.mxu0 0
      %1075 = vmatmul.mubr.bf16.gmra.mrb[0].mxu0 %v915
      %v1076 = vpop.f32.mrb[0].mxu0
      %v1077 = vadd.f32 %v821, %v1076
      %v1078 = vpop.f32.mrb[0].mxu0
      %v1079 = vpop.f32.mrb[0].mxu0
      %v1080 = vadd.f32 %v824, %v1079
      %v1081 = vpop.f32.mrb[0].mxu0
      %1082 = vmatprep.mubr.bf16.mxu0 0
      %1083 = vmatmul.mubr.bf16.gmra.mrb[0].mxu0 %v918
      %v1084 = vpop.f32.mrb[0].mxu0
      %v1085 = vadd.f32 %v829, %v1084
      %v1086 = vpop.f32.mrb[0].mxu0
      %v1087 = vpop.f32.mrb[0].mxu0
      %v1088 = vadd.f32 %v832, %v1087
      %v1089 = vpop.f32.mrb[0].mxu0
      %1090 = vmatprep.mubr.bf16.mxu0 0
      %1091 = vmatmul.mubr.bf16.gmra.mrb[0].mxu0 %v921
      %v1092 = vpop.f32.mrb[0].mxu0
      %v1093 = vadd.f32 %v837, %v1092
      %v1094 = vpop.f32.mrb[0].mxu0
      %v1095 = vpop.f32.mrb[0].mxu0
      %v1096 = vadd.f32 %v840, %v1095
      %v1097 = vpop.f32.mrb[0].mxu0
      %1098 = vmatprep.mubr.bf16.mxu0 0
      %1099 = vmatmul.mubr.bf16.gmra.mrb[0].mxu0 %v924
      %v1100 = vpop.f32.mrb[0].mxu0
      %v1101 = vadd.f32 %v845, %v1100
      %v1102 = vpop.f32.mrb[0].mxu0
      %v1103 = vpop.f32.mrb[0].mxu0
      %v1104 = vadd.f32 %v848, %v1103
      %v1105 = vpop.f32.mrb[0].mxu0
      %1106 = vmatprep.mubr.bf16.mxu0 0
      %1107 = vmatmul.mubr.bf16.gmra.mrb[0].mxu0 %v927
      %v1108 = vpop.f32.mrb[0].mxu0
      %v1109 = vadd.f32 %v853, %v1108
      %v1110 = vpop.f32.mrb[0].mxu0
      %v1111 = vpop.f32.mrb[0].mxu0
      %v1112 = vadd.f32 %v856, %v1111
      %v1113 = vpop.f32.mrb[0].mxu0
      %1114 = vmatprep.mubr.bf16.mxu0 0
      %1115 = vmatmul.mubr.bf16.gmra.mrb[0].mxu0 %v930
      %v1116 = vpop.f32.mrb[0].mxu0
      %v1117 = vadd.f32 %v861, %v1116
      %v1118 = vpop.f32.mrb[0].mxu0
      %v1119 = vpop.f32.mrb[0].mxu0
      %v1120 = vadd.f32 %v864, %v1119
      %v1121 = vpop.f32.mrb[0].mxu0
      %1122 = vmatprep.mubr.bf16.mxu0 0
      %1123 = vmatmul.mubr.bf16.gmra.mrb[0].mxu0 %v933
      %v1124 = vpop.f32.mrb[0].mxu0
      %v1125 = vadd.f32 %v869, %v1124
      %v1126 = vpop.f32.mrb[0].mxu0
      %v1127 = vpop.f32.mrb[0].mxu0
      %v1128 = vadd.f32 %v872, %v1127
      %v1129 = vpop.f32.mrb[0].mxu0
      %1130 = vdwg.mxu0
      %v1131 = vld [vmem:[#allocation2 + $0x2] sm:$0xff]
      %v1132 = vld [vmem:[#allocation2 + $0xa] sm:$0xff]
      %v1133 = vld [vmem:[#allocation2 + $0x12] sm:$0xff]
      %v1134 = vld [vmem:[#allocation2 + $0x1a] sm:$0xff]
      %v1135 = vld [vmem:[#allocation2 + $0x22] sm:$0xff]
      %v1136 = vld [vmem:[#allocation2 + $0x2a] sm:$0xff]
      %v1137 = vld [vmem:[#allocation2 + $0x32] sm:$0xff]
      %v1138 = vld [vmem:[#allocation2 + $0x3a] sm:$0xff]
      %v1139 = vld [vmem:[#allocation2 + $0x42] sm:$0xff]
      %v1140 = vld [vmem:[#allocation2 + $0x4a] sm:$0xff]
      %v1141 = vld [vmem:[#allocation2 + $0x52] sm:$0xff]
      %v1142 = vld [vmem:[#allocation2 + $0x5a] sm:$0xff]
      %v1143 = vld [vmem:[#allocation2 + $0x62] sm:$0xff]
      %v1144 = vld [vmem:[#allocation2 + $0x6a] sm:$0xff]
      %v1145 = vld [vmem:[#allocation2 + $0x72] sm:$0xff]
      %v1146 = vld [vmem:[#allocation2 + $0x7a] sm:$0xff]
      %v1147 = vld [vmem:[#allocation2 + $0x82] sm:$0xff]
      %v1148 = vld [vmem:[#allocation2 + $0x8a] sm:$0xff]
      %v1149 = vld [vmem:[#allocation2 + $0x92] sm:$0xff]
      %v1150 = vld [vmem:[#allocation2 + $0x9a] sm:$0xff]
      %v1151 = vld [vmem:[#allocation2 + $0xa2] sm:$0xff]
      %v1152 = vld [vmem:[#allocation2 + $0xaa] sm:$0xff]
      %v1153 = vld [vmem:[#allocation2 + $0xb2] sm:$0xff]
      %v1154 = vld [vmem:[#allocation2 + $0xba] sm:$0xff]
      %v1155 = vld [vmem:[#allocation2 + $0xc2] sm:$0xff]
      %v1156 = vld [vmem:[#allocation2 + $0xca] sm:$0xff]
      %v1157 = vld [vmem:[#allocation2 + $0xd2] sm:$0xff]
      %v1158 = vld [vmem:[#allocation2 + $0xda] sm:$0xff]
      %v1159 = vld [vmem:[#allocation2 + $0xe2] sm:$0xff]
      %v1160 = vld [vmem:[#allocation2 + $0xea] sm:$0xff]
      %v1161 = vld [vmem:[#allocation2 + $0xf2] sm:$0xff]
      %v1162 = vld [vmem:[#allocation2 + $0xfa] sm:$0xff]
      %v1163 = vld [vmem:[#allocation2 + $0x102] sm:$0xff]
      %v1164 = vld [vmem:[#allocation2 + $0x10a] sm:$0xff]
      %v1165 = vld [vmem:[#allocation2 + $0x112] sm:$0xff]
      %v1166 = vld [vmem:[#allocation2 + $0x11a] sm:$0xff]
      %v1167 = vld [vmem:[#allocation2 + $0x122] sm:$0xff]
      %v1168 = vld [vmem:[#allocation2 + $0x12a] sm:$0xff]
      %v1169 = vld [vmem:[#allocation2 + $0x132] sm:$0xff]
      %v1170 = vld [vmem:[#allocation2 + $0x13a] sm:$0xff]
      %v1171 = vpack.c.bf16 %v1132, %v1131
      %v1172 = vpack.c.bf16 %v1134, %v1133
      %v1173 = vpack.c.bf16 %v1136, %v1135
      %v1174 = vpack.c.bf16 %v1138, %v1137
      %v1175 = vpack.c.bf16 %v1140, %v1139
      %v1176 = vpack.c.bf16 %v1142, %v1141
      %v1177 = vpack.c.bf16 %v1144, %v1143
      %v1178 = vpack.c.bf16 %v1146, %v1145
      %v1179 = vpack.c.bf16 %v1148, %v1147
      %v1180 = vpack.c.bf16 %v1150, %v1149
      %v1181 = vpack.c.bf16 %v1152, %v1151
      %v1182 = vpack.c.bf16 %v1154, %v1153
      %v1183 = vpack.c.bf16 %v1156, %v1155
      %v1184 = vpack.c.bf16 %v1158, %v1157
      %v1185 = vpack.c.bf16 %v1160, %v1159
      %v1186 = vpack.c.bf16 %v1162, %v1161
      %v1187 = vpack.c.bf16 %v1164, %v1163
      %v1188 = vpack.c.bf16 %v1166, %v1165
      %v1189 = vpack.c.bf16 %v1168, %v1167
      %v1190 = vpack.c.bf16 %v1170, %v1169
      %s1191 = scalar_lea.vmem %s336, 4
      %v1192 = vld [vmem:[%s1191] sm:$0x3]
      %v1194 = vsel %vm617, %v1171, 0
      %v1197 = vsel %vm617, %v1172, 0
      %v1200 = vsel %vm617, %v1173, 0
      %v1203 = vsel %vm617, %v1174, 0
      %v1206 = vsel %vm617, %v1175, 0
      %v1209 = vsel %vm617, %v1176, 0
      %v1212 = vsel %vm617, %v1177, 0
      %v1215 = vsel %vm617, %v1178, 0
      %v1218 = vsel %vm617, %v1179, 0
      %v1221 = vsel %vm617, %v1180, 0
      %v1224 = vsel %vm617, %v1181, 0
      %v1227 = vsel %vm617, %v1182, 0
      %v1230 = vsel %vm617, %v1183, 0
      %v1233 = vsel %vm617, %v1184, 0
      %v1236 = vsel %vm617, %v1185, 0
      %v1239 = vsel %vm617, %v1186, 0
      %v1242 = vsel %vm617, %v1187, 0
      %v1245 = vsel %vm617, %v1188, 0
      %v1248 = vsel %vm617, %v1189, 0
      %v1251 = vsel %vm617, %v1190, 0
      %v1254 = vsel %vm678, %v1192, 0
      %1256 = vmatprep.subr.bf16.mxu0 0
      %1257 = vmatpush1.bf16.msra.mxu0 %v1254
      %1258 = vmatprep.subr.bf16.mxu0 0
      %1259 = vmatpush1.bf16.msra.mxu0 0
      %1260 = vmatprep.subr.bf16.mxu0 0
      %1261 = vmatpush1.bf16.msra.mxu0 0
      %1262 = vmatprep.subr.bf16.mxu0 0
      %1263 = vmatpush1.bf16.msra.mxu0 0
      %1264 = vmatprep.subr.bf16.mxu0 0
      %1265 = vmatpush1.bf16.msra.mxu0 0
      %1266 = vmatprep.subr.bf16.mxu0 0
      %1267 = vmatpush1.bf16.msra.mxu0 0
      %1268 = vmatprep.subr.bf16.mxu0 0
      %1269 = vmatpush1.bf16.msra.mxu0 0
      %1270 = vmatprep.subr.bf16.mxu0 0
      %1271 = vmatpush1.bf16.msra.mxu0 0
      %1272 = vmatprep.subr.bf16.mxu0 0
      %1273 = vmatpush1.bf16.msra.mxu0 0
      %1274 = vmatprep.subr.bf16.mxu0 0
      %1275 = vmatpush1.bf16.msra.mxu0 0
      %1276 = vmatprep.subr.bf16.mxu0 0
      %1277 = vmatpush1.bf16.msra.mxu0 0
      %1278 = vmatprep.subr.bf16.mxu0 0
      %1279 = vmatpush1.bf16.msra.mxu0 0
      %1280 = vmatprep.subr.bf16.mxu0 0
      %1281 = vmatpush1.bf16.msra.mxu0 0
      %1282 = vmatprep.subr.bf16.mxu0 0
      %1283 = vmatpush1.bf16.msra.mxu0 0
      %1284 = vmatprep.subr.bf16.mxu0 0
      %1285 = vmatpush1.bf16.msra.mxu0 0
      %1286 = vmatprep.subr.bf16.mxu0 0
      %1287 = vmatpush1.bf16.msra.mxu0 0
      %1288 = vmatprep.mubr.bf16.mxu0 0
      %1289 = vmatmul.mubr.bf16.gmra.mrb[0].mxu0 %v1194
      %v1290 = vpop.f32.mrb[0].mxu0
      %v1291 = vadd.f32 0.0, %v1290
      %v1292 = vpop.f32.mrb[0].mxu0
      %v1293 = vpop.f32.mrb[0].mxu0
      %v1294 = vadd.f32 0.0, %v1293
      %v1295 = vpop.f32.mrb[0].mxu0
      %1296 = vmatprep.mubr.bf16.mxu0 0
      %1297 = vmatmul.mubr.bf16.gmra.mrb[0].mxu0 %v1197
      %v1298 = vpop.f32.mrb[0].mxu0
      %v1299 = vadd.f32 0.0, %v1298
      %v1300 = vpop.f32.mrb[0].mxu0
      %v1301 = vpop.f32.mrb[0].mxu0
      %v1302 = vadd.f32 0.0, %v1301
      %v1303 = vpop.f32.mrb[0].mxu0
      %1304 = vmatprep.mubr.bf16.mxu0 0
      %1305 = vmatmul.mubr.bf16.gmra.mrb[0].mxu0 %v1200
      %v1306 = vpop.f32.mrb[0].mxu0
      %v1307 = vadd.f32 0.0, %v1306
      %v1308 = vpop.f32.mrb[0].mxu0
      %v1309 = vpop.f32.mrb[0].mxu0
      %v1310 = vadd.f32 0.0, %v1309
      %v1311 = vpop.f32.mrb[0].mxu0
      %1312 = vmatprep.mubr.bf16.mxu0 0
      %1313 = vmatmul.mubr.bf16.gmra.mrb[0].mxu0 %v1203
      %v1314 = vpop.f32.mrb[0].mxu0
      %v1315 = vadd.f32 0.0, %v1314
      %v1316 = vpop.f32.mrb[0].mxu0
      %v1317 = vpop.f32.mrb[0].mxu0
      %v1318 = vadd.f32 0.0, %v1317
      %v1319 = vpop.f32.mrb[0].mxu0
      %1320 = vmatprep.mubr.bf16.mxu0 0
      %1321 = vmatmul.mubr.bf16.gmra.mrb[0].mxu0 %v1206
      %v1322 = vpop.f32.mrb[0].mxu0
      %v1323 = vadd.f32 0.0, %v1322
      %v1324 = vpop.f32.mrb[0].mxu0
      %v1325 = vpop.f32.mrb[0].mxu0
      %v1326 = vadd.f32 0.0, %v1325
      %v1327 = vpop.f32.mrb[0].mxu0
      %1328 = vmatprep.mubr.bf16.mxu0 0
      %1329 = vmatmul.mubr.bf16.gmra.mrb[0].mxu0 %v1209
      %v1330 = vpop.f32.mrb[0].mxu0
      %v1331 = vadd.f32 0.0, %v1330
      %v1332 = vpop.f32.mrb[0].mxu0
      %v1333 = vpop.f32.mrb[0].mxu0
      %v1334 = vadd.f32 0.0, %v1333
      %v1335 = vpop.f32.mrb[0].mxu0
      %1336 = vmatprep.mubr.bf16.mxu0 0
      %1337 = vmatmul.mubr.bf16.gmra.mrb[0].mxu0 %v1212
      %v1338 = vpop.f32.mrb[0].mxu0
      %v1339 = vadd.f32 0.0, %v1338
      %v1340 = vpop.f32.mrb[0].mxu0
      %v1341 = vpop.f32.mrb[0].mxu0
      %v1342 = vadd.f32 0.0, %v1341
      %v1343 = vpop.f32.mrb[0].mxu0
      %1344 = vmatprep.mubr.bf16.mxu0 0
      %1345 = vmatmul.mubr.bf16.gmra.mrb[0].mxu0 %v1215
      %v1346 = vpop.f32.mrb[0].mxu0
      %v1347 = vadd.f32 0.0, %v1346
      %v1348 = vpop.f32.mrb[0].mxu0
      %v1349 = vpop.f32.mrb[0].mxu0
      %v1350 = vadd.f32 0.0, %v1349
      %v1351 = vpop.f32.mrb[0].mxu0
      %1352 = vmatprep.mubr.bf16.mxu0 0
      %1353 = vmatmul.mubr.bf16.gmra.mrb[0].mxu0 %v1218
      %v1354 = vpop.f32.mrb[0].mxu0
      %v1355 = vadd.f32 0.0, %v1354
      %v1356 = vpop.f32.mrb[0].mxu0
      %v1357 = vpop.f32.mrb[0].mxu0
      %v1358 = vadd.f32 0.0, %v1357
      %v1359 = vpop.f32.mrb[0].mxu0
      %1360 = vmatprep.mubr.bf16.mxu0 0
      %1361 = vmatmul.mubr.bf16.gmra.mrb[0].mxu0 %v1221
      %v1362 = vpop.f32.mrb[0].mxu0
      %v1363 = vadd.f32 0.0, %v1362
      %v1364 = vpop.f32.mrb[0].mxu0
      %v1365 = vpop.f32.mrb[0].mxu0
      %v1366 = vadd.f32 0.0, %v1365
      %v1367 = vpop.f32.mrb[0].mxu0
      %1368 = vmatprep.mubr.bf16.mxu0 0
      %1369 = vmatmul.mubr.bf16.gmra.mrb[0].mxu0 %v1224
      %v1370 = vpop.f32.mrb[0].mxu0
      %v1371 = vadd.f32 0.0, %v1370
      %v1372 = vpop.f32.mrb[0].mxu0
      %v1373 = vpop.f32.mrb[0].mxu0
      %v1374 = vadd.f32 0.0, %v1373
      %v1375 = vpop.f32.mrb[0].mxu0
      %1376 = vmatprep.mubr.bf16.mxu0 0
      %1377 = vmatmul.mubr.bf16.gmra.mrb[0].mxu0 %v1227
      %v1378 = vpop.f32.mrb[0].mxu0
      %v1379 = vadd.f32 0.0, %v1378
      %v1380 = vpop.f32.mrb[0].mxu0
      %v1381 = vpop.f32.mrb[0].mxu0
      %v1382 = vadd.f32 0.0, %v1381
      %v1383 = vpop.f32.mrb[0].mxu0
      %1384 = vmatprep.mubr.bf16.mxu0 0
      %1385 = vmatmul.mubr.bf16.gmra.mrb[0].mxu0 %v1230
      %v1386 = vpop.f32.mrb[0].mxu0
      %v1387 = vadd.f32 0.0, %v1386
      %v1388 = vpop.f32.mrb[0].mxu0
      %v1389 = vpop.f32.mrb[0].mxu0
      %v1390 = vadd.f32 0.0, %v1389
      %v1391 = vpop.f32.mrb[0].mxu0
      %1392 = vmatprep.mubr.bf16.mxu0 0
      %1393 = vmatmul.mubr.bf16.gmra.mrb[0].mxu0 %v1233
      %v1394 = vpop.f32.mrb[0].mxu0
      %v1395 = vadd.f32 0.0, %v1394
      %v1396 = vpop.f32.mrb[0].mxu0
      %v1397 = vpop.f32.mrb[0].mxu0
      %v1398 = vadd.f32 0.0, %v1397
      %v1399 = vpop.f32.mrb[0].mxu0
      %1400 = vmatprep.mubr.bf16.mxu0 0
      %1401 = vmatmul.mubr.bf16.gmra.mrb[0].mxu0 %v1236
      %v1402 = vpop.f32.mrb[0].mxu0
      %v1403 = vadd.f32 0.0, %v1402
      %v1404 = vpop.f32.mrb[0].mxu0
      %v1405 = vpop.f32.mrb[0].mxu0
      %v1406 = vadd.f32 0.0, %v1405
      %v1407 = vpop.f32.mrb[0].mxu0
      %1408 = vmatprep.mubr.bf16.mxu0 0
      %1409 = vmatmul.mubr.bf16.gmra.mrb[0].mxu0 %v1239
      %v1410 = vpop.f32.mrb[0].mxu0
      %v1411 = vadd.f32 0.0, %v1410
      %v1412 = vpop.f32.mrb[0].mxu0
      %v1413 = vpop.f32.mrb[0].mxu0
      %v1414 = vadd.f32 0.0, %v1413
      %v1415 = vpop.f32.mrb[0].mxu0
      %1416 = vmatprep.mubr.bf16.mxu0 0
      %1417 = vmatmul.mubr.bf16.gmra.mrb[0].mxu0 %v1242
      %v1418 = vpop.f32.mrb[0].mxu0
      %v1419 = vadd.f32 0.0, %v1418
      %v1420 = vpop.f32.mrb[0].mxu0
      %v1421 = vpop.f32.mrb[0].mxu0
      %v1422 = vadd.f32 0.0, %v1421
      %v1423 = vpop.f32.mrb[0].mxu0
      %1424 = vmatprep.mubr.bf16.mxu0 0
      %1425 = vmatmul.mubr.bf16.gmra.mrb[0].mxu0 %v1245
      %v1426 = vpop.f32.mrb[0].mxu0
      %v1427 = vadd.f32 0.0, %v1426
      %v1428 = vpop.f32.mrb[0].mxu0
      %v1429 = vpop.f32.mrb[0].mxu0
      %v1430 = vadd.f32 0.0, %v1429
      %v1431 = vpop.f32.mrb[0].mxu0
      %1432 = vmatprep.mubr.bf16.mxu0 0
      %1433 = vmatmul.mubr.bf16.gmra.mrb[0].mxu0 %v1248
      %v1434 = vpop.f32.mrb[0].mxu0
      %v1435 = vadd.f32 0.0, %v1434
      %v1436 = vpop.f32.mrb[0].mxu0
      %v1437 = vpop.f32.mrb[0].mxu0
      %v1438 = vadd.f32 0.0, %v1437
      %v1439 = vpop.f32.mrb[0].mxu0
      %1440 = vmatprep.mubr.bf16.mxu0 0
      %1441 = vmatmul.mubr.bf16.gmra.mrb[0].mxu0 %v1251
      %v1442 = vpop.f32.mrb[0].mxu0
      %v1443 = vadd.f32 0.0, %v1442
      %v1444 = vpop.f32.mrb[0].mxu0
      %v1445 = vpop.f32.mrb[0].mxu0
      %v1446 = vadd.f32 0.0, %v1445
      %v1447 = vpop.f32.mrb[0].mxu0
      %1448 = vdwg.mxu0
      %v1449 = vadd.f32 %v973, %v1291
      %v1450 = vadd.f32 %v976, %v1294
      %v1451 = vadd.f32 %v981, %v1299
      %v1452 = vadd.f32 %v984, %v1302
      %v1453 = vadd.f32 %v989, %v1307
      %v1454 = vadd.f32 %v992, %v1310
      %v1455 = vadd.f32 %v997, %v1315
      %v1456 = vadd.f32 %v1000, %v1318
      %v1457 = vadd.f32 %v1005, %v1323
      %v1458 = vadd.f32 %v1008, %v1326
      %v1459 = vadd.f32 %v1013, %v1331
      %v1460 = vadd.f32 %v1016, %v1334
      %v1461 = vadd.f32 %v1021, %v1339
      %v1462 = vadd.f32 %v1024, %v1342
      %v1463 = vadd.f32 %v1029, %v1347
      %v1464 = vadd.f32 %v1032, %v1350
      %v1465 = vadd.f32 %v1037, %v1355
      %v1466 = vadd.f32 %v1040, %v1358
      %v1467 = vadd.f32 %v1045, %v1363
      %v1468 = vadd.f32 %v1048, %v1366
      %v1469 = vadd.f32 %v1053, %v1371
      %v1470 = vadd.f32 %v1056, %v1374
      %v1471 = vadd.f32 %v1061, %v1379
      %v1472 = vadd.f32 %v1064, %v1382
      %v1473 = vadd.f32 %v1069, %v1387
      %v1474 = vadd.f32 %v1072, %v1390
      %v1475 = vadd.f32 %v1077, %v1395
      %v1476 = vadd.f32 %v1080, %v1398
      %v1477 = vadd.f32 %v1085, %v1403
      %v1478 = vadd.f32 %v1088, %v1406
      %v1479 = vadd.f32 %v1093, %v1411
      %v1480 = vadd.f32 %v1096, %v1414
      %v1481 = vadd.f32 %v1101, %v1419
      %v1482 = vadd.f32 %v1104, %v1422
      %v1483 = vadd.f32 %v1109, %v1427
      %v1484 = vadd.f32 %v1112, %v1430
      %v1485 = vadd.f32 %v1117, %v1435
      %v1486 = vadd.f32 %v1120, %v1438
      %v1487 = vadd.f32 %v1125, %v1443
      %v1488 = vadd.f32 %v1128, %v1446
      %v1489 = vld [vmem:[#allocation2 + $0x12] sm:$0xff]
      %v1490 = vld [vmem:[#allocation2 + $0x1a] sm:$0xff]
      %v1491 = vld [vmem:[#allocation2 + $0x22] sm:$0xff]
      %v1492 = vld [vmem:[#allocation2 + $0x2a] sm:$0xff]
      %v1493 = vld [vmem:[#allocation2 + $0x32] sm:$0xff]
      %v1494 = vld [vmem:[#allocation2 + $0x3a] sm:$0xff]
      %v1495 = vld [vmem:[#allocation2 + $0x42] sm:$0xff]
      %v1496 = vld [vmem:[#allocation2 + $0x4a] sm:$0xff]
      %v1497 = vld [vmem:[#allocation2 + $0x52] sm:$0xff]
      %v1498 = vld [vmem:[#allocation2 + $0x5a] sm:$0xff]
      %v1499 = vld [vmem:[#allocation2 + $0x62] sm:$0xff]
      %v1500 = vld [vmem:[#allocation2 + $0x6a] sm:$0xff]
      %v1501 = vld [vmem:[#allocation2 + $0x72] sm:$0xff]
      %v1502 = vld [vmem:[#allocation2 + $0x7a] sm:$0xff]
      %v1503 = vld [vmem:[#allocation2 + $0x82] sm:$0xff]
      %v1504 = vld [vmem:[#allocation2 + $0x8a] sm:$0xff]
      %v1505 = vld [vmem:[#allocation2 + $0x92] sm:$0xff]
      %v1506 = vld [vmem:[#allocation2 + $0x9a] sm:$0xff]
      %v1507 = vld [vmem:[#allocation2 + $0xa2] sm:$0xff]
      %v1508 = vld [vmem:[#allocation2 + $0xaa] sm:$0xff]
      %v1509 = vld [vmem:[#allocation2 + $0xb2] sm:$0xff]
      %v1510 = vld [vmem:[#allocation2 + $0xba] sm:$0xff]
      %v1511 = vld [vmem:[#allocation2 + $0xc2] sm:$0xff]
      %v1512 = vld [vmem:[#allocation2 + $0xca] sm:$0xff]
      %v1513 = vld [vmem:[#allocation2 + $0xd2] sm:$0xff]
      %v1514 = vld [vmem:[#allocation2 + $0xda] sm:$0xff]
      %v1515 = vld [vmem:[#allocation2 + $0xe2] sm:$0xff]
      %v1516 = vld [vmem:[#allocation2 + $0xea] sm:$0xff]
      %v1517 = vld [vmem:[#allocation2 + $0xf2] sm:$0xff]
      %v1518 = vld [vmem:[#allocation2 + $0xfa] sm:$0xff]
      %v1519 = vld [vmem:[#allocation2 + $0x102] sm:$0xff]
      %v1520 = vld [vmem:[#allocation2 + $0x10a] sm:$0xff]
      %v1521 = vld [vmem:[#allocation2 + $0x112] sm:$0xff]
      %v1522 = vld [vmem:[#allocation2 + $0x11a] sm:$0xff]
      %v1523 = vld [vmem:[#allocation2 + $0x122] sm:$0xff]
      %v1524 = vld [vmem:[#allocation2 + $0x12a] sm:$0xff]
      %v1525 = vld [vmem:[#allocation2 + $0x132] sm:$0xff]
      %v1526 = vld [vmem:[#allocation2 + $0x13a] sm:$0xff]
      %v1527 = vld [vmem:[#allocation2 + $0x142] sm:$0xff]
      %v1528 = vld [vmem:[#allocation2 + $0x14a] sm:$0xff]
      %v1529 = vpack.c.bf16 %v1490, %v1489
      %v1530 = vpack.c.bf16 %v1492, %v1491
      %v1531 = vpack.c.bf16 %v1494, %v1493
      %v1532 = vpack.c.bf16 %v1496, %v1495
      %v1533 = vpack.c.bf16 %v1498, %v1497
      %v1534 = vpack.c.bf16 %v1500, %v1499
      %v1535 = vpack.c.bf16 %v1502, %v1501
      %v1536 = vpack.c.bf16 %v1504, %v1503
      %v1537 = vpack.c.bf16 %v1506, %v1505
      %v1538 = vpack.c.bf16 %v1508, %v1507
      %v1539 = vpack.c.bf16 %v1510, %v1509
      %v1540 = vpack.c.bf16 %v1512, %v1511
      %v1541 = vpack.c.bf16 %v1514, %v1513
      %v1542 = vpack.c.bf16 %v1516, %v1515
      %v1543 = vpack.c.bf16 %v1518, %v1517
      %v1544 = vpack.c.bf16 %v1520, %v1519
      %v1545 = vpack.c.bf16 %v1522, %v1521
      %v1546 = vpack.c.bf16 %v1524, %v1523
      %v1547 = vpack.c.bf16 %v1526, %v1525
      %v1548 = vpack.c.bf16 %v1528, %v1527
      %s1549 = scalar_lea.vmem %s336, 6
      %v1550 = vld [vmem:[%s1549] sm:$0x3]
      %v1552 = vsel %vm617, %v1529, 0
      %v1555 = vsel %vm617, %v1530, 0
      %v1558 = vsel %vm617, %v1531, 0
      %v1561 = vsel %vm617, %v1532, 0
      %v1564 = vsel %vm617, %v1533, 0
      %v1567 = vsel %vm617, %v1534, 0
      %v1570 = vsel %vm617, %v1535, 0
      %v1573 = vsel %vm617, %v1536, 0
      %v1576 = vsel %vm617, %v1537, 0
      %v1579 = vsel %vm617, %v1538, 0
      %v1582 = vsel %vm617, %v1539, 0
      %v1585 = vsel %vm617, %v1540, 0
      %v1588 = vsel %vm617, %v1541, 0
      %v1591 = vsel %vm617, %v1542, 0
      %v1594 = vsel %vm617, %v1543, 0
      %v1597 = vsel %vm617, %v1544, 0
      %v1600 = vsel %vm617, %v1545, 0
      %v1603 = vsel %vm617, %v1546, 0
      %v1606 = vsel %vm617, %v1547, 0
      %v1609 = vsel %vm617, %v1548, 0
      %v1612 = vsel %vm678, %v1550, 0
      %1614 = vmatprep.subr.bf16.mxu0 0
      %1615 = vmatpush1.bf16.msra.mxu0 %v1612
      %1616 = vmatprep.subr.bf16.mxu0 0
      %1617 = vmatpush1.bf16.msra.mxu0 0
      %1618 = vmatprep.subr.bf16.mxu0 0
      %1619 = vmatpush1.bf16.msra.mxu0 0
      %1620 = vmatprep.subr.bf16.mxu0 0
      %1621 = vmatpush1.bf16.msra.mxu0 0
      %1622 = vmatprep.subr.bf16.mxu0 0
      %1623 = vmatpush1.bf16.msra.mxu0 0
      %1624 = vmatprep.subr.bf16.mxu0 0
      %1625 = vmatpush1.bf16.msra.mxu0 0
      %1626 = vmatprep.subr.bf16.mxu0 0
      %1627 = vmatpush1.bf16.msra.mxu0 0
      %1628 = vmatprep.subr.bf16.mxu0 0
      %1629 = vmatpush1.bf16.msra.mxu0 0
      %1630 = vmatprep.subr.bf16.mxu0 0
      %1631 = vmatpush1.bf16.msra.mxu0 0
      %1632 = vmatprep.subr.bf16.mxu0 0
      %1633 = vmatpush1.bf16.msra.mxu0 0
      %1634 = vmatprep.subr.bf16.mxu0 0
      %1635 = vmatpush1.bf16.msra.mxu0 0
      %1636 = vmatprep.subr.bf16.mxu0 0
      %1637 = vmatpush1.bf16.msra.mxu0 0
      %1638 = vmatprep.subr.bf16.mxu0 0
      %1639 = vmatpush1.bf16.msra.mxu0 0
      %1640 = vmatprep.subr.bf16.mxu0 0
      %1641 = vmatpush1.bf16.msra.mxu0 0
      %1642 = vmatprep.subr.bf16.mxu0 0
      %1643 = vmatpush1.bf16.msra.mxu0 0
      %1644 = vmatprep.subr.bf16.mxu0 0
      %1645 = vmatpush1.bf16.msra.mxu0 0
      %1646 = vmatprep.mubr.bf16.mxu0 0
      %1647 = vmatmul.mubr.bf16.gmra.mrb[0].mxu0 %v1552
      %v1648 = vpop.f32.mrb[0].mxu0
      %v1649 = vadd.f32 0.0, %v1648
      %v1650 = vpop.f32.mrb[0].mxu0
      %v1651 = vpop.f32.mrb[0].mxu0
      %v1652 = vadd.f32 0.0, %v1651
      %v1653 = vpop.f32.mrb[0].mxu0
      %1654 = vmatprep.mubr.bf16.mxu0 0
      %1655 = vmatmul.mubr.bf16.gmra.mrb[0].mxu0 %v1555
      %v1656 = vpop.f32.mrb[0].mxu0
      %v1657 = vadd.f32 0.0, %v1656
      %v1658 = vpop.f32.mrb[0].mxu0
      %v1659 = vpop.f32.mrb[0].mxu0
      %v1660 = vadd.f32 0.0, %v1659
      %v1661 = vpop.f32.mrb[0].mxu0
      %1662 = vmatprep.mubr.bf16.mxu0 0
      %1663 = vmatmul.mubr.bf16.gmra.mrb[0].mxu0 %v1558
      %v1664 = vpop.f32.mrb[0].mxu0
      %v1665 = vadd.f32 0.0, %v1664
      %v1666 = vpop.f32.mrb[0].mxu0
      %v1667 = vpop.f32.mrb[0].mxu0
      %v1668 = vadd.f32 0.0, %v1667
      %v1669 = vpop.f32.mrb[0].mxu0
      %1670 = vmatprep.mubr.bf16.mxu0 0
      %1671 = vmatmul.mubr.bf16.gmra.mrb[0].mxu0 %v1561
      %v1672 = vpop.f32.mrb[0].mxu0
      %v1673 = vadd.f32 0.0, %v1672
      %v1674 = vpop.f32.mrb[0].mxu0
      %v1675 = vpop.f32.mrb[0].mxu0
      %v1676 = vadd.f32 0.0, %v1675
      %v1677 = vpop.f32.mrb[0].mxu0
      %1678 = vmatprep.mubr.bf16.mxu0 0
      %1679 = vmatmul.mubr.bf16.gmra.mrb[0].mxu0 %v1564
      %v1680 = vpop.f32.mrb[0].mxu0
      %v1681 = vadd.f32 0.0, %v1680
      %v1682 = vpop.f32.mrb[0].mxu0
      %v1683 = vpop.f32.mrb[0].mxu0
      %v1684 = vadd.f32 0.0, %v1683
      %v1685 = vpop.f32.mrb[0].mxu0
      %1686 = vmatprep.mubr.bf16.mxu0 0
      %1687 = vmatmul.mubr.bf16.gmra.mrb[0].mxu0 %v1567
      %v1688 = vpop.f32.mrb[0].mxu0
      %v1689 = vadd.f32 0.0, %v1688
      %v1690 = vpop.f32.mrb[0].mxu0
      %v1691 = vpop.f32.mrb[0].mxu0
      %v1692 = vadd.f32 0.0, %v1691
      %v1693 = vpop.f32.mrb[0].mxu0
      %1694 = vmatprep.mubr.bf16.mxu0 0
      %1695 = vmatmul.mubr.bf16.gmra.mrb[0].mxu0 %v1570
      %v1696 = vpop.f32.mrb[0].mxu0
      %v1697 = vadd.f32 0.0, %v1696
      %v1698 = vpop.f32.mrb[0].mxu0
      %v1699 = vpop.f32.mrb[0].mxu0
      %v1700 = vadd.f32 0.0, %v1699
      %v1701 = vpop.f32.mrb[0].mxu0
      %1702 = vmatprep.mubr.bf16.mxu0 0
      %1703 = vmatmul.mubr.bf16.gmra.mrb[0].mxu0 %v1573
      %v1704 = vpop.f32.mrb[0].mxu0
      %v1705 = vadd.f32 0.0, %v1704
      %v1706 = vpop.f32.mrb[0].mxu0
      %v1707 = vpop.f32.mrb[0].mxu0
      %v1708 = vadd.f32 0.0, %v1707
      %v1709 = vpop.f32.mrb[0].mxu0
      %1710 = vmatprep.mubr.bf16.mxu0 0
      %1711 = vmatmul.mubr.bf16.gmra.mrb[0].mxu0 %v1576
      %v1712 = vpop.f32.mrb[0].mxu0
      %v1713 = vadd.f32 0.0, %v1712
      %v1714 = vpop.f32.mrb[0].mxu0
      %v1715 = vpop.f32.mrb[0].mxu0
      %v1716 = vadd.f32 0.0, %v1715
      %v1717 = vpop.f32.mrb[0].mxu0
      %1718 = vmatprep.mubr.bf16.mxu0 0
      %1719 = vmatmul.mubr.bf16.gmra.mrb[0].mxu0 %v1579
      %v1720 = vpop.f32.mrb[0].mxu0
      %v1721 = vadd.f32 0.0, %v1720
      %v1722 = vpop.f32.mrb[0].mxu0
      %v1723 = vpop.f32.mrb[0].mxu0
      %v1724 = vadd.f32 0.0, %v1723
      %v1725 = vpop.f32.mrb[0].mxu0
      %1726 = vmatprep.mubr.bf16.mxu0 0
      %1727 = vmatmul.mubr.bf16.gmra.mrb[0].mxu0 %v1582
      %v1728 = vpop.f32.mrb[0].mxu0
      %v1729 = vadd.f32 0.0, %v1728
      %v1730 = vpop.f32.mrb[0].mxu0
      %v1731 = vpop.f32.mrb[0].mxu0
      %v1732 = vadd.f32 0.0, %v1731
      %v1733 = vpop.f32.mrb[0].mxu0
      %1734 = vmatprep.mubr.bf16.mxu0 0
      %1735 = vmatmul.mubr.bf16.gmra.mrb[0].mxu0 %v1585
      %v1736 = vpop.f32.mrb[0].mxu0
      %v1737 = vadd.f32 0.0, %v1736
      %v1738 = vpop.f32.mrb[0].mxu0
      %v1739 = vpop.f32.mrb[0].mxu0
      %v1740 = vadd.f32 0.0, %v1739
      %v1741 = vpop.f32.mrb[0].mxu0
      %1742 = vmatprep.mubr.bf16.mxu0 0
      %1743 = vmatmul.mubr.bf16.gmra.mrb[0].mxu0 %v1588
      %v1744 = vpop.f32.mrb[0].mxu0
      %v1745 = vadd.f32 0.0, %v1744
      %v1746 = vpop.f32.mrb[0].mxu0
      %v1747 = vpop.f32.mrb[0].mxu0
      %v1748 = vadd.f32 0.0, %v1747
      %v1749 = vpop.f32.mrb[0].mxu0
      %1750 = vmatprep.mubr.bf16.mxu0 0
      %1751 = vmatmul.mubr.bf16.gmra.mrb[0].mxu0 %v1591
      %v1752 = vpop.f32.mrb[0].mxu0
      %v1753 = vadd.f32 0.0, %v1752
      %v1754 = vpop.f32.mrb[0].mxu0
      %v1755 = vpop.f32.mrb[0].mxu0
      %v1756 = vadd.f32 0.0, %v1755
      %v1757 = vpop.f32.mrb[0].mxu0
      %1758 = vmatprep.mubr.bf16.mxu0 0
      %1759 = vmatmul.mubr.bf16.gmra.mrb[0].mxu0 %v1594
      %v1760 = vpop.f32.mrb[0].mxu0
      %v1761 = vadd.f32 0.0, %v1760
      %v1762 = vpop.f32.mrb[0].mxu0
      %v1763 = vpop.f32.mrb[0].mxu0
      %v1764 = vadd.f32 0.0, %v1763
      %v1765 = vpop.f32.mrb[0].mxu0
      %1766 = vmatprep.mubr.bf16.mxu0 0
      %1767 = vmatmul.mubr.bf16.gmra.mrb[0].mxu0 %v1597
      %v1768 = vpop.f32.mrb[0].mxu0
      %v1769 = vadd.f32 0.0, %v1768
      %v1770 = vpop.f32.mrb[0].mxu0
      %v1771 = vpop.f32.mrb[0].mxu0
      %v1772 = vadd.f32 0.0, %v1771
      %v1773 = vpop.f32.mrb[0].mxu0
      %1774 = vmatprep.mubr.bf16.mxu0 0
      %1775 = vmatmul.mubr.bf16.gmra.mrb[0].mxu0 %v1600
      %v1776 = vpop.f32.mrb[0].mxu0
      %v1777 = vadd.f32 0.0, %v1776
      %v1778 = vpop.f32.mrb[0].mxu0
      %v1779 = vpop.f32.mrb[0].mxu0
      %v1780 = vadd.f32 0.0, %v1779
      %v1781 = vpop.f32.mrb[0].mxu0
      %1782 = vmatprep.mubr.bf16.mxu0 0
      %1783 = vmatmul.mubr.bf16.gmra.mrb[0].mxu0 %v1603
      %v1784 = vpop.f32.mrb[0].mxu0
      %v1785 = vadd.f32 0.0, %v1784
      %v1786 = vpop.f32.mrb[0].mxu0
      %v1787 = vpop.f32.mrb[0].mxu0
      %v1788 = vadd.f32 0.0, %v1787
      %v1789 = vpop.f32.mrb[0].mxu0
      %1790 = vmatprep.mubr.bf16.mxu0 0
      %1791 = vmatmul.mubr.bf16.gmra.mrb[0].mxu0 %v1606
      %v1792 = vpop.f32.mrb[0].mxu0
      %v1793 = vadd.f32 0.0, %v1792
      %v1794 = vpop.f32.mrb[0].mxu0
      %v1795 = vpop.f32.mrb[0].mxu0
      %v1796 = vadd.f32 0.0, %v1795
      %v1797 = vpop.f32.mrb[0].mxu0
      %1798 = vmatprep.mubr.bf16.mxu0 0
      %1799 = vmatmul.mubr.bf16.gmra.mrb[0].mxu0 %v1609
      %v1800 = vpop.f32.mrb[0].mxu0
      %v1801 = vadd.f32 0.0, %v1800
      %v1802 = vpop.f32.mrb[0].mxu0
      %v1803 = vpop.f32.mrb[0].mxu0
      %v1804 = vadd.f32 0.0, %v1803
      %v1805 = vpop.f32.mrb[0].mxu0
      %1806 = vdwg.mxu0
      %v1807 = vadd.f32 %v1449, %v1649
      %v1808 = vadd.f32 %v1450, %v1652
      %v1809 = vadd.f32 %v1451, %v1657
      %v1810 = vadd.f32 %v1452, %v1660
      %v1811 = vadd.f32 %v1453, %v1665
      %v1812 = vadd.f32 %v1454, %v1668
      %v1813 = vadd.f32 %v1455, %v1673
      %v1814 = vadd.f32 %v1456, %v1676
      %v1815 = vadd.f32 %v1457, %v1681
      %v1816 = vadd.f32 %v1458, %v1684
      %v1817 = vadd.f32 %v1459, %v1689
      %v1818 = vadd.f32 %v1460, %v1692
      %v1819 = vadd.f32 %v1461, %v1697
      %v1820 = vadd.f32 %v1462, %v1700
      %v1821 = vadd.f32 %v1463, %v1705
      %v1822 = vadd.f32 %v1464, %v1708
      %v1823 = vadd.f32 %v1465, %v1713
      %v1824 = vadd.f32 %v1466, %v1716
      %v1825 = vadd.f32 %v1467, %v1721
      %v1826 = vadd.f32 %v1468, %v1724
      %v1827 = vadd.f32 %v1469, %v1729
      %v1828 = vadd.f32 %v1470, %v1732
      %v1829 = vadd.f32 %v1471, %v1737
      %v1830 = vadd.f32 %v1472, %v1740
      %v1831 = vadd.f32 %v1473, %v1745
      %v1832 = vadd.f32 %v1474, %v1748
      %v1833 = vadd.f32 %v1475, %v1753
      %v1834 = vadd.f32 %v1476, %v1756
      %v1835 = vadd.f32 %v1477, %v1761
      %v1836 = vadd.f32 %v1478, %v1764
      %v1837 = vadd.f32 %v1479, %v1769
      %v1838 = vadd.f32 %v1480, %v1772
      %v1839 = vadd.f32 %v1481, %v1777
      %v1840 = vadd.f32 %v1482, %v1780
      %v1841 = vadd.f32 %v1483, %v1785
      %v1842 = vadd.f32 %v1484, %v1788
      %v1843 = vadd.f32 %v1485, %v1793
      %v1844 = vadd.f32 %v1486, %v1796
      %v1845 = vadd.f32 %v1487, %v1801
      %v1846 = vadd.f32 %v1488, %v1804
      %v1847 = vld [vmem:[#allocation2 + $0x13] sm:$0xff]
      %v1848 = vld [vmem:[#allocation2 + $0x1b] sm:$0xff]
      %v1849 = vld [vmem:[#allocation2 + $0x23] sm:$0xff]
      %v1850 = vld [vmem:[#allocation2 + $0x2b] sm:$0xff]
      %v1851 = vld [vmem:[#allocation2 + $0x33] sm:$0xff]
      %v1852 = vld [vmem:[#allocation2 + $0x3b] sm:$0xff]
      %v1853 = vld [vmem:[#allocation2 + $0x43] sm:$0xff]
      %v1854 = vld [vmem:[#allocation2 + $0x4b] sm:$0xff]
      %v1855 = vld [vmem:[#allocation2 + $0x53] sm:$0xff]
      %v1856 = vld [vmem:[#allocation2 + $0x5b] sm:$0xff]
      %v1857 = vld [vmem:[#allocation2 + $0x63] sm:$0xff]
      %v1858 = vld [vmem:[#allocation2 + $0x6b] sm:$0xff]
      %v1859 = vld [vmem:[#allocation2 + $0x73] sm:$0xff]
      %v1860 = vld [vmem:[#allocation2 + $0x7b] sm:$0xff]
      %v1861 = vld [vmem:[#allocation2 + $0x83] sm:$0xff]
      %v1862 = vld [vmem:[#allocation2 + $0x8b] sm:$0xff]
      %v1863 = vld [vmem:[#allocation2 + $0x93] sm:$0xff]
      %v1864 = vld [vmem:[#allocation2 + $0x9b] sm:$0xff]
      %v1865 = vld [vmem:[#allocation2 + $0xa3] sm:$0xff]
      %v1866 = vld [vmem:[#allocation2 + $0xab] sm:$0xff]
      %v1867 = vld [vmem:[#allocation2 + $0xb3] sm:$0xff]
      %v1868 = vld [vmem:[#allocation2 + $0xbb] sm:$0xff]
      %v1869 = vld [vmem:[#allocation2 + $0xc3] sm:$0xff]
      %v1870 = vld [vmem:[#allocation2 + $0xcb] sm:$0xff]
      %v1871 = vld [vmem:[#allocation2 + $0xd3] sm:$0xff]
      %v1872 = vld [vmem:[#allocation2 + $0xdb] sm:$0xff]
      %v1873 = vld [vmem:[#allocation2 + $0xe3] sm:$0xff]
      %v1874 = vld [vmem:[#allocation2 + $0xeb] sm:$0xff]
      %v1875 = vld [vmem:[#allocation2 + $0xf3] sm:$0xff]
      %v1876 = vld [vmem:[#allocation2 + $0xfb] sm:$0xff]
      %v1877 = vld [vmem:[#allocation2 + $0x103] sm:$0xff]
      %v1878 = vld [vmem:[#allocation2 + $0x10b] sm:$0xff]
      %v1879 = vld [vmem:[#allocation2 + $0x113] sm:$0xff]
      %v1880 = vld [vmem:[#allocation2 + $0x11b] sm:$0xff]
      %v1881 = vld [vmem:[#allocation2 + $0x123] sm:$0xff]
      %v1882 = vld [vmem:[#allocation2 + $0x12b] sm:$0xff]
      %v1883 = vld [vmem:[#allocation2 + $0x133] sm:$0xff]
      %v1884 = vld [vmem:[#allocation2 + $0x13b] sm:$0xff]
      %v1885 = vld [vmem:[#allocation2 + $0x143] sm:$0xff]
      %v1886 = vld [vmem:[#allocation2 + $0x14b] sm:$0xff]
      %v1887 = vpack.c.bf16 %v1848, %v1847
      %v1888 = vpack.c.bf16 %v1850, %v1849
      %v1889 = vpack.c.bf16 %v1852, %v1851
      %v1890 = vpack.c.bf16 %v1854, %v1853
      %v1891 = vpack.c.bf16 %v1856, %v1855
      %v1892 = vpack.c.bf16 %v1858, %v1857
      %v1893 = vpack.c.bf16 %v1860, %v1859
      %v1894 = vpack.c.bf16 %v1862, %v1861
      %v1895 = vpack.c.bf16 %v1864, %v1863
      %v1896 = vpack.c.bf16 %v1866, %v1865
      %v1897 = vpack.c.bf16 %v1868, %v1867
      %v1898 = vpack.c.bf16 %v1870, %v1869
      %v1899 = vpack.c.bf16 %v1872, %v1871
      %v1900 = vpack.c.bf16 %v1874, %v1873
      %v1901 = vpack.c.bf16 %v1876, %v1875
      %v1902 = vpack.c.bf16 %v1878, %v1877
      %v1903 = vpack.c.bf16 %v1880, %v1879
      %v1904 = vpack.c.bf16 %v1882, %v1881
      %v1905 = vpack.c.bf16 %v1884, %v1883
      %v1906 = vpack.c.bf16 %v1886, %v1885
      %s1907 = scalar_lea.vmem %s336, 8
      %v1908 = vld [vmem:[%s1907] sm:$0x3]
      %v1910 = vsel %vm617, %v1887, 0
      %v1913 = vsel %vm617, %v1888, 0
      %v1916 = vsel %vm617, %v1889, 0
      %v1919 = vsel %vm617, %v1890, 0
      %v1922 = vsel %vm617, %v1891, 0
      %v1925 = vsel %vm617, %v1892, 0
      %v1928 = vsel %vm617, %v1893, 0
      %v1931 = vsel %vm617, %v1894, 0
      %v1934 = vsel %vm617, %v1895, 0
      %v1937 = vsel %vm617, %v1896, 0
      %v1940 = vsel %vm617, %v1897, 0
      %v1943 = vsel %vm617, %v1898, 0
      %v1946 = vsel %vm617, %v1899, 0
      %v1949 = vsel %vm617, %v1900, 0
      %v1952 = vsel %vm617, %v1901, 0
      %v1955 = vsel %vm617, %v1902, 0
      %v1958 = vsel %vm617, %v1903, 0
      %v1961 = vsel %vm617, %v1904, 0
      %v1964 = vsel %vm617, %v1905, 0
      %v1967 = vsel %vm617, %v1906, 0
      %v1970 = vsel %vm678, %v1908, 0
      %1972 = vmatprep.subr.bf16.mxu0 0
      %1973 = vmatpush1.bf16.msra.mxu0 %v1970
      %1974 = vmatprep.subr.bf16.mxu0 0
      %1975 = vmatpush1.bf16.msra.mxu0 0
      %1976 = vmatprep.subr.bf16.mxu0 0
      %1977 = vmatpush1.bf16.msra.mxu0 0
      %1978 = vmatprep.subr.bf16.mxu0 0
      %1979 = vmatpush1.bf16.msra.mxu0 0
      %1980 = vmatprep.subr.bf16.mxu0 0
      %1981 = vmatpush1.bf16.msra.mxu0 0
      %1982 = vmatprep.subr.bf16.mxu0 0
      %1983 = vmatpush1.bf16.msra.mxu0 0
      %1984 = vmatprep.subr.bf16.mxu0 0
      %1985 = vmatpush1.bf16.msra.mxu0 0
      %1986 = vmatprep.subr.bf16.mxu0 0
      %1987 = vmatpush1.bf16.msra.mxu0 0
      %1988 = vmatprep.subr.bf16.mxu0 0
      %1989 = vmatpush1.bf16.msra.mxu0 0
      %1990 = vmatprep.subr.bf16.mxu0 0
      %1991 = vmatpush1.bf16.msra.mxu0 0
      %1992 = vmatprep.subr.bf16.mxu0 0
      %1993 = vmatpush1.bf16.msra.mxu0 0
      %1994 = vmatprep.subr.bf16.mxu0 0
      %1995 = vmatpush1.bf16.msra.mxu0 0
      %1996 = vmatprep.subr.bf16.mxu0 0
      %1997 = vmatpush1.bf16.msra.mxu0 0
      %1998 = vmatprep.subr.bf16.mxu0 0
      %1999 = vmatpush1.bf16.msra.mxu0 0
      %2000 = vmatprep.subr.bf16.mxu0 0
      %2001 = vmatpush1.bf16.msra.mxu0 0
      %2002 = vmatprep.subr.bf16.mxu0 0
      %2003 = vmatpush1.bf16.msra.mxu0 0
      %2004 = vmatprep.mubr.bf16.mxu0 0
      %2005 = vmatmul.mubr.bf16.gmra.mrb[0].mxu0 %v1910
      %v2006 = vpop.f32.mrb[0].mxu0
      %v2007 = vadd.f32 0.0, %v2006
      %v2008 = vpop.f32.mrb[0].mxu0
      %v2009 = vpop.f32.mrb[0].mxu0
      %v2010 = vadd.f32 0.0, %v2009
      %v2011 = vpop.f32.mrb[0].mxu0
      %2012 = vmatprep.mubr.bf16.mxu0 0
      %2013 = vmatmul.mubr.bf16.gmra.mrb[0].mxu0 %v1913
      %v2014 = vpop.f32.mrb[0].mxu0
      %v2015 = vadd.f32 0.0, %v2014
      %v2016 = vpop.f32.mrb[0].mxu0
      %v2017 = vpop.f32.mrb[0].mxu0
      %v2018 = vadd.f32 0.0, %v2017
      %v2019 = vpop.f32.mrb[0].mxu0
      %2020 = vmatprep.mubr.bf16.mxu0 0
      %2021 = vmatmul.mubr.bf16.gmra.mrb[0].mxu0 %v1916
      %v2022 = vpop.f32.mrb[0].mxu0
      %v2023 = vadd.f32 0.0, %v2022
      %v2024 = vpop.f32.mrb[0].mxu0
      %v2025 = vpop.f32.mrb[0].mxu0
      %v2026 = vadd.f32 0.0, %v2025
      %v2027 = vpop.f32.mrb[0].mxu0
      %2028 = vmatprep.mubr.bf16.mxu0 0
      %2029 = vmatmul.mubr.bf16.gmra.mrb[0].mxu0 %v1919
      %v2030 = vpop.f32.mrb[0].mxu0
      %v2031 = vadd.f32 0.0, %v2030
      %v2032 = vpop.f32.mrb[0].mxu0
      %v2033 = vpop.f32.mrb[0].mxu0
      %v2034 = vadd.f32 0.0, %v2033
      %v2035 = vpop.f32.mrb[0].mxu0
      %2036 = vmatprep.mubr.bf16.mxu0 0
      %2037 = vmatmul.mubr.bf16.gmra.mrb[0].mxu0 %v1922
      %v2038 = vpop.f32.mrb[0].mxu0
      %v2039 = vadd.f32 0.0, %v2038
      %v2040 = vpop.f32.mrb[0].mxu0
      %v2041 = vpop.f32.mrb[0].mxu0
      %v2042 = vadd.f32 0.0, %v2041
      %v2043 = vpop.f32.mrb[0].mxu0
      %2044 = vmatprep.mubr.bf16.mxu0 0
      %2045 = vmatmul.mubr.bf16.gmra.mrb[0].mxu0 %v1925
      %v2046 = vpop.f32.mrb[0].mxu0
      %v2047 = vadd.f32 0.0, %v2046
      %v2048 = vpop.f32.mrb[0].mxu0
      %v2049 = vpop.f32.mrb[0].mxu0
      %v2050 = vadd.f32 0.0, %v2049
      %v2051 = vpop.f32.mrb[0].mxu0
      %2052 = vmatprep.mubr.bf16.mxu0 0
      %2053 = vmatmul.mubr.bf16.gmra.mrb[0].mxu0 %v1928
      %v2054 = vpop.f32.mrb[0].mxu0
      %v2055 = vadd.f32 0.0, %v2054
      %v2056 = vpop.f32.mrb[0].mxu0
      %v2057 = vpop.f32.mrb[0].mxu0
      %v2058 = vadd.f32 0.0, %v2057
      %v2059 = vpop.f32.mrb[0].mxu0
      %2060 = vmatprep.mubr.bf16.mxu0 0
      %2061 = vmatmul.mubr.bf16.gmra.mrb[0].mxu0 %v1931
      %v2062 = vpop.f32.mrb[0].mxu0
      %v2063 = vadd.f32 0.0, %v2062
      %v2064 = vpop.f32.mrb[0].mxu0
      %v2065 = vpop.f32.mrb[0].mxu0
      %v2066 = vadd.f32 0.0, %v2065
      %v2067 = vpop.f32.mrb[0].mxu0
      %2068 = vmatprep.mubr.bf16.mxu0 0
      %2069 = vmatmul.mubr.bf16.gmra.mrb[0].mxu0 %v1934
      %v2070 = vpop.f32.mrb[0].mxu0
      %v2071 = vadd.f32 0.0, %v2070
      %v2072 = vpop.f32.mrb[0].mxu0
      %v2073 = vpop.f32.mrb[0].mxu0
      %v2074 = vadd.f32 0.0, %v2073
      %v2075 = vpop.f32.mrb[0].mxu0
      %2076 = vmatprep.mubr.bf16.mxu0 0
      %2077 = vmatmul.mubr.bf16.gmra.mrb[0].mxu0 %v1937
      %v2078 = vpop.f32.mrb[0].mxu0
      %v2079 = vadd.f32 0.0, %v2078
      %v2080 = vpop.f32.mrb[0].mxu0
      %v2081 = vpop.f32.mrb[0].mxu0
      %v2082 = vadd.f32 0.0, %v2081
      %v2083 = vpop.f32.mrb[0].mxu0
      %2084 = vmatprep.mubr.bf16.mxu0 0
      %2085 = vmatmul.mubr.bf16.gmra.mrb[0].mxu0 %v1940
      %v2086 = vpop.f32.mrb[0].mxu0
      %v2087 = vadd.f32 0.0, %v2086
      %v2088 = vpop.f32.mrb[0].mxu0
      %v2089 = vpop.f32.mrb[0].mxu0
      %v2090 = vadd.f32 0.0, %v2089
      %v2091 = vpop.f32.mrb[0].mxu0
      %2092 = vmatprep.mubr.bf16.mxu0 0
      %2093 = vmatmul.mubr.bf16.gmra.mrb[0].mxu0 %v1943
      %v2094 = vpop.f32.mrb[0].mxu0
      %v2095 = vadd.f32 0.0, %v2094
      %v2096 = vpop.f32.mrb[0].mxu0
      %v2097 = vpop.f32.mrb[0].mxu0
      %v2098 = vadd.f32 0.0, %v2097
      %v2099 = vpop.f32.mrb[0].mxu0
      %2100 = vmatprep.mubr.bf16.mxu0 0
      %2101 = vmatmul.mubr.bf16.gmra.mrb[0].mxu0 %v1946
      %v2102 = vpop.f32.mrb[0].mxu0
      %v2103 = vadd.f32 0.0, %v2102
      %v2104 = vpop.f32.mrb[0].mxu0
      %v2105 = vpop.f32.mrb[0].mxu0
      %v2106 = vadd.f32 0.0, %v2105
      %v2107 = vpop.f32.mrb[0].mxu0
      %2108 = vmatprep.mubr.bf16.mxu0 0
      %2109 = vmatmul.mubr.bf16.gmra.mrb[0].mxu0 %v1949
      %v2110 = vpop.f32.mrb[0].mxu0
      %v2111 = vadd.f32 0.0, %v2110
      %v2112 = vpop.f32.mrb[0].mxu0
      %v2113 = vpop.f32.mrb[0].mxu0
      %v2114 = vadd.f32 0.0, %v2113
      %v2115 = vpop.f32.mrb[0].mxu0
      %2116 = vmatprep.mubr.bf16.mxu0 0
      %2117 = vmatmul.mubr.bf16.gmra.mrb[0].mxu0 %v1952
      %v2118 = vpop.f32.mrb[0].mxu0
      %v2119 = vadd.f32 0.0, %v2118
      %v2120 = vpop.f32.mrb[0].mxu0
      %v2121 = vpop.f32.mrb[0].mxu0
      %v2122 = vadd.f32 0.0, %v2121
      %v2123 = vpop.f32.mrb[0].mxu0
      %2124 = vmatprep.mubr.bf16.mxu0 0
      %2125 = vmatmul.mubr.bf16.gmra.mrb[0].mxu0 %v1955
      %v2126 = vpop.f32.mrb[0].mxu0
      %v2127 = vadd.f32 0.0, %v2126
      %v2128 = vpop.f32.mrb[0].mxu0
      %v2129 = vpop.f32.mrb[0].mxu0
      %v2130 = vadd.f32 0.0, %v2129
      %v2131 = vpop.f32.mrb[0].mxu0
      %2132 = vmatprep.mubr.bf16.mxu0 0
      %2133 = vmatmul.mubr.bf16.gmra.mrb[0].mxu0 %v1958
      %v2134 = vpop.f32.mrb[0].mxu0
      %v2135 = vadd.f32 0.0, %v2134
      %v2136 = vpop.f32.mrb[0].mxu0
      %v2137 = vpop.f32.mrb[0].mxu0
      %v2138 = vadd.f32 0.0, %v2137
      %v2139 = vpop.f32.mrb[0].mxu0
      %2140 = vmatprep.mubr.bf16.mxu0 0
      %2141 = vmatmul.mubr.bf16.gmra.mrb[0].mxu0 %v1961
      %v2142 = vpop.f32.mrb[0].mxu0
      %v2143 = vadd.f32 0.0, %v2142
      %v2144 = vpop.f32.mrb[0].mxu0
      %v2145 = vpop.f32.mrb[0].mxu0
      %v2146 = vadd.f32 0.0, %v2145
      %v2147 = vpop.f32.mrb[0].mxu0
      %2148 = vmatprep.mubr.bf16.mxu0 0
      %2149 = vmatmul.mubr.bf16.gmra.mrb[0].mxu0 %v1964
      %v2150 = vpop.f32.mrb[0].mxu0
      %v2151 = vadd.f32 0.0, %v2150
      %v2152 = vpop.f32.mrb[0].mxu0
      %v2153 = vpop.f32.mrb[0].mxu0
      %v2154 = vadd.f32 0.0, %v2153
      %v2155 = vpop.f32.mrb[0].mxu0
      %2156 = vmatprep.mubr.bf16.mxu0 0
      %2157 = vmatmul.mubr.bf16.gmra.mrb[0].mxu0 %v1967
      %v2158 = vpop.f32.mrb[0].mxu0
      %v2159 = vadd.f32 0.0, %v2158
      %v2160 = vpop.f32.mrb[0].mxu0
      %v2161 = vpop.f32.mrb[0].mxu0
      %v2162 = vadd.f32 0.0, %v2161
      %v2163 = vpop.f32.mrb[0].mxu0
      %2164 = vdwg.mxu0
      %v2165 = vadd.f32 %v1807, %v2007
      %v2166 = vadd.f32 %v1808, %v2010
      %v2167 = vadd.f32 %v1809, %v2015
      %v2168 = vadd.f32 %v1810, %v2018
      %v2169 = vadd.f32 %v1811, %v2023
      %v2170 = vadd.f32 %v1812, %v2026
      %v2171 = vadd.f32 %v1813, %v2031
      %v2172 = vadd.f32 %v1814, %v2034
      %v2173 = vadd.f32 %v1815, %v2039
      %v2174 = vadd.f32 %v1816, %v2042
      %v2175 = vadd.f32 %v1817, %v2047
      %v2176 = vadd.f32 %v1818, %v2050
      %v2177 = vadd.f32 %v1819, %v2055
      %v2178 = vadd.f32 %v1820, %v2058
      %v2179 = vadd.f32 %v1821, %v2063
      %v2180 = vadd.f32 %v1822, %v2066
      %v2181 = vadd.f32 %v1823, %v2071
      %v2182 = vadd.f32 %v1824, %v2074
      %v2183 = vadd.f32 %v1825, %v2079
      %v2184 = vadd.f32 %v1826, %v2082
      %v2185 = vadd.f32 %v1827, %v2087
      %v2186 = vadd.f32 %v1828, %v2090
      %v2187 = vadd.f32 %v1829, %v2095
      %v2188 = vadd.f32 %v1830, %v2098
      %v2189 = vadd.f32 %v1831, %v2103
      %v2190 = vadd.f32 %v1832, %v2106
      %v2191 = vadd.f32 %v1833, %v2111
      %v2192 = vadd.f32 %v1834, %v2114
      %v2193 = vadd.f32 %v1835, %v2119
      %v2194 = vadd.f32 %v1836, %v2122
      %v2195 = vadd.f32 %v1837, %v2127
      %v2196 = vadd.f32 %v1838, %v2130
      %v2197 = vadd.f32 %v1839, %v2135
      %v2198 = vadd.f32 %v1840, %v2138
      %v2199 = vadd.f32 %v1841, %v2143
      %v2200 = vadd.f32 %v1842, %v2146
      %v2201 = vadd.f32 %v1843, %v2151
      %v2202 = vadd.f32 %v1844, %v2154
      %v2203 = vadd.f32 %v1845, %v2159
      %v2204 = vadd.f32 %v1846, %v2162
      %v2205 = vld [vmem:[#allocation2 + $0x14] sm:$0xff]
      %v2206 = vld [vmem:[#allocation2 + $0x1c] sm:$0xff]
      %v2207 = vld [vmem:[#allocation2 + $0x24] sm:$0xff]
      %v2208 = vld [vmem:[#allocation2 + $0x2c] sm:$0xff]
      %v2209 = vld [vmem:[#allocation2 + $0x34] sm:$0xff]
      %v2210 = vld [vmem:[#allocation2 + $0x3c] sm:$0xff]
      %v2211 = vld [vmem:[#allocation2 + $0x44] sm:$0xff]
      %v2212 = vld [vmem:[#allocation2 + $0x4c] sm:$0xff]
      %v2213 = vld [vmem:[#allocation2 + $0x54] sm:$0xff]
      %v2214 = vld [vmem:[#allocation2 + $0x5c] sm:$0xff]
      %v2215 = vld [vmem:[#allocation2 + $0x64] sm:$0xff]
      %v2216 = vld [vmem:[#allocation2 + $0x6c] sm:$0xff]
      %v2217 = vld [vmem:[#allocation2 + $0x74] sm:$0xff]
      %v2218 = vld [vmem:[#allocation2 + $0x7c] sm:$0xff]
      %v2219 = vld [vmem:[#allocation2 + $0x84] sm:$0xff]
      %v2220 = vld [vmem:[#allocation2 + $0x8c] sm:$0xff]
      %v2221 = vld [vmem:[#allocation2 + $0x94] sm:$0xff]
      %v2222 = vld [vmem:[#allocation2 + $0x9c] sm:$0xff]
      %v2223 = vld [vmem:[#allocation2 + $0xa4] sm:$0xff]
      %v2224 = vld [vmem:[#allocation2 + $0xac] sm:$0xff]
      %v2225 = vld [vmem:[#allocation2 + $0xb4] sm:$0xff]
      %v2226 = vld [vmem:[#allocation2 + $0xbc] sm:$0xff]
      %v2227 = vld [vmem:[#allocation2 + $0xc4] sm:$0xff]
      %v2228 = vld [vmem:[#allocation2 + $0xcc] sm:$0xff]
      %v2229 = vld [vmem:[#allocation2 + $0xd4] sm:$0xff]
      %v2230 = vld [vmem:[#allocation2 + $0xdc] sm:$0xff]
      %v2231 = vld [vmem:[#allocation2 + $0xe4] sm:$0xff]
      %v2232 = vld [vmem:[#allocation2 + $0xec] sm:$0xff]
      %v2233 = vld [vmem:[#allocation2 + $0xf4] sm:$0xff]
      %v2234 = vld [vmem:[#allocation2 + $0xfc] sm:$0xff]
      %v2235 = vld [vmem:[#allocation2 + $0x104] sm:$0xff]
      %v2236 = vld [vmem:[#allocation2 + $0x10c] sm:$0xff]
      %v2237 = vld [vmem:[#allocation2 + $0x114] sm:$0xff]
      %v2238 = vld [vmem:[#allocation2 + $0x11c] sm:$0xff]
      %v2239 = vld [vmem:[#allocation2 + $0x124] sm:$0xff]
      %v2240 = vld [vmem:[#allocation2 + $0x12c] sm:$0xff]
      %v2241 = vld [vmem:[#allocation2 + $0x134] sm:$0xff]
      %v2242 = vld [vmem:[#allocation2 + $0x13c] sm:$0xff]
      %v2243 = vld [vmem:[#allocation2 + $0x144] sm:$0xff]
      %v2244 = vld [vmem:[#allocation2 + $0x14c] sm:$0xff]
      %v2245 = vpack.c.bf16 %v2206, %v2205
      %v2246 = vpack.c.bf16 %v2208, %v2207
      %v2247 = vpack.c.bf16 %v2210, %v2209
      %v2248 = vpack.c.bf16 %v2212, %v2211
      %v2249 = vpack.c.bf16 %v2214, %v2213
      %v2250 = vpack.c.bf16 %v2216, %v2215
      %v2251 = vpack.c.bf16 %v2218, %v2217
      %v2252 = vpack.c.bf16 %v2220, %v2219
      %v2253 = vpack.c.bf16 %v2222, %v2221
      %v2254 = vpack.c.bf16 %v2224, %v2223
      %v2255 = vpack.c.bf16 %v2226, %v2225
      %v2256 = vpack.c.bf16 %v2228, %v2227
      %v2257 = vpack.c.bf16 %v2230, %v2229
      %v2258 = vpack.c.bf16 %v2232, %v2231
      %v2259 = vpack.c.bf16 %v2234, %v2233
      %v2260 = vpack.c.bf16 %v2236, %v2235
      %v2261 = vpack.c.bf16 %v2238, %v2237
      %v2262 = vpack.c.bf16 %v2240, %v2239
      %v2263 = vpack.c.bf16 %v2242, %v2241
      %v2264 = vpack.c.bf16 %v2244, %v2243
      %s2265 = scalar_lea.vmem %s336, 10
      %v2266 = vld [vmem:[%s2265] sm:$0x3]
      %v2268 = vsel %vm617, %v2245, 0
      %v2271 = vsel %vm617, %v2246, 0
      %v2274 = vsel %vm617, %v2247, 0
      %v2277 = vsel %vm617, %v2248, 0
      %v2280 = vsel %vm617, %v2249, 0
      %v2283 = vsel %vm617, %v2250, 0
      %v2286 = vsel %vm617, %v2251, 0
      %v2289 = vsel %vm617, %v2252, 0
      %v2292 = vsel %vm617, %v2253, 0
      %v2295 = vsel %vm617, %v2254, 0
      %v2298 = vsel %vm617, %v2255, 0
      %v2301 = vsel %vm617, %v2256, 0
      %v2304 = vsel %vm617, %v2257, 0
      %v2307 = vsel %vm617, %v2258, 0
      %v2310 = vsel %vm617, %v2259, 0
      %v2313 = vsel %vm617, %v2260, 0
      %v2316 = vsel %vm617, %v2261, 0
      %v2319 = vsel %vm617, %v2262, 0
      %v2322 = vsel %vm617, %v2263, 0
      %v2325 = vsel %vm617, %v2264, 0
      %v2328 = vsel %vm678, %v2266, 0
      %2330 = vmatprep.subr.bf16.mxu0 0
      %2331 = vmatpush1.bf16.msra.mxu0 %v2328
      %2332 = vmatprep.subr.bf16.mxu0 0
      %2333 = vmatpush1.bf16.msra.mxu0 0
      %2334 = vmatprep.subr.bf16.mxu0 0
      %2335 = vmatpush1.bf16.msra.mxu0 0
      %2336 = vmatprep.subr.bf16.mxu0 0
      %2337 = vmatpush1.bf16.msra.mxu0 0
      %2338 = vmatprep.subr.bf16.mxu0 0
      %2339 = vmatpush1.bf16.msra.mxu0 0
      %2340 = vmatprep.subr.bf16.mxu0 0
      %2341 = vmatpush1.bf16.msra.mxu0 0
      %2342 = vmatprep.subr.bf16.mxu0 0
      %2343 = vmatpush1.bf16.msra.mxu0 0
      %2344 = vmatprep.subr.bf16.mxu0 0
      %2345 = vmatpush1.bf16.msra.mxu0 0
      %2346 = vmatprep.subr.bf16.mxu0 0
      %2347 = vmatpush1.bf16.msra.mxu0 0
      %2348 = vmatprep.subr.bf16.mxu0 0
      %2349 = vmatpush1.bf16.msra.mxu0 0
      %2350 = vmatprep.subr.bf16.mxu0 0
      %2351 = vmatpush1.bf16.msra.mxu0 0
      %2352 = vmatprep.subr.bf16.mxu0 0
      %2353 = vmatpush1.bf16.msra.mxu0 0
      %2354 = vmatprep.subr.bf16.mxu0 0
      %2355 = vmatpush1.bf16.msra.mxu0 0
      %2356 = vmatprep.subr.bf16.mxu0 0
      %2357 = vmatpush1.bf16.msra.mxu0 0
      %2358 = vmatprep.subr.bf16.mxu0 0
      %2359 = vmatpush1.bf16.msra.mxu0 0
      %2360 = vmatprep.subr.bf16.mxu0 0
      %2361 = vmatpush1.bf16.msra.mxu0 0
      %2362 = vmatprep.mubr.bf16.mxu0 0
      %2363 = vmatmul.mubr.bf16.gmra.mrb[0].mxu0 %v2268
      %v2364 = vpop.f32.mrb[0].mxu0
      %v2365 = vadd.f32 0.0, %v2364
      %v2366 = vpop.f32.mrb[0].mxu0
      %v2367 = vpop.f32.mrb[0].mxu0
      %v2368 = vadd.f32 0.0, %v2367
      %v2369 = vpop.f32.mrb[0].mxu0
      %2370 = vmatprep.mubr.bf16.mxu0 0
      %2371 = vmatmul.mubr.bf16.gmra.mrb[0].mxu0 %v2271
      %v2372 = vpop.f32.mrb[0].mxu0
      %v2373 = vadd.f32 0.0, %v2372
      %v2374 = vpop.f32.mrb[0].mxu0
      %v2375 = vpop.f32.mrb[0].mxu0
      %v2376 = vadd.f32 0.0, %v2375
      %v2377 = vpop.f32.mrb[0].mxu0
      %2378 = vmatprep.mubr.bf16.mxu0 0
      %2379 = vmatmul.mubr.bf16.gmra.mrb[0].mxu0 %v2274
      %v2380 = vpop.f32.mrb[0].mxu0
      %v2381 = vadd.f32 0.0, %v2380
      %v2382 = vpop.f32.mrb[0].mxu0
      %v2383 = vpop.f32.mrb[0].mxu0
      %v2384 = vadd.f32 0.0, %v2383
      %v2385 = vpop.f32.mrb[0].mxu0
      %2386 = vmatprep.mubr.bf16.mxu0 0
      %2387 = vmatmul.mubr.bf16.gmra.mrb[0].mxu0 %v2277
      %v2388 = vpop.f32.mrb[0].mxu0
      %v2389 = vadd.f32 0.0, %v2388
      %v2390 = vpop.f32.mrb[0].mxu0
      %v2391 = vpop.f32.mrb[0].mxu0
      %v2392 = vadd.f32 0.0, %v2391
      %v2393 = vpop.f32.mrb[0].mxu0
      %2394 = vmatprep.mubr.bf16.mxu0 0
      %2395 = vmatmul.mubr.bf16.gmra.mrb[0].mxu0 %v2280
      %v2396 = vpop.f32.mrb[0].mxu0
      %v2397 = vadd.f32 0.0, %v2396
      %v2398 = vpop.f32.mrb[0].mxu0
      %v2399 = vpop.f32.mrb[0].mxu0
      %v2400 = vadd.f32 0.0, %v2399
      %v2401 = vpop.f32.mrb[0].mxu0
      %2402 = vmatprep.mubr.bf16.mxu0 0
      %2403 = vmatmul.mubr.bf16.gmra.mrb[0].mxu0 %v2283
      %v2404 = vpop.f32.mrb[0].mxu0
      %v2405 = vadd.f32 0.0, %v2404
      %v2406 = vpop.f32.mrb[0].mxu0
      %v2407 = vpop.f32.mrb[0].mxu0
      %v2408 = vadd.f32 0.0, %v2407
      %v2409 = vpop.f32.mrb[0].mxu0
      %2410 = vmatprep.mubr.bf16.mxu0 0
      %2411 = vmatmul.mubr.bf16.gmra.mrb[0].mxu0 %v2286
      %v2412 = vpop.f32.mrb[0].mxu0
      %v2413 = vadd.f32 0.0, %v2412
      %v2414 = vpop.f32.mrb[0].mxu0
      %v2415 = vpop.f32.mrb[0].mxu0
      %v2416 = vadd.f32 0.0, %v2415
      %v2417 = vpop.f32.mrb[0].mxu0
      %2418 = vmatprep.mubr.bf16.mxu0 0
      %2419 = vmatmul.mubr.bf16.gmra.mrb[0].mxu0 %v2289
      %v2420 = vpop.f32.mrb[0].mxu0
      %v2421 = vadd.f32 0.0, %v2420
      %v2422 = vpop.f32.mrb[0].mxu0
      %v2423 = vpop.f32.mrb[0].mxu0
      %v2424 = vadd.f32 0.0, %v2423
      %v2425 = vpop.f32.mrb[0].mxu0
      %2426 = vmatprep.mubr.bf16.mxu0 0
      %2427 = vmatmul.mubr.bf16.gmra.mrb[0].mxu0 %v2292
      %v2428 = vpop.f32.mrb[0].mxu0
      %v2429 = vadd.f32 0.0, %v2428
      %v2430 = vpop.f32.mrb[0].mxu0
      %v2431 = vpop.f32.mrb[0].mxu0
      %v2432 = vadd.f32 0.0, %v2431
      %v2433 = vpop.f32.mrb[0].mxu0
      %2434 = vmatprep.mubr.bf16.mxu0 0
      %2435 = vmatmul.mubr.bf16.gmra.mrb[0].mxu0 %v2295
      %v2436 = vpop.f32.mrb[0].mxu0
      %v2437 = vadd.f32 0.0, %v2436
      %v2438 = vpop.f32.mrb[0].mxu0
      %v2439 = vpop.f32.mrb[0].mxu0
      %v2440 = vadd.f32 0.0, %v2439
      %v2441 = vpop.f32.mrb[0].mxu0
      %2442 = vmatprep.mubr.bf16.mxu0 0
      %2443 = vmatmul.mubr.bf16.gmra.mrb[0].mxu0 %v2298
      %v2444 = vpop.f32.mrb[0].mxu0
      %v2445 = vadd.f32 0.0, %v2444
      %v2446 = vpop.f32.mrb[0].mxu0
      %v2447 = vpop.f32.mrb[0].mxu0
      %v2448 = vadd.f32 0.0, %v2447
      %v2449 = vpop.f32.mrb[0].mxu0
      %2450 = vmatprep.mubr.bf16.mxu0 0
      %2451 = vmatmul.mubr.bf16.gmra.mrb[0].mxu0 %v2301
      %v2452 = vpop.f32.mrb[0].mxu0
      %v2453 = vadd.f32 0.0, %v2452
      %v2454 = vpop.f32.mrb[0].mxu0
      %v2455 = vpop.f32.mrb[0].mxu0
      %v2456 = vadd.f32 0.0, %v2455
      %v2457 = vpop.f32.mrb[0].mxu0
      %2458 = vmatprep.mubr.bf16.mxu0 0
      %2459 = vmatmul.mubr.bf16.gmra.mrb[0].mxu0 %v2304
      %v2460 = vpop.f32.mrb[0].mxu0
      %v2461 = vadd.f32 0.0, %v2460
      %v2462 = vpop.f32.mrb[0].mxu0
      %v2463 = vpop.f32.mrb[0].mxu0
      %v2464 = vadd.f32 0.0, %v2463
      %v2465 = vpop.f32.mrb[0].mxu0
      %2466 = vmatprep.mubr.bf16.mxu0 0
      %2467 = vmatmul.mubr.bf16.gmra.mrb[0].mxu0 %v2307
      %v2468 = vpop.f32.mrb[0].mxu0
      %v2469 = vadd.f32 0.0, %v2468
      %v2470 = vpop.f32.mrb[0].mxu0
      %v2471 = vpop.f32.mrb[0].mxu0
      %v2472 = vadd.f32 0.0, %v2471
      %v2473 = vpop.f32.mrb[0].mxu0
      %2474 = vmatprep.mubr.bf16.mxu0 0
      %2475 = vmatmul.mubr.bf16.gmra.mrb[0].mxu0 %v2310
      %v2476 = vpop.f32.mrb[0].mxu0
      %v2477 = vadd.f32 0.0, %v2476
      %v2478 = vpop.f32.mrb[0].mxu0
      %v2479 = vpop.f32.mrb[0].mxu0
      %v2480 = vadd.f32 0.0, %v2479
      %v2481 = vpop.f32.mrb[0].mxu0
      %2482 = vmatprep.mubr.bf16.mxu0 0
      %2483 = vmatmul.mubr.bf16.gmra.mrb[0].mxu0 %v2313
      %v2484 = vpop.f32.mrb[0].mxu0
      %v2485 = vadd.f32 0.0, %v2484
      %v2486 = vpop.f32.mrb[0].mxu0
      %v2487 = vpop.f32.mrb[0].mxu0
      %v2488 = vadd.f32 0.0, %v2487
      %v2489 = vpop.f32.mrb[0].mxu0
      %2490 = vmatprep.mubr.bf16.mxu0 0
      %2491 = vmatmul.mubr.bf16.gmra.mrb[0].mxu0 %v2316
      %v2492 = vpop.f32.mrb[0].mxu0
      %v2493 = vadd.f32 0.0, %v2492
      %v2494 = vpop.f32.mrb[0].mxu0
      %v2495 = vpop.f32.mrb[0].mxu0
      %v2496 = vadd.f32 0.0, %v2495
      %v2497 = vpop.f32.mrb[0].mxu0
      %2498 = vmatprep.mubr.bf16.mxu0 0
      %2499 = vmatmul.mubr.bf16.gmra.mrb[0].mxu0 %v2319
      %v2500 = vpop.f32.mrb[0].mxu0
      %v2501 = vadd.f32 0.0, %v2500
      %v2502 = vpop.f32.mrb[0].mxu0
      %v2503 = vpop.f32.mrb[0].mxu0
      %v2504 = vadd.f32 0.0, %v2503
      %v2505 = vpop.f32.mrb[0].mxu0
      %2506 = vmatprep.mubr.bf16.mxu0 0
      %2507 = vmatmul.mubr.bf16.gmra.mrb[0].mxu0 %v2322
      %v2508 = vpop.f32.mrb[0].mxu0
      %v2509 = vadd.f32 0.0, %v2508
      %v2510 = vpop.f32.mrb[0].mxu0
      %v2511 = vpop.f32.mrb[0].mxu0
      %v2512 = vadd.f32 0.0, %v2511
      %v2513 = vpop.f32.mrb[0].mxu0
      %2514 = vmatprep.mubr.bf16.mxu0 0
      %2515 = vmatmul.mubr.bf16.gmra.mrb[0].mxu0 %v2325
      %v2516 = vpop.f32.mrb[0].mxu0
      %v2517 = vadd.f32 0.0, %v2516
      %v2518 = vpop.f32.mrb[0].mxu0
      %v2519 = vpop.f32.mrb[0].mxu0
      %v2520 = vadd.f32 0.0, %v2519
      %v2521 = vpop.f32.mrb[0].mxu0
      %2522 = vdwg.mxu0
      %v2523 = vadd.f32 %v2165, %v2365
      %v2524 = vadd.f32 %v2166, %v2368
      %v2525 = vadd.f32 %v2167, %v2373
      %v2526 = vadd.f32 %v2168, %v2376
      %v2527 = vadd.f32 %v2169, %v2381
      %v2528 = vadd.f32 %v2170, %v2384
      %v2529 = vadd.f32 %v2171, %v2389
      %v2530 = vadd.f32 %v2172, %v2392
      %v2531 = vadd.f32 %v2173, %v2397
      %v2532 = vadd.f32 %v2174, %v2400
      %v2533 = vadd.f32 %v2175, %v2405
      %v2534 = vadd.f32 %v2176, %v2408
      %v2535 = vadd.f32 %v2177, %v2413
      %v2536 = vadd.f32 %v2178, %v2416
      %v2537 = vadd.f32 %v2179, %v2421
      %v2538 = vadd.f32 %v2180, %v2424
      %v2539 = vadd.f32 %v2181, %v2429
      %v2540 = vadd.f32 %v2182, %v2432
      %v2541 = vadd.f32 %v2183, %v2437
      %v2542 = vadd.f32 %v2184, %v2440
      %v2543 = vadd.f32 %v2185, %v2445
      %v2544 = vadd.f32 %v2186, %v2448
      %v2545 = vadd.f32 %v2187, %v2453
      %v2546 = vadd.f32 %v2188, %v2456
      %v2547 = vadd.f32 %v2189, %v2461
      %v2548 = vadd.f32 %v2190, %v2464
      %v2549 = vadd.f32 %v2191, %v2469
      %v2550 = vadd.f32 %v2192, %v2472
      %v2551 = vadd.f32 %v2193, %v2477
      %v2552 = vadd.f32 %v2194, %v2480
      %v2553 = vadd.f32 %v2195, %v2485
      %v2554 = vadd.f32 %v2196, %v2488
      %v2555 = vadd.f32 %v2197, %v2493
      %v2556 = vadd.f32 %v2198, %v2496
      %v2557 = vadd.f32 %v2199, %v2501
      %v2558 = vadd.f32 %v2200, %v2504
      %v2559 = vadd.f32 %v2201, %v2509
      %v2560 = vadd.f32 %v2202, %v2512
      %v2561 = vadd.f32 %v2203, %v2517
      %v2562 = vadd.f32 %v2204, %v2520
      %v2563 = vld [vmem:[#allocation2 + $0x24] sm:$0xff]
      %v2564 = vld [vmem:[#allocation2 + $0x2c] sm:$0xff]
      %v2565 = vld [vmem:[#allocation2 + $0x34] sm:$0xff]
      %v2566 = vld [vmem:[#allocation2 + $0x3c] sm:$0xff]
      %v2567 = vld [vmem:[#allocation2 + $0x44] sm:$0xff]
      %v2568 = vld [vmem:[#allocation2 + $0x4c] sm:$0xff]
      %v2569 = vld [vmem:[#allocation2 + $0x54] sm:$0xff]
      %v2570 = vld [vmem:[#allocation2 + $0x5c] sm:$0xff]
      %v2571 = vld [vmem:[#allocation2 + $0x64] sm:$0xff]
      %v2572 = vld [vmem:[#allocation2 + $0x6c] sm:$0xff]
      %v2573 = vld [vmem:[#allocation2 + $0x74] sm:$0xff]
      %v2574 = vld [vmem:[#allocation2 + $0x7c] sm:$0xff]
      %v2575 = vld [vmem:[#allocation2 + $0x84] sm:$0xff]
      %v2576 = vld [vmem:[#allocation2 + $0x8c] sm:$0xff]
      %v2577 = vld [vmem:[#allocation2 + $0x94] sm:$0xff]
      %v2578 = vld [vmem:[#allocation2 + $0x9c] sm:$0xff]
      %v2579 = vld [vmem:[#allocation2 + $0xa4] sm:$0xff]
      %v2580 = vld [vmem:[#allocation2 + $0xac] sm:$0xff]
      %v2581 = vld [vmem:[#allocation2 + $0xb4] sm:$0xff]
      %v2582 = vld [vmem:[#allocation2 + $0xbc] sm:$0xff]
      %v2583 = vld [vmem:[#allocation2 + $0xc4] sm:$0xff]
      %v2584 = vld [vmem:[#allocation2 + $0xcc] sm:$0xff]
      %v2585 = vld [vmem:[#allocation2 + $0xd4] sm:$0xff]
      %v2586 = vld [vmem:[#allocation2 + $0xdc] sm:$0xff]
      %v2587 = vld [vmem:[#allocation2 + $0xe4] sm:$0xff]
      %v2588 = vld [vmem:[#allocation2 + $0xec] sm:$0xff]
      %v2589 = vld [vmem:[#allocation2 + $0xf4] sm:$0xff]
      %v2590 = vld [vmem:[#allocation2 + $0xfc] sm:$0xff]
      %v2591 = vld [vmem:[#allocation2 + $0x104] sm:$0xff]
      %v2592 = vld [vmem:[#allocation2 + $0x10c] sm:$0xff]
      %v2593 = vld [vmem:[#allocation2 + $0x114] sm:$0xff]
      %v2594 = vld [vmem:[#allocation2 + $0x11c] sm:$0xff]
      %v2595 = vld [vmem:[#allocation2 + $0x124] sm:$0xff]
      %v2596 = vld [vmem:[#allocation2 + $0x12c] sm:$0xff]
      %v2597 = vld [vmem:[#allocation2 + $0x134] sm:$0xff]
      %v2598 = vld [vmem:[#allocation2 + $0x13c] sm:$0xff]
      %v2599 = vld [vmem:[#allocation2 + $0x144] sm:$0xff]
      %v2600 = vld [vmem:[#allocation2 + $0x14c] sm:$0xff]
      %v2601 = vld [vmem:[#allocation2 + $0x154] sm:$0xff]
      %v2602 = vld [vmem:[#allocation2 + $0x15c] sm:$0xff]
      %v2603 = vpack.c.bf16 %v2564, %v2563
      %v2604 = vpack.c.bf16 %v2566, %v2565
      %v2605 = vpack.c.bf16 %v2568, %v2567
      %v2606 = vpack.c.bf16 %v2570, %v2569
      %v2607 = vpack.c.bf16 %v2572, %v2571
      %v2608 = vpack.c.bf16 %v2574, %v2573
      %v2609 = vpack.c.bf16 %v2576, %v2575
      %v2610 = vpack.c.bf16 %v2578, %v2577
      %v2611 = vpack.c.bf16 %v2580, %v2579
      %v2612 = vpack.c.bf16 %v2582, %v2581
      %v2613 = vpack.c.bf16 %v2584, %v2583
      %v2614 = vpack.c.bf16 %v2586, %v2585
      %v2615 = vpack.c.bf16 %v2588, %v2587
      %v2616 = vpack.c.bf16 %v2590, %v2589
      %v2617 = vpack.c.bf16 %v2592, %v2591
      %v2618 = vpack.c.bf16 %v2594, %v2593
      %v2619 = vpack.c.bf16 %v2596, %v2595
      %v2620 = vpack.c.bf16 %v2598, %v2597
      %v2621 = vpack.c.bf16 %v2600, %v2599
      %v2622 = vpack.c.bf16 %v2602, %v2601
      %s2623 = scalar_lea.vmem %s336, 12
      %v2624 = vld [vmem:[%s2623] sm:$0x3]
      %v2626 = vsel %vm617, %v2603, 0
      %v2629 = vsel %vm617, %v2604, 0
      %v2632 = vsel %vm617, %v2605, 0
      %v2635 = vsel %vm617, %v2606, 0
      %v2638 = vsel %vm617, %v2607, 0
      %v2641 = vsel %vm617, %v2608, 0
      %v2644 = vsel %vm617, %v2609, 0
      %v2647 = vsel %vm617, %v2610, 0
      %v2650 = vsel %vm617, %v2611, 0
      %v2653 = vsel %vm617, %v2612, 0
      %v2656 = vsel %vm617, %v2613, 0
      %v2659 = vsel %vm617, %v2614, 0
      %v2662 = vsel %vm617, %v2615, 0
      %v2665 = vsel %vm617, %v2616, 0
      %v2668 = vsel %vm617, %v2617, 0
      %v2671 = vsel %vm617, %v2618, 0
      %v2674 = vsel %vm617, %v2619, 0
      %v2677 = vsel %vm617, %v2620, 0
      %v2680 = vsel %vm617, %v2621, 0
      %v2683 = vsel %vm617, %v2622, 0
      %v2686 = vsel %vm678, %v2624, 0
      %2688 = vmatprep.subr.bf16.mxu0 0
      %2689 = vmatpush1.bf16.msra.mxu0 %v2686
      %2690 = vmatprep.subr.bf16.mxu0 0
      %2691 = vmatpush1.bf16.msra.mxu0 0
      %2692 = vmatprep.subr.bf16.mxu0 0
      %2693 = vmatpush1.bf16.msra.mxu0 0
      %2694 = vmatprep.subr.bf16.mxu0 0
      %2695 = vmatpush1.bf16.msra.mxu0 0
      %2696 = vmatprep.subr.bf16.mxu0 0
      %2697 = vmatpush1.bf16.msra.mxu0 0
      %2698 = vmatprep.subr.bf16.mxu0 0
      %2699 = vmatpush1.bf16.msra.mxu0 0
      %2700 = vmatprep.subr.bf16.mxu0 0
      %2701 = vmatpush1.bf16.msra.mxu0 0
      %2702 = vmatprep.subr.bf16.mxu0 0
      %2703 = vmatpush1.bf16.msra.mxu0 0
      %2704 = vmatprep.subr.bf16.mxu0 0
      %2705 = vmatpush1.bf16.msra.mxu0 0
      %2706 = vmatprep.subr.bf16.mxu0 0
      %2707 = vmatpush1.bf16.msra.mxu0 0
      %2708 = vmatprep.subr.bf16.mxu0 0
      %2709 = vmatpush1.bf16.msra.mxu0 0
      %2710 = vmatprep.subr.bf16.mxu0 0
      %2711 = vmatpush1.bf16.msra.mxu0 0
      %2712 = vmatprep.subr.bf16.mxu0 0
      %2713 = vmatpush1.bf16.msra.mxu0 0
      %2714 = vmatprep.subr.bf16.mxu0 0
      %2715 = vmatpush1.bf16.msra.mxu0 0
      %2716 = vmatprep.subr.bf16.mxu0 0
      %2717 = vmatpush1.bf16.msra.mxu0 0
      %2718 = vmatprep.subr.bf16.mxu0 0
      %2719 = vmatpush1.bf16.msra.mxu0 0
      %2720 = vmatprep.mubr.bf16.mxu0 0
      %2721 = vmatmul.mubr.bf16.gmra.mrb[0].mxu0 %v2626
      %v2722 = vpop.f32.mrb[0].mxu0
      %v2723 = vadd.f32 0.0, %v2722
      %v2724 = vpop.f32.mrb[0].mxu0
      %v2725 = vpop.f32.mrb[0].mxu0
      %v2726 = vadd.f32 0.0, %v2725
      %v2727 = vpop.f32.mrb[0].mxu0
      %2728 = vmatprep.mubr.bf16.mxu0 0
      %2729 = vmatmul.mubr.bf16.gmra.mrb[0].mxu0 %v2629
      %v2730 = vpop.f32.mrb[0].mxu0
      %v2731 = vadd.f32 0.0, %v2730
      %v2732 = vpop.f32.mrb[0].mxu0
      %v2733 = vpop.f32.mrb[0].mxu0
      %v2734 = vadd.f32 0.0, %v2733
      %v2735 = vpop.f32.mrb[0].mxu0
      %2736 = vmatprep.mubr.bf16.mxu0 0
      %2737 = vmatmul.mubr.bf16.gmra.mrb[0].mxu0 %v2632
      %v2738 = vpop.f32.mrb[0].mxu0
      %v2739 = vadd.f32 0.0, %v2738
      %v2740 = vpop.f32.mrb[0].mxu0
      %v2741 = vpop.f32.mrb[0].mxu0
      %v2742 = vadd.f32 0.0, %v2741
      %v2743 = vpop.f32.mrb[0].mxu0
      %2744 = vmatprep.mubr.bf16.mxu0 0
      %2745 = vmatmul.mubr.bf16.gmra.mrb[0].mxu0 %v2635
      %v2746 = vpop.f32.mrb[0].mxu0
      %v2747 = vadd.f32 0.0, %v2746
      %v2748 = vpop.f32.mrb[0].mxu0
      %v2749 = vpop.f32.mrb[0].mxu0
      %v2750 = vadd.f32 0.0, %v2749
      %v2751 = vpop.f32.mrb[0].mxu0
      %2752 = vmatprep.mubr.bf16.mxu0 0
      %2753 = vmatmul.mubr.bf16.gmra.mrb[0].mxu0 %v2638
      %v2754 = vpop.f32.mrb[0].mxu0
      %v2755 = vadd.f32 0.0, %v2754
      %v2756 = vpop.f32.mrb[0].mxu0
      %v2757 = vpop.f32.mrb[0].mxu0
      %v2758 = vadd.f32 0.0, %v2757
      %v2759 = vpop.f32.mrb[0].mxu0
      %2760 = vmatprep.mubr.bf16.mxu0 0
      %2761 = vmatmul.mubr.bf16.gmra.mrb[0].mxu0 %v2641
      %v2762 = vpop.f32.mrb[0].mxu0
      %v2763 = vadd.f32 0.0, %v2762
      %v2764 = vpop.f32.mrb[0].mxu0
      %v2765 = vpop.f32.mrb[0].mxu0
      %v2766 = vadd.f32 0.0, %v2765
      %v2767 = vpop.f32.mrb[0].mxu0
      %2768 = vmatprep.mubr.bf16.mxu0 0
      %2769 = vmatmul.mubr.bf16.gmra.mrb[0].mxu0 %v2644
      %v2770 = vpop.f32.mrb[0].mxu0
      %v2771 = vadd.f32 0.0, %v2770
      %v2772 = vpop.f32.mrb[0].mxu0
      %v2773 = vpop.f32.mrb[0].mxu0
      %v2774 = vadd.f32 0.0, %v2773
      %v2775 = vpop.f32.mrb[0].mxu0
      %2776 = vmatprep.mubr.bf16.mxu0 0
      %2777 = vmatmul.mubr.bf16.gmra.mrb[0].mxu0 %v2647
      %v2778 = vpop.f32.mrb[0].mxu0
      %v2779 = vadd.f32 0.0, %v2778
      %v2780 = vpop.f32.mrb[0].mxu0
      %v2781 = vpop.f32.mrb[0].mxu0
      %v2782 = vadd.f32 0.0, %v2781
      %v2783 = vpop.f32.mrb[0].mxu0
      %2784 = vmatprep.mubr.bf16.mxu0 0
      %2785 = vmatmul.mubr.bf16.gmra.mrb[0].mxu0 %v2650
      %v2786 = vpop.f32.mrb[0].mxu0
      %v2787 = vadd.f32 0.0, %v2786
      %v2788 = vpop.f32.mrb[0].mxu0
      %v2789 = vpop.f32.mrb[0].mxu0
      %v2790 = vadd.f32 0.0, %v2789
      %v2791 = vpop.f32.mrb[0].mxu0
      %2792 = vmatprep.mubr.bf16.mxu0 0
      %2793 = vmatmul.mubr.bf16.gmra.mrb[0].mxu0 %v2653
      %v2794 = vpop.f32.mrb[0].mxu0
      %v2795 = vadd.f32 0.0, %v2794
      %v2796 = vpop.f32.mrb[0].mxu0
      %v2797 = vpop.f32.mrb[0].mxu0
      %v2798 = vadd.f32 0.0, %v2797
      %v2799 = vpop.f32.mrb[0].mxu0
      %2800 = vmatprep.mubr.bf16.mxu0 0
      %2801 = vmatmul.mubr.bf16.gmra.mrb[0].mxu0 %v2656
      %v2802 = vpop.f32.mrb[0].mxu0
      %v2803 = vadd.f32 0.0, %v2802
      %v2804 = vpop.f32.mrb[0].mxu0
      %v2805 = vpop.f32.mrb[0].mxu0
      %v2806 = vadd.f32 0.0, %v2805
      %v2807 = vpop.f32.mrb[0].mxu0
      %2808 = vmatprep.mubr.bf16.mxu0 0
      %2809 = vmatmul.mubr.bf16.gmra.mrb[0].mxu0 %v2659
      %v2810 = vpop.f32.mrb[0].mxu0
      %v2811 = vadd.f32 0.0, %v2810
      %v2812 = vpop.f32.mrb[0].mxu0
      %v2813 = vpop.f32.mrb[0].mxu0
      %v2814 = vadd.f32 0.0, %v2813
      %v2815 = vpop.f32.mrb[0].mxu0
      %2816 = vmatprep.mubr.bf16.mxu0 0
      %2817 = vmatmul.mubr.bf16.gmra.mrb[0].mxu0 %v2662
      %v2818 = vpop.f32.mrb[0].mxu0
      %v2819 = vadd.f32 0.0, %v2818
      %v2820 = vpop.f32.mrb[0].mxu0
      %v2821 = vpop.f32.mrb[0].mxu0
      %v2822 = vadd.f32 0.0, %v2821
      %v2823 = vpop.f32.mrb[0].mxu0
      %2824 = vmatprep.mubr.bf16.mxu0 0
      %2825 = vmatmul.mubr.bf16.gmra.mrb[0].mxu0 %v2665
      %v2826 = vpop.f32.mrb[0].mxu0
      %v2827 = vadd.f32 0.0, %v2826
      %v2828 = vpop.f32.mrb[0].mxu0
      %v2829 = vpop.f32.mrb[0].mxu0
      %v2830 = vadd.f32 0.0, %v2829
      %v2831 = vpop.f32.mrb[0].mxu0
      %2832 = vmatprep.mubr.bf16.mxu0 0
      %2833 = vmatmul.mubr.bf16.gmra.mrb[0].mxu0 %v2668
      %v2834 = vpop.f32.mrb[0].mxu0
      %v2835 = vadd.f32 0.0, %v2834
      %v2836 = vpop.f32.mrb[0].mxu0
      %v2837 = vpop.f32.mrb[0].mxu0
      %v2838 = vadd.f32 0.0, %v2837
      %v2839 = vpop.f32.mrb[0].mxu0
      %2840 = vmatprep.mubr.bf16.mxu0 0
      %2841 = vmatmul.mubr.bf16.gmra.mrb[0].mxu0 %v2671
      %v2842 = vpop.f32.mrb[0].mxu0
      %v2843 = vadd.f32 0.0, %v2842
      %v2844 = vpop.f32.mrb[0].mxu0
      %v2845 = vpop.f32.mrb[0].mxu0
      %v2846 = vadd.f32 0.0, %v2845
      %v2847 = vpop.f32.mrb[0].mxu0
      %2848 = vmatprep.mubr.bf16.mxu0 0
      %2849 = vmatmul.mubr.bf16.gmra.mrb[0].mxu0 %v2674
      %v2850 = vpop.f32.mrb[0].mxu0
      %v2851 = vadd.f32 0.0, %v2850
      %v2852 = vpop.f32.mrb[0].mxu0
      %v2853 = vpop.f32.mrb[0].mxu0
      %v2854 = vadd.f32 0.0, %v2853
      %v2855 = vpop.f32.mrb[0].mxu0
      %2856 = vmatprep.mubr.bf16.mxu0 0
      %2857 = vmatmul.mubr.bf16.gmra.mrb[0].mxu0 %v2677
      %v2858 = vpop.f32.mrb[0].mxu0
      %v2859 = vadd.f32 0.0, %v2858
      %v2860 = vpop.f32.mrb[0].mxu0
      %v2861 = vpop.f32.mrb[0].mxu0
      %v2862 = vadd.f32 0.0, %v2861
      %v2863 = vpop.f32.mrb[0].mxu0
      %2864 = vmatprep.mubr.bf16.mxu0 0
      %2865 = vmatmul.mubr.bf16.gmra.mrb[0].mxu0 %v2680
      %v2866 = vpop.f32.mrb[0].mxu0
      %v2867 = vadd.f32 0.0, %v2866
      %v2868 = vpop.f32.mrb[0].mxu0
      %v2869 = vpop.f32.mrb[0].mxu0
      %v2870 = vadd.f32 0.0, %v2869
      %v2871 = vpop.f32.mrb[0].mxu0
      %2872 = vmatprep.mubr.bf16.mxu0 0
      %2873 = vmatmul.mubr.bf16.gmra.mrb[0].mxu0 %v2683
      %v2874 = vpop.f32.mrb[0].mxu0
      %v2875 = vadd.f32 0.0, %v2874
      %v2876 = vpop.f32.mrb[0].mxu0
      %v2877 = vpop.f32.mrb[0].mxu0
      %v2878 = vadd.f32 0.0, %v2877
      %v2879 = vpop.f32.mrb[0].mxu0
      %2880 = vdwg.mxu0
      %v2881 = vadd.f32 %v2523, %v2723
      %v2882 = vadd.f32 %v2524, %v2726
      %v2883 = vadd.f32 %v2525, %v2731
      %v2884 = vadd.f32 %v2526, %v2734
      %v2885 = vadd.f32 %v2527, %v2739
      %v2886 = vadd.f32 %v2528, %v2742
      %v2887 = vadd.f32 %v2529, %v2747
      %v2888 = vadd.f32 %v2530, %v2750
      %v2889 = vadd.f32 %v2531, %v2755
      %v2890 = vadd.f32 %v2532, %v2758
      %v2891 = vadd.f32 %v2533, %v2763
      %v2892 = vadd.f32 %v2534, %v2766
      %v2893 = vadd.f32 %v2535, %v2771
      %v2894 = vadd.f32 %v2536, %v2774
      %v2895 = vadd.f32 %v2537, %v2779
      %v2896 = vadd.f32 %v2538, %v2782
      %v2897 = vadd.f32 %v2539, %v2787
      %v2898 = vadd.f32 %v2540, %v2790
      %v2899 = vadd.f32 %v2541, %v2795
      %v2900 = vadd.f32 %v2542, %v2798
      %v2901 = vadd.f32 %v2543, %v2803
      %v2902 = vadd.f32 %v2544, %v2806
      %v2903 = vadd.f32 %v2545, %v2811
      %v2904 = vadd.f32 %v2546, %v2814
      %v2905 = vadd.f32 %v2547, %v2819
      %v2906 = vadd.f32 %v2548, %v2822
      %v2907 = vadd.f32 %v2549, %v2827
      %v2908 = vadd.f32 %v2550, %v2830
      %v2909 = vadd.f32 %v2551, %v2835
      %v2910 = vadd.f32 %v2552, %v2838
      %v2911 = vadd.f32 %v2553, %v2843
      %v2912 = vadd.f32 %v2554, %v2846
      %v2913 = vadd.f32 %v2555, %v2851
      %v2914 = vadd.f32 %v2556, %v2854
      %v2915 = vadd.f32 %v2557, %v2859
      %v2916 = vadd.f32 %v2558, %v2862
      %v2917 = vadd.f32 %v2559, %v2867
      %v2918 = vadd.f32 %v2560, %v2870
      %v2919 = vadd.f32 %v2561, %v2875
      %v2920 = vadd.f32 %v2562, %v2878
      %v2921 = vld [vmem:[#allocation2 + $0x25] sm:$0xff]
      %v2922 = vld [vmem:[#allocation2 + $0x2d] sm:$0xff]
      %v2923 = vld [vmem:[#allocation2 + $0x35] sm:$0xff]
      %v2924 = vld [vmem:[#allocation2 + $0x3d] sm:$0xff]
      %v2925 = vld [vmem:[#allocation2 + $0x45] sm:$0xff]
      %v2926 = vld [vmem:[#allocation2 + $0x4d] sm:$0xff]
      %v2927 = vld [vmem:[#allocation2 + $0x55] sm:$0xff]
      %v2928 = vld [vmem:[#allocation2 + $0x5d] sm:$0xff]
      %v2929 = vld [vmem:[#allocation2 + $0x65] sm:$0xff]
      %v2930 = vld [vmem:[#allocation2 + $0x6d] sm:$0xff]
      %v2931 = vld [vmem:[#allocation2 + $0x75] sm:$0xff]
      %v2932 = vld [vmem:[#allocation2 + $0x7d] sm:$0xff]
      %v2933 = vld [vmem:[#allocation2 + $0x85] sm:$0xff]
      %v2934 = vld [vmem:[#allocation2 + $0x8d] sm:$0xff]
      %v2935 = vld [vmem:[#allocation2 + $0x95] sm:$0xff]
      %v2936 = vld [vmem:[#allocation2 + $0x9d] sm:$0xff]
      %v2937 = vld [vmem:[#allocation2 + $0xa5] sm:$0xff]
      %v2938 = vld [vmem:[#allocation2 + $0xad] sm:$0xff]
      %v2939 = vld [vmem:[#allocation2 + $0xb5] sm:$0xff]
      %v2940 = vld [vmem:[#allocation2 + $0xbd] sm:$0xff]
      %v2941 = vld [vmem:[#allocation2 + $0xc5] sm:$0xff]
      %v2942 = vld [vmem:[#allocation2 + $0xcd] sm:$0xff]
      %v2943 = vld [vmem:[#allocation2 + $0xd5] sm:$0xff]
      %v2944 = vld [vmem:[#allocation2 + $0xdd] sm:$0xff]
      %v2945 = vld [vmem:[#allocation2 + $0xe5] sm:$0xff]
      %v2946 = vld [vmem:[#allocation2 + $0xed] sm:$0xff]
      %v2947 = vld [vmem:[#allocation2 + $0xf5] sm:$0xff]
      %v2948 = vld [vmem:[#allocation2 + $0xfd] sm:$0xff]
      %v2949 = vld [vmem:[#allocation2 + $0x105] sm:$0xff]
      %v2950 = vld [vmem:[#allocation2 + $0x10d] sm:$0xff]
      %v2951 = vld [vmem:[#allocation2 + $0x115] sm:$0xff]
      %v2952 = vld [vmem:[#allocation2 + $0x11d] sm:$0xff]
      %v2953 = vld [vmem:[#allocation2 + $0x125] sm:$0xff]
      %v2954 = vld [vmem:[#allocation2 + $0x12d] sm:$0xff]
      %v2955 = vld [vmem:[#allocation2 + $0x135] sm:$0xff]
      %v2956 = vld [vmem:[#allocation2 + $0x13d] sm:$0xff]
      %v2957 = vld [vmem:[#allocation2 + $0x145] sm:$0xff]
      %v2958 = vld [vmem:[#allocation2 + $0x14d] sm:$0xff]
      %v2959 = vld [vmem:[#allocation2 + $0x155] sm:$0xff]
      %v2960 = vld [vmem:[#allocation2 + $0x15d] sm:$0xff]
      %v2961 = vpack.c.bf16 %v2922, %v2921
      %v2962 = vpack.c.bf16 %v2924, %v2923
      %v2963 = vpack.c.bf16 %v2926, %v2925
      %v2964 = vpack.c.bf16 %v2928, %v2927
      %v2965 = vpack.c.bf16 %v2930, %v2929
      %v2966 = vpack.c.bf16 %v2932, %v2931
      %v2967 = vpack.c.bf16 %v2934, %v2933
      %v2968 = vpack.c.bf16 %v2936, %v2935
      %v2969 = vpack.c.bf16 %v2938, %v2937
      %v2970 = vpack.c.bf16 %v2940, %v2939
      %v2971 = vpack.c.bf16 %v2942, %v2941
      %v2972 = vpack.c.bf16 %v2944, %v2943
      %v2973 = vpack.c.bf16 %v2946, %v2945
      %v2974 = vpack.c.bf16 %v2948, %v2947
      %v2975 = vpack.c.bf16 %v2950, %v2949
      %v2976 = vpack.c.bf16 %v2952, %v2951
      %v2977 = vpack.c.bf16 %v2954, %v2953
      %v2978 = vpack.c.bf16 %v2956, %v2955
      %v2979 = vpack.c.bf16 %v2958, %v2957
      %v2980 = vpack.c.bf16 %v2960, %v2959
      %s2981 = scalar_lea.vmem %s336, 14
      %v2982 = vld [vmem:[%s2981] sm:$0x3]
      %v2984 = vsel %vm617, %v2961, 0
      %v2987 = vsel %vm617, %v2962, 0
      %v2990 = vsel %vm617, %v2963, 0
      %v2993 = vsel %vm617, %v2964, 0
      %v2996 = vsel %vm617, %v2965, 0
      %v2999 = vsel %vm617, %v2966, 0
      %v3002 = vsel %vm617, %v2967, 0
      %v3005 = vsel %vm617, %v2968, 0
      %v3008 = vsel %vm617, %v2969, 0
      %v3011 = vsel %vm617, %v2970, 0
      %v3014 = vsel %vm617, %v2971, 0
      %v3017 = vsel %vm617, %v2972, 0
      %v3020 = vsel %vm617, %v2973, 0
      %v3023 = vsel %vm617, %v2974, 0
      %v3026 = vsel %vm617, %v2975, 0
      %v3029 = vsel %vm617, %v2976, 0
      %v3032 = vsel %vm617, %v2977, 0
      %v3035 = vsel %vm617, %v2978, 0
      %v3038 = vsel %vm617, %v2979, 0
      %v3041 = vsel %vm617, %v2980, 0
      %v3044 = vsel %vm678, %v2982, 0
      %3046 = vmatprep.subr.bf16.mxu0 0
      %3047 = vmatpush1.bf16.msra.mxu0 %v3044
      %3048 = vmatprep.subr.bf16.mxu0 0
      %3049 = vmatpush1.bf16.msra.mxu0 0
      %3050 = vmatprep.subr.bf16.mxu0 0
      %3051 = vmatpush1.bf16.msra.mxu0 0
      %3052 = vmatprep.subr.bf16.mxu0 0
      %3053 = vmatpush1.bf16.msra.mxu0 0
      %3054 = vmatprep.subr.bf16.mxu0 0
      %3055 = vmatpush1.bf16.msra.mxu0 0
      %3056 = vmatprep.subr.bf16.mxu0 0
      %3057 = vmatpush1.bf16.msra.mxu0 0
      %3058 = vmatprep.subr.bf16.mxu0 0
      %3059 = vmatpush1.bf16.msra.mxu0 0
      %3060 = vmatprep.subr.bf16.mxu0 0
      %3061 = vmatpush1.bf16.msra.mxu0 0
      %3062 = vmatprep.subr.bf16.mxu0 0
      %3063 = vmatpush1.bf16.msra.mxu0 0
      %3064 = vmatprep.subr.bf16.mxu0 0
      %3065 = vmatpush1.bf16.msra.mxu0 0
      %3066 = vmatprep.subr.bf16.mxu0 0
      %3067 = vmatpush1.bf16.msra.mxu0 0
      %3068 = vmatprep.subr.bf16.mxu0 0
      %3069 = vmatpush1.bf16.msra.mxu0 0
      %3070 = vmatprep.subr.bf16.mxu0 0
      %3071 = vmatpush1.bf16.msra.mxu0 0
      %3072 = vmatprep.subr.bf16.mxu0 0
      %3073 = vmatpush1.bf16.msra.mxu0 0
      %3074 = vmatprep.subr.bf16.mxu0 0
      %3075 = vmatpush1.bf16.msra.mxu0 0
      %3076 = vmatprep.subr.bf16.mxu0 0
      %3077 = vmatpush1.bf16.msra.mxu0 0
      %3078 = vmatprep.mubr.bf16.mxu0 0
      %3079 = vmatmul.mubr.bf16.gmra.mrb[0].mxu0 %v2984
      %v3080 = vpop.f32.mrb[0].mxu0
      %v3081 = vadd.f32 0.0, %v3080
      %v3082 = vpop.f32.mrb[0].mxu0
      %v3083 = vpop.f32.mrb[0].mxu0
      %v3084 = vadd.f32 0.0, %v3083
      %v3085 = vpop.f32.mrb[0].mxu0
      %3086 = vmatprep.mubr.bf16.mxu0 0
      %3087 = vmatmul.mubr.bf16.gmra.mrb[0].mxu0 %v2987
      %v3088 = vpop.f32.mrb[0].mxu0
      %v3089 = vadd.f32 0.0, %v3088
      %v3090 = vpop.f32.mrb[0].mxu0
      %v3091 = vpop.f32.mrb[0].mxu0
      %v3092 = vadd.f32 0.0, %v3091
      %v3093 = vpop.f32.mrb[0].mxu0
      %3094 = vmatprep.mubr.bf16.mxu0 0
      %3095 = vmatmul.mubr.bf16.gmra.mrb[0].mxu0 %v2990
      %v3096 = vpop.f32.mrb[0].mxu0
      %v3097 = vadd.f32 0.0, %v3096
      %v3098 = vpop.f32.mrb[0].mxu0
      %v3099 = vpop.f32.mrb[0].mxu0
      %v3100 = vadd.f32 0.0, %v3099
      %v3101 = vpop.f32.mrb[0].mxu0
      %3102 = vmatprep.mubr.bf16.mxu0 0
      %3103 = vmatmul.mubr.bf16.gmra.mrb[0].mxu0 %v2993
      %v3104 = vpop.f32.mrb[0].mxu0
      %v3105 = vadd.f32 0.0, %v3104
      %v3106 = vpop.f32.mrb[0].mxu0
      %v3107 = vpop.f32.mrb[0].mxu0
      %v3108 = vadd.f32 0.0, %v3107
      %v3109 = vpop.f32.mrb[0].mxu0
      %3110 = vmatprep.mubr.bf16.mxu0 0
      %3111 = vmatmul.mubr.bf16.gmra.mrb[0].mxu0 %v2996
      %v3112 = vpop.f32.mrb[0].mxu0
      %v3113 = vadd.f32 0.0, %v3112
      %v3114 = vpop.f32.mrb[0].mxu0
      %v3115 = vpop.f32.mrb[0].mxu0
      %v3116 = vadd.f32 0.0, %v3115
      %v3117 = vpop.f32.mrb[0].mxu0
      %3118 = vmatprep.mubr.bf16.mxu0 0
      %3119 = vmatmul.mubr.bf16.gmra.mrb[0].mxu0 %v2999
      %v3120 = vpop.f32.mrb[0].mxu0
      %v3121 = vadd.f32 0.0, %v3120
      %v3122 = vpop.f32.mrb[0].mxu0
      %v3123 = vpop.f32.mrb[0].mxu0
      %v3124 = vadd.f32 0.0, %v3123
      %v3125 = vpop.f32.mrb[0].mxu0
      %3126 = vmatprep.mubr.bf16.mxu0 0
      %3127 = vmatmul.mubr.bf16.gmra.mrb[0].mxu0 %v3002
      %v3128 = vpop.f32.mrb[0].mxu0
      %v3129 = vadd.f32 0.0, %v3128
      %v3130 = vpop.f32.mrb[0].mxu0
      %v3131 = vpop.f32.mrb[0].mxu0
      %v3132 = vadd.f32 0.0, %v3131
      %v3133 = vpop.f32.mrb[0].mxu0
      %3134 = vmatprep.mubr.bf16.mxu0 0
      %3135 = vmatmul.mubr.bf16.gmra.mrb[0].mxu0 %v3005
      %v3136 = vpop.f32.mrb[0].mxu0
      %v3137 = vadd.f32 0.0, %v3136
      %v3138 = vpop.f32.mrb[0].mxu0
      %v3139 = vpop.f32.mrb[0].mxu0
      %v3140 = vadd.f32 0.0, %v3139
      %v3141 = vpop.f32.mrb[0].mxu0
      %3142 = vmatprep.mubr.bf16.mxu0 0
      %3143 = vmatmul.mubr.bf16.gmra.mrb[0].mxu0 %v3008
      %v3144 = vpop.f32.mrb[0].mxu0
      %v3145 = vadd.f32 0.0, %v3144
      %v3146 = vpop.f32.mrb[0].mxu0
      %v3147 = vpop.f32.mrb[0].mxu0
      %v3148 = vadd.f32 0.0, %v3147
      %v3149 = vpop.f32.mrb[0].mxu0
      %3150 = vmatprep.mubr.bf16.mxu0 0
      %3151 = vmatmul.mubr.bf16.gmra.mrb[0].mxu0 %v3011
      %v3152 = vpop.f32.mrb[0].mxu0
      %v3153 = vadd.f32 0.0, %v3152
      %v3154 = vpop.f32.mrb[0].mxu0
      %v3155 = vpop.f32.mrb[0].mxu0
      %v3156 = vadd.f32 0.0, %v3155
      %v3157 = vpop.f32.mrb[0].mxu0
      %3158 = vmatprep.mubr.bf16.mxu0 0
      %3159 = vmatmul.mubr.bf16.gmra.mrb[0].mxu0 %v3014
      %v3160 = vpop.f32.mrb[0].mxu0
      %v3161 = vadd.f32 0.0, %v3160
      %v3162 = vpop.f32.mrb[0].mxu0
      %v3163 = vpop.f32.mrb[0].mxu0
      %v3164 = vadd.f32 0.0, %v3163
      %v3165 = vpop.f32.mrb[0].mxu0
      %3166 = vmatprep.mubr.bf16.mxu0 0
      %3167 = vmatmul.mubr.bf16.gmra.mrb[0].mxu0 %v3017
      %v3168 = vpop.f32.mrb[0].mxu0
      %v3169 = vadd.f32 0.0, %v3168
      %v3170 = vpop.f32.mrb[0].mxu0
      %v3171 = vpop.f32.mrb[0].mxu0
      %v3172 = vadd.f32 0.0, %v3171
      %v3173 = vpop.f32.mrb[0].mxu0
      %3174 = vmatprep.mubr.bf16.mxu0 0
      %3175 = vmatmul.mubr.bf16.gmra.mrb[0].mxu0 %v3020
      %v3176 = vpop.f32.mrb[0].mxu0
      %v3177 = vadd.f32 0.0, %v3176
      %v3178 = vpop.f32.mrb[0].mxu0
      %v3179 = vpop.f32.mrb[0].mxu0
      %v3180 = vadd.f32 0.0, %v3179
      %v3181 = vpop.f32.mrb[0].mxu0
      %3182 = vmatprep.mubr.bf16.mxu0 0
      %3183 = vmatmul.mubr.bf16.gmra.mrb[0].mxu0 %v3023
      %v3184 = vpop.f32.mrb[0].mxu0
      %v3185 = vadd.f32 0.0, %v3184
      %v3186 = vpop.f32.mrb[0].mxu0
      %v3187 = vpop.f32.mrb[0].mxu0
      %v3188 = vadd.f32 0.0, %v3187
      %v3189 = vpop.f32.mrb[0].mxu0
      %3190 = vmatprep.mubr.bf16.mxu0 0
      %3191 = vmatmul.mubr.bf16.gmra.mrb[0].mxu0 %v3026
      %v3192 = vpop.f32.mrb[0].mxu0
      %v3193 = vadd.f32 0.0, %v3192
      %v3194 = vpop.f32.mrb[0].mxu0
      %v3195 = vpop.f32.mrb[0].mxu0
      %v3196 = vadd.f32 0.0, %v3195
      %v3197 = vpop.f32.mrb[0].mxu0
      %3198 = vmatprep.mubr.bf16.mxu0 0
      %3199 = vmatmul.mubr.bf16.gmra.mrb[0].mxu0 %v3029
      %v3200 = vpop.f32.mrb[0].mxu0
      %v3201 = vadd.f32 0.0, %v3200
      %v3202 = vpop.f32.mrb[0].mxu0
      %v3203 = vpop.f32.mrb[0].mxu0
      %v3204 = vadd.f32 0.0, %v3203
      %v3205 = vpop.f32.mrb[0].mxu0
      %3206 = vmatprep.mubr.bf16.mxu0 0
      %3207 = vmatmul.mubr.bf16.gmra.mrb[0].mxu0 %v3032
      %v3208 = vpop.f32.mrb[0].mxu0
      %v3209 = vadd.f32 0.0, %v3208
      %v3210 = vpop.f32.mrb[0].mxu0
      %v3211 = vpop.f32.mrb[0].mxu0
      %v3212 = vadd.f32 0.0, %v3211
      %v3213 = vpop.f32.mrb[0].mxu0
      %3214 = vmatprep.mubr.bf16.mxu0 0
      %3215 = vmatmul.mubr.bf16.gmra.mrb[0].mxu0 %v3035
      %v3216 = vpop.f32.mrb[0].mxu0
      %v3217 = vadd.f32 0.0, %v3216
      %v3218 = vpop.f32.mrb[0].mxu0
      %v3219 = vpop.f32.mrb[0].mxu0
      %v3220 = vadd.f32 0.0, %v3219
      %v3221 = vpop.f32.mrb[0].mxu0
      %3222 = vmatprep.mubr.bf16.mxu0 0
      %3223 = vmatmul.mubr.bf16.gmra.mrb[0].mxu0 %v3038
      %v3224 = vpop.f32.mrb[0].mxu0
      %v3225 = vadd.f32 0.0, %v3224
      %v3226 = vpop.f32.mrb[0].mxu0
      %v3227 = vpop.f32.mrb[0].mxu0
      %v3228 = vadd.f32 0.0, %v3227
      %v3229 = vpop.f32.mrb[0].mxu0
      %3230 = vmatprep.mubr.bf16.mxu0 0
      %3231 = vmatmul.mubr.bf16.gmra.mrb[0].mxu0 %v3041
      %v3232 = vpop.f32.mrb[0].mxu0
      %v3233 = vadd.f32 0.0, %v3232
      %v3234 = vpop.f32.mrb[0].mxu0
      %v3235 = vpop.f32.mrb[0].mxu0
      %v3236 = vadd.f32 0.0, %v3235
      %v3237 = vpop.f32.mrb[0].mxu0
      %3238 = vdwg.mxu0
      %v3239 = vadd.f32 %v2881, %v3081
      %v3240 = vadd.f32 %v2882, %v3084
      %v3241 = vadd.f32 %v2883, %v3089
      %v3242 = vadd.f32 %v2884, %v3092
      %v3243 = vadd.f32 %v2885, %v3097
      %v3244 = vadd.f32 %v2886, %v3100
      %v3245 = vadd.f32 %v2887, %v3105
      %v3246 = vadd.f32 %v2888, %v3108
      %v3247 = vadd.f32 %v2889, %v3113
      %v3248 = vadd.f32 %v2890, %v3116
      %v3249 = vadd.f32 %v2891, %v3121
      %v3250 = vadd.f32 %v2892, %v3124
      %v3251 = vadd.f32 %v2893, %v3129
      %v3252 = vadd.f32 %v2894, %v3132
      %v3253 = vadd.f32 %v2895, %v3137
      %v3254 = vadd.f32 %v2896, %v3140
      %v3255 = vadd.f32 %v2897, %v3145
      %v3256 = vadd.f32 %v2898, %v3148
      %v3257 = vadd.f32 %v2899, %v3153
      %v3258 = vadd.f32 %v2900, %v3156
      %v3259 = vadd.f32 %v2901, %v3161
      %v3260 = vadd.f32 %v2902, %v3164
      %v3261 = vadd.f32 %v2903, %v3169
      %v3262 = vadd.f32 %v2904, %v3172
      %v3263 = vadd.f32 %v2905, %v3177
      %v3264 = vadd.f32 %v2906, %v3180
      %v3265 = vadd.f32 %v2907, %v3185
      %v3266 = vadd.f32 %v2908, %v3188
      %v3267 = vadd.f32 %v2909, %v3193
      %v3268 = vadd.f32 %v2910, %v3196
      %v3269 = vadd.f32 %v2911, %v3201
      %v3270 = vadd.f32 %v2912, %v3204
      %v3271 = vadd.f32 %v2913, %v3209
      %v3272 = vadd.f32 %v2914, %v3212
      %v3273 = vadd.f32 %v2915, %v3217
      %v3274 = vadd.f32 %v2916, %v3220
      %v3275 = vadd.f32 %v2917, %v3225
      %v3276 = vadd.f32 %v2918, %v3228
      %v3277 = vadd.f32 %v2919, %v3233
      %v3278 = vadd.f32 %v2920, %v3236
      %v3279 = vld [vmem:[#allocation2 + $0x26] sm:$0xff]
      %v3280 = vld [vmem:[#allocation2 + $0x2e] sm:$0xff]
      %v3281 = vld [vmem:[#allocation2 + $0x36] sm:$0xff]
      %v3282 = vld [vmem:[#allocation2 + $0x3e] sm:$0xff]
      %v3283 = vld [vmem:[#allocation2 + $0x46] sm:$0xff]
      %v3284 = vld [vmem:[#allocation2 + $0x4e] sm:$0xff]
      %v3285 = vld [vmem:[#allocation2 + $0x56] sm:$0xff]
      %v3286 = vld [vmem:[#allocation2 + $0x5e] sm:$0xff]
      %v3287 = vld [vmem:[#allocation2 + $0x66] sm:$0xff]
      %v3288 = vld [vmem:[#allocation2 + $0x6e] sm:$0xff]
      %v3289 = vld [vmem:[#allocation2 + $0x76] sm:$0xff]
      %v3290 = vld [vmem:[#allocation2 + $0x7e] sm:$0xff]
      %v3291 = vld [vmem:[#allocation2 + $0x86] sm:$0xff]
      %v3292 = vld [vmem:[#allocation2 + $0x8e] sm:$0xff]
      %v3293 = vld [vmem:[#allocation2 + $0x96] sm:$0xff]
      %v3294 = vld [vmem:[#allocation2 + $0x9e] sm:$0xff]
      %v3295 = vld [vmem:[#allocation2 + $0xa6] sm:$0xff]
      %v3296 = vld [vmem:[#allocation2 + $0xae] sm:$0xff]
      %v3297 = vld [vmem:[#allocation2 + $0xb6] sm:$0xff]
      %v3298 = vld [vmem:[#allocation2 + $0xbe] sm:$0xff]
      %v3299 = vld [vmem:[#allocation2 + $0xc6] sm:$0xff]
      %v3300 = vld [vmem:[#allocation2 + $0xce] sm:$0xff]
      %v3301 = vld [vmem:[#allocation2 + $0xd6] sm:$0xff]
      %v3302 = vld [vmem:[#allocation2 + $0xde] sm:$0xff]
      %v3303 = vld [vmem:[#allocation2 + $0xe6] sm:$0xff]
      %v3304 = vld [vmem:[#allocation2 + $0xee] sm:$0xff]
      %v3305 = vld [vmem:[#allocation2 + $0xf6] sm:$0xff]
      %v3306 = vld [vmem:[#allocation2 + $0xfe] sm:$0xff]
      %v3307 = vld [vmem:[#allocation2 + $0x106] sm:$0xff]
      %v3308 = vld [vmem:[#allocation2 + $0x10e] sm:$0xff]
      %v3309 = vld [vmem:[#allocation2 + $0x116] sm:$0xff]
      %v3310 = vld [vmem:[#allocation2 + $0x11e] sm:$0xff]
      %v3311 = vld [vmem:[#allocation2 + $0x126] sm:$0xff]
      %v3312 = vld [vmem:[#allocation2 + $0x12e] sm:$0xff]
      %v3313 = vld [vmem:[#allocation2 + $0x136] sm:$0xff]
      %v3314 = vld [vmem:[#allocation2 + $0x13e] sm:$0xff]
      %v3315 = vld [vmem:[#allocation2 + $0x146] sm:$0xff]
      %v3316 = vld [vmem:[#allocation2 + $0x14e] sm:$0xff]
      %v3317 = vld [vmem:[#allocation2 + $0x156] sm:$0xff]
      %v3318 = vld [vmem:[#allocation2 + $0x15e] sm:$0xff]
      %v3319 = vpack.c.bf16 %v3280, %v3279
      %v3320 = vpack.c.bf16 %v3282, %v3281
      %v3321 = vpack.c.bf16 %v3284, %v3283
      %v3322 = vpack.c.bf16 %v3286, %v3285
      %v3323 = vpack.c.bf16 %v3288, %v3287
      %v3324 = vpack.c.bf16 %v3290, %v3289
      %v3325 = vpack.c.bf16 %v3292, %v3291
      %v3326 = vpack.c.bf16 %v3294, %v3293
      %v3327 = vpack.c.bf16 %v3296, %v3295
      %v3328 = vpack.c.bf16 %v3298, %v3297
      %v3329 = vpack.c.bf16 %v3300, %v3299
      %v3330 = vpack.c.bf16 %v3302, %v3301
      %v3331 = vpack.c.bf16 %v3304, %v3303
      %v3332 = vpack.c.bf16 %v3306, %v3305
      %v3333 = vpack.c.bf16 %v3308, %v3307
      %v3334 = vpack.c.bf16 %v3310, %v3309
      %v3335 = vpack.c.bf16 %v3312, %v3311
      %v3336 = vpack.c.bf16 %v3314, %v3313
      %v3337 = vpack.c.bf16 %v3316, %v3315
      %v3338 = vpack.c.bf16 %v3318, %v3317
      %s3339 = scalar_lea.vmem %s336, 16
      %v3340 = vld [vmem:[%s3339] sm:$0x3]
      %v3342 = vsel %vm617, %v3319, 0
      %v3345 = vsel %vm617, %v3320, 0
      %v3348 = vsel %vm617, %v3321, 0
      %v3351 = vsel %vm617, %v3322, 0
      %v3354 = vsel %vm617, %v3323, 0
      %v3357 = vsel %vm617, %v3324, 0
      %v3360 = vsel %vm617, %v3325, 0
      %v3363 = vsel %vm617, %v3326, 0
      %v3366 = vsel %vm617, %v3327, 0
      %v3369 = vsel %vm617, %v3328, 0
      %v3372 = vsel %vm617, %v3329, 0
      %v3375 = vsel %vm617, %v3330, 0
      %v3378 = vsel %vm617, %v3331, 0
      %v3381 = vsel %vm617, %v3332, 0
      %v3384 = vsel %vm617, %v3333, 0
      %v3387 = vsel %vm617, %v3334, 0
      %v3390 = vsel %vm617, %v3335, 0
      %v3393 = vsel %vm617, %v3336, 0
      %v3396 = vsel %vm617, %v3337, 0
      %v3399 = vsel %vm617, %v3338, 0
      %v3402 = vsel %vm678, %v3340, 0
      %3404 = vmatprep.subr.bf16.mxu0 0
      %3405 = vmatpush1.bf16.msra.mxu0 %v3402
      %3406 = vmatprep.subr.bf16.mxu0 0
      %3407 = vmatpush1.bf16.msra.mxu0 0
      %3408 = vmatprep.subr.bf16.mxu0 0
      %3409 = vmatpush1.bf16.msra.mxu0 0
      %3410 = vmatprep.subr.bf16.mxu0 0
      %3411 = vmatpush1.bf16.msra.mxu0 0
      %3412 = vmatprep.subr.bf16.mxu0 0
      %3413 = vmatpush1.bf16.msra.mxu0 0
      %3414 = vmatprep.subr.bf16.mxu0 0
      %3415 = vmatpush1.bf16.msra.mxu0 0
      %3416 = vmatprep.subr.bf16.mxu0 0
      %3417 = vmatpush1.bf16.msra.mxu0 0
      %3418 = vmatprep.subr.bf16.mxu0 0
      %3419 = vmatpush1.bf16.msra.mxu0 0
      %3420 = vmatprep.subr.bf16.mxu0 0
      %3421 = vmatpush1.bf16.msra.mxu0 0
      %3422 = vmatprep.subr.bf16.mxu0 0
      %3423 = vmatpush1.bf16.msra.mxu0 0
      %3424 = vmatprep.subr.bf16.mxu0 0
      %3425 = vmatpush1.bf16.msra.mxu0 0
      %3426 = vmatprep.subr.bf16.mxu0 0
      %3427 = vmatpush1.bf16.msra.mxu0 0
      %3428 = vmatprep.subr.bf16.mxu0 0
      %3429 = vmatpush1.bf16.msra.mxu0 0
      %3430 = vmatprep.subr.bf16.mxu0 0
      %3431 = vmatpush1.bf16.msra.mxu0 0
      %3432 = vmatprep.subr.bf16.mxu0 0
      %3433 = vmatpush1.bf16.msra.mxu0 0
      %3434 = vmatprep.subr.bf16.mxu0 0
      %3435 = vmatpush1.bf16.msra.mxu0 0
      %3436 = vmatprep.mubr.bf16.mxu0 0
      %3437 = vmatmul.mubr.bf16.gmra.mrb[0].mxu0 %v3342
      %v3438 = vpop.f32.mrb[0].mxu0
      %v3439 = vadd.f32 0.0, %v3438
      %v3440 = vpop.f32.mrb[0].mxu0
      %v3441 = vpop.f32.mrb[0].mxu0
      %v3442 = vadd.f32 0.0, %v3441
      %v3443 = vpop.f32.mrb[0].mxu0
      %3444 = vmatprep.mubr.bf16.mxu0 0
      %3445 = vmatmul.mubr.bf16.gmra.mrb[0].mxu0 %v3345
      %v3446 = vpop.f32.mrb[0].mxu0
      %v3447 = vadd.f32 0.0, %v3446
      %v3448 = vpop.f32.mrb[0].mxu0
      %v3449 = vpop.f32.mrb[0].mxu0
      %v3450 = vadd.f32 0.0, %v3449
      %v3451 = vpop.f32.mrb[0].mxu0
      %3452 = vmatprep.mubr.bf16.mxu0 0
      %3453 = vmatmul.mubr.bf16.gmra.mrb[0].mxu0 %v3348
      %v3454 = vpop.f32.mrb[0].mxu0
      %v3455 = vadd.f32 0.0, %v3454
      %v3456 = vpop.f32.mrb[0].mxu0
      %v3457 = vpop.f32.mrb[0].mxu0
      %v3458 = vadd.f32 0.0, %v3457
      %v3459 = vpop.f32.mrb[0].mxu0
      %3460 = vmatprep.mubr.bf16.mxu0 0
      %3461 = vmatmul.mubr.bf16.gmra.mrb[0].mxu0 %v3351
      %v3462 = vpop.f32.mrb[0].mxu0
      %v3463 = vadd.f32 0.0, %v3462
      %v3464 = vpop.f32.mrb[0].mxu0
      %v3465 = vpop.f32.mrb[0].mxu0
      %v3466 = vadd.f32 0.0, %v3465
      %v3467 = vpop.f32.mrb[0].mxu0
      %3468 = vmatprep.mubr.bf16.mxu0 0
      %3469 = vmatmul.mubr.bf16.gmra.mrb[0].mxu0 %v3354
      %v3470 = vpop.f32.mrb[0].mxu0
      %v3471 = vadd.f32 0.0, %v3470
      %v3472 = vpop.f32.mrb[0].mxu0
      %v3473 = vpop.f32.mrb[0].mxu0
      %v3474 = vadd.f32 0.0, %v3473
      %v3475 = vpop.f32.mrb[0].mxu0
      %3476 = vmatprep.mubr.bf16.mxu0 0
      %3477 = vmatmul.mubr.bf16.gmra.mrb[0].mxu0 %v3357
      %v3478 = vpop.f32.mrb[0].mxu0
      %v3479 = vadd.f32 0.0, %v3478
      %v3480 = vpop.f32.mrb[0].mxu0
      %v3481 = vpop.f32.mrb[0].mxu0
      %v3482 = vadd.f32 0.0, %v3481
      %v3483 = vpop.f32.mrb[0].mxu0
      %3484 = vmatprep.mubr.bf16.mxu0 0
      %3485 = vmatmul.mubr.bf16.gmra.mrb[0].mxu0 %v3360
      %v3486 = vpop.f32.mrb[0].mxu0
      %v3487 = vadd.f32 0.0, %v3486
      %v3488 = vpop.f32.mrb[0].mxu0
      %v3489 = vpop.f32.mrb[0].mxu0
      %v3490 = vadd.f32 0.0, %v3489
      %v3491 = vpop.f32.mrb[0].mxu0
      %3492 = vmatprep.mubr.bf16.mxu0 0
      %3493 = vmatmul.mubr.bf16.gmra.mrb[0].mxu0 %v3363
      %v3494 = vpop.f32.mrb[0].mxu0
      %v3495 = vadd.f32 0.0, %v3494
      %v3496 = vpop.f32.mrb[0].mxu0
      %v3497 = vpop.f32.mrb[0].mxu0
      %v3498 = vadd.f32 0.0, %v3497
      %v3499 = vpop.f32.mrb[0].mxu0
      %3500 = vmatprep.mubr.bf16.mxu0 0
      %3501 = vmatmul.mubr.bf16.gmra.mrb[0].mxu0 %v3366
      %v3502 = vpop.f32.mrb[0].mxu0
      %v3503 = vadd.f32 0.0, %v3502
      %v3504 = vpop.f32.mrb[0].mxu0
      %v3505 = vpop.f32.mrb[0].mxu0
      %v3506 = vadd.f32 0.0, %v3505
      %v3507 = vpop.f32.mrb[0].mxu0
      %3508 = vmatprep.mubr.bf16.mxu0 0
      %3509 = vmatmul.mubr.bf16.gmra.mrb[0].mxu0 %v3369
      %v3510 = vpop.f32.mrb[0].mxu0
      %v3511 = vadd.f32 0.0, %v3510
      %v3512 = vpop.f32.mrb[0].mxu0
      %v3513 = vpop.f32.mrb[0].mxu0
      %v3514 = vadd.f32 0.0, %v3513
      %v3515 = vpop.f32.mrb[0].mxu0
      %3516 = vmatprep.mubr.bf16.mxu0 0
      %3517 = vmatmul.mubr.bf16.gmra.mrb[0].mxu0 %v3372
      %v3518 = vpop.f32.mrb[0].mxu0
      %v3519 = vadd.f32 0.0, %v3518
      %v3520 = vpop.f32.mrb[0].mxu0
      %v3521 = vpop.f32.mrb[0].mxu0
      %v3522 = vadd.f32 0.0, %v3521
      %v3523 = vpop.f32.mrb[0].mxu0
      %3524 = vmatprep.mubr.bf16.mxu0 0
      %3525 = vmatmul.mubr.bf16.gmra.mrb[0].mxu0 %v3375
      %v3526 = vpop.f32.mrb[0].mxu0
      %v3527 = vadd.f32 0.0, %v3526
      %v3528 = vpop.f32.mrb[0].mxu0
      %v3529 = vpop.f32.mrb[0].mxu0
      %v3530 = vadd.f32 0.0, %v3529
      %v3531 = vpop.f32.mrb[0].mxu0
      %3532 = vmatprep.mubr.bf16.mxu0 0
      %3533 = vmatmul.mubr.bf16.gmra.mrb[0].mxu0 %v3378
      %v3534 = vpop.f32.mrb[0].mxu0
      %v3535 = vadd.f32 0.0, %v3534
      %v3536 = vpop.f32.mrb[0].mxu0
      %v3537 = vpop.f32.mrb[0].mxu0
      %v3538 = vadd.f32 0.0, %v3537
      %v3539 = vpop.f32.mrb[0].mxu0
      %3540 = vmatprep.mubr.bf16.mxu0 0
      %3541 = vmatmul.mubr.bf16.gmra.mrb[0].mxu0 %v3381
      %v3542 = vpop.f32.mrb[0].mxu0
      %v3543 = vadd.f32 0.0, %v3542
      %v3544 = vpop.f32.mrb[0].mxu0
      %v3545 = vpop.f32.mrb[0].mxu0
      %v3546 = vadd.f32 0.0, %v3545
      %v3547 = vpop.f32.mrb[0].mxu0
      %3548 = vmatprep.mubr.bf16.mxu0 0
      %3549 = vmatmul.mubr.bf16.gmra.mrb[0].mxu0 %v3384
      %v3550 = vpop.f32.mrb[0].mxu0
      %v3551 = vadd.f32 0.0, %v3550
      %v3552 = vpop.f32.mrb[0].mxu0
      %v3553 = vpop.f32.mrb[0].mxu0
      %v3554 = vadd.f32 0.0, %v3553
      %v3555 = vpop.f32.mrb[0].mxu0
      %3556 = vmatprep.mubr.bf16.mxu0 0
      %3557 = vmatmul.mubr.bf16.gmra.mrb[0].mxu0 %v3387
      %v3558 = vpop.f32.mrb[0].mxu0
      %v3559 = vadd.f32 0.0, %v3558
      %v3560 = vpop.f32.mrb[0].mxu0
      %v3561 = vpop.f32.mrb[0].mxu0
      %v3562 = vadd.f32 0.0, %v3561
      %v3563 = vpop.f32.mrb[0].mxu0
      %3564 = vmatprep.mubr.bf16.mxu0 0
      %3565 = vmatmul.mubr.bf16.gmra.mrb[0].mxu0 %v3390
      %v3566 = vpop.f32.mrb[0].mxu0
      %v3567 = vadd.f32 0.0, %v3566
      %v3568 = vpop.f32.mrb[0].mxu0
      %v3569 = vpop.f32.mrb[0].mxu0
      %v3570 = vadd.f32 0.0, %v3569
      %v3571 = vpop.f32.mrb[0].mxu0
      %3572 = vmatprep.mubr.bf16.mxu0 0
      %3573 = vmatmul.mubr.bf16.gmra.mrb[0].mxu0 %v3393
      %v3574 = vpop.f32.mrb[0].mxu0
      %v3575 = vadd.f32 0.0, %v3574
      %v3576 = vpop.f32.mrb[0].mxu0
      %v3577 = vpop.f32.mrb[0].mxu0
      %v3578 = vadd.f32 0.0, %v3577
      %v3579 = vpop.f32.mrb[0].mxu0
      %3580 = vmatprep.mubr.bf16.mxu0 0
      %3581 = vmatmul.mubr.bf16.gmra.mrb[0].mxu0 %v3396
      %v3582 = vpop.f32.mrb[0].mxu0
      %v3583 = vadd.f32 0.0, %v3582
      %v3584 = vpop.f32.mrb[0].mxu0
      %v3585 = vpop.f32.mrb[0].mxu0
      %v3586 = vadd.f32 0.0, %v3585
      %v3587 = vpop.f32.mrb[0].mxu0
      %3588 = vmatprep.mubr.bf16.mxu0 0
      %3589 = vmatmul.mubr.bf16.gmra.mrb[0].mxu0 %v3399
      %v3590 = vpop.f32.mrb[0].mxu0
      %v3591 = vadd.f32 0.0, %v3590
      %v3592 = vpop.f32.mrb[0].mxu0
      %v3593 = vpop.f32.mrb[0].mxu0
      %v3594 = vadd.f32 0.0, %v3593
      %v3595 = vpop.f32.mrb[0].mxu0
      %3596 = vdwg.mxu0
      %v3597 = vadd.f32 %v3239, %v3439
      %v3598 = vadd.f32 %v3240, %v3442
      %v3599 = vadd.f32 %v3241, %v3447
      %v3600 = vadd.f32 %v3242, %v3450
      %v3601 = vadd.f32 %v3243, %v3455
      %v3602 = vadd.f32 %v3244, %v3458
      %v3603 = vadd.f32 %v3245, %v3463
      %v3604 = vadd.f32 %v3246, %v3466
      %v3605 = vadd.f32 %v3247, %v3471
      %v3606 = vadd.f32 %v3248, %v3474
      %v3607 = vadd.f32 %v3249, %v3479
      %v3608 = vadd.f32 %v3250, %v3482
      %v3609 = vadd.f32 %v3251, %v3487
      %v3610 = vadd.f32 %v3252, %v3490
      %v3611 = vadd.f32 %v3253, %v3495
      %v3612 = vadd.f32 %v3254, %v3498
      %v3613 = vadd.f32 %v3255, %v3503
      %v3614 = vadd.f32 %v3256, %v3506
      %v3615 = vadd.f32 %v3257, %v3511
      %v3616 = vadd.f32 %v3258, %v3514
      %v3617 = vadd.f32 %v3259, %v3519
      %v3618 = vadd.f32 %v3260, %v3522
      %v3619 = vadd.f32 %v3261, %v3527
      %v3620 = vadd.f32 %v3262, %v3530
      %v3621 = vadd.f32 %v3263, %v3535
      %v3622 = vadd.f32 %v3264, %v3538
      %v3623 = vadd.f32 %v3265, %v3543
      %v3624 = vadd.f32 %v3266, %v3546
      %v3625 = vadd.f32 %v3267, %v3551
      %v3626 = vadd.f32 %v3268, %v3554
      %v3627 = vadd.f32 %v3269, %v3559
      %v3628 = vadd.f32 %v3270, %v3562
      %v3629 = vadd.f32 %v3271, %v3567
      %v3630 = vadd.f32 %v3272, %v3570
      %v3631 = vadd.f32 %v3273, %v3575
      %v3632 = vadd.f32 %v3274, %v3578
      %v3633 = vadd.f32 %v3275, %v3583
      %v3634 = vadd.f32 %v3276, %v3586
      %v3635 = vadd.f32 %v3277, %v3591
      %v3636 = vadd.f32 %v3278, %v3594
      %v3637 = vld [vmem:[%s339] sm:$0x1]
      %v3639 = vlaneseq
      %v3640 = vshrl.u32 %v3639, 7
      %v3641 = vsub.s32 0, %v3640
      %v3642 = vrot.slane %v3637, %v3641
      %v3644 = vadd.f32 %v3597, %v3642
      %v3645 = vadd.f32 %v3598, %v3642
      %v3646 = vadd.f32 %v3599, %v3642
      %v3647 = vadd.f32 %v3600, %v3642
      %v3648 = vadd.f32 %v3601, %v3642
      %v3649 = vadd.f32 %v3602, %v3642
      %v3650 = vadd.f32 %v3603, %v3642
      %v3651 = vadd.f32 %v3604, %v3642
      %v3652 = vadd.f32 %v3605, %v3642
      %v3653 = vadd.f32 %v3606, %v3642
      %v3654 = vadd.f32 %v3607, %v3642
      %v3655 = vadd.f32 %v3608, %v3642
      %v3656 = vadd.f32 %v3609, %v3642
      %v3657 = vadd.f32 %v3610, %v3642
      %v3658 = vadd.f32 %v3611, %v3642
      %v3659 = vadd.f32 %v3612, %v3642
      %v3660 = vadd.f32 %v3613, %v3642
      %v3661 = vadd.f32 %v3614, %v3642
      %v3662 = vadd.f32 %v3615, %v3642
      %v3663 = vadd.f32 %v3616, %v3642
      %v3664 = vadd.f32 %v3617, %v3642
      %v3665 = vadd.f32 %v3618, %v3642
      %v3666 = vadd.f32 %v3619, %v3642
      %v3667 = vadd.f32 %v3620, %v3642
      %v3668 = vadd.f32 %v3621, %v3642
      %v3669 = vadd.f32 %v3622, %v3642
      %v3670 = vadd.f32 %v3623, %v3642
      %v3671 = vadd.f32 %v3624, %v3642
      %v3672 = vadd.f32 %v3625, %v3642
      %v3673 = vadd.f32 %v3626, %v3642
      %v3674 = vadd.f32 %v3627, %v3642
      %v3675 = vadd.f32 %v3628, %v3642
      %v3676 = vadd.f32 %v3629, %v3642
      %v3677 = vadd.f32 %v3630, %v3642
      %v3678 = vadd.f32 %v3631, %v3642
      %v3679 = vadd.f32 %v3632, %v3642
      %v3680 = vadd.f32 %v3633, %v3642
      %v3681 = vadd.f32 %v3634, %v3642
      %v3682 = vadd.f32 %v3635, %v3642
      %v3683 = vadd.f32 %v3636, %v3642
      %v3684 = vmax.f32 %v3644, 0.0
      %v3685 = vmax.f32 %v3645, 0.0
      %v3686 = vmax.f32 %v3646, 0.0
      %v3687 = vmax.f32 %v3647, 0.0
      %v3688 = vmax.f32 %v3648, 0.0
      %v3689 = vmax.f32 %v3649, 0.0
      %v3690 = vmax.f32 %v3650, 0.0
      %v3691 = vmax.f32 %v3651, 0.0
      %v3692 = vmax.f32 %v3652, 0.0
      %v3693 = vmax.f32 %v3653, 0.0
      %v3694 = vmax.f32 %v3654, 0.0
      %v3695 = vmax.f32 %v3655, 0.0
      %v3696 = vmax.f32 %v3656, 0.0
      %v3697 = vmax.f32 %v3657, 0.0
      %v3698 = vmax.f32 %v3658, 0.0
      %v3699 = vmax.f32 %v3659, 0.0
      %v3700 = vmax.f32 %v3660, 0.0
      %v3701 = vmax.f32 %v3661, 0.0
      %v3702 = vmax.f32 %v3662, 0.0
      %v3703 = vmax.f32 %v3663, 0.0
      %v3704 = vmax.f32 %v3664, 0.0
      %v3705 = vmax.f32 %v3665, 0.0
      %v3706 = vmax.f32 %v3666, 0.0
      %v3707 = vmax.f32 %v3667, 0.0
      %v3708 = vmax.f32 %v3668, 0.0
      %v3709 = vmax.f32 %v3669, 0.0
      %v3710 = vmax.f32 %v3670, 0.0
      %v3711 = vmax.f32 %v3671, 0.0
      %v3712 = vmax.f32 %v3672, 0.0
      %v3713 = vmax.f32 %v3673, 0.0
      %v3714 = vmax.f32 %v3674, 0.0
      %v3715 = vmax.f32 %v3675, 0.0
      %v3716 = vmax.f32 %v3676, 0.0
      %v3717 = vmax.f32 %v3677, 0.0
      %v3718 = vmax.f32 %v3678, 0.0
      %v3719 = vmax.f32 %v3679, 0.0
      %v3720 = vmax.f32 %v3680, 0.0
      %v3721 = vmax.f32 %v3681, 0.0
      %v3722 = vmax.f32 %v3682, 0.0
      %v3723 = vmax.f32 %v3683, 0.0
      %v3724 = vpack.c.bf16 %v3685, %v3684
      %v3725 = vpack.c.bf16 %v3687, %v3686
      %v3726 = vpack.c.bf16 %v3689, %v3688
      %v3727 = vpack.c.bf16 %v3691, %v3690
      %v3728 = vpack.c.bf16 %v3693, %v3692
      %v3729 = vpack.c.bf16 %v3695, %v3694
      %v3730 = vpack.c.bf16 %v3697, %v3696
      %v3731 = vpack.c.bf16 %v3699, %v3698
      %v3732 = vpack.c.bf16 %v3701, %v3700
      %v3733 = vpack.c.bf16 %v3703, %v3702
      %v3734 = vpack.c.bf16 %v3705, %v3704
      %v3735 = vpack.c.bf16 %v3707, %v3706
      %v3736 = vpack.c.bf16 %v3709, %v3708
      %v3737 = vpack.c.bf16 %v3711, %v3710
      %v3738 = vpack.c.bf16 %v3713, %v3712
      %v3739 = vpack.c.bf16 %v3715, %v3714
      %v3740 = vpack.c.bf16 %v3717, %v3716
      %v3741 = vpack.c.bf16 %v3719, %v3718
      %v3742 = vpack.c.bf16 %v3721, %v3720
      %v3743 = vpack.c.bf16 %v3723, %v3722
      %v3764 = vunpack.c.l.b16 %v3724
      %v3765 = vunpack.c.h.b16 %v3724
      %v3766 = vunpack.c.l.b16 %v3725
      %v3767 = vunpack.c.h.b16 %v3725
      %v3768 = vunpack.c.l.b16 %v3726
      %v3769 = vunpack.c.h.b16 %v3726
      %v3770 = vunpack.c.l.b16 %v3727
      %v3771 = vunpack.c.h.b16 %v3727
      %v3772 = vunpack.c.l.b16 %v3728
      %v3773 = vunpack.c.h.b16 %v3728
      %v3774 = vunpack.c.l.b16 %v3729
      %v3775 = vunpack.c.h.b16 %v3729
      %v3776 = vunpack.c.l.b16 %v3730
      %v3777 = vunpack.c.h.b16 %v3730
      %v3778 = vunpack.c.l.b16 %v3731
      %v3779 = vunpack.c.h.b16 %v3731
      %v3780 = vunpack.c.l.b16 %v3732
      %v3781 = vunpack.c.h.b16 %v3732
      %v3782 = vunpack.c.l.b16 %v3733
      %v3783 = vunpack.c.h.b16 %v3733
      %v3784 = vunpack.c.l.b16 %v3734
      %v3785 = vunpack.c.h.b16 %v3734
      %v3786 = vunpack.c.l.b16 %v3735
      %v3787 = vunpack.c.h.b16 %v3735
      %v3788 = vunpack.c.l.b16 %v3736
      %v3789 = vunpack.c.h.b16 %v3736
      %v3790 = vunpack.c.l.b16 %v3737
      %v3791 = vunpack.c.h.b16 %v3737
      %v3792 = vunpack.c.l.b16 %v3738
      %v3793 = vunpack.c.h.b16 %v3738
      %v3794 = vunpack.c.l.b16 %v3739
      %v3795 = vunpack.c.h.b16 %v3739
      %v3796 = vunpack.c.l.b16 %v3740
      %v3797 = vunpack.c.h.b16 %v3740
      %v3798 = vunpack.c.l.b16 %v3741
      %v3799 = vunpack.c.h.b16 %v3741
      %v3800 = vunpack.c.l.b16 %v3742
      %v3801 = vunpack.c.h.b16 %v3742
      %v3802 = vunpack.c.l.b16 %v3743
      %v3803 = vunpack.c.h.b16 %v3743
      %v3804 = vpack.c.b16 %v3764, %v3764
      %v3805 = vpack.c.b16 %v3765, %v3765
      %v3806 = vpack.c.b16 %v3766, %v3766
      %v3807 = vpack.c.b16 %v3767, %v3767
      %v3808 = vpack.c.b16 %v3768, %v3768
      %v3809 = vpack.c.b16 %v3769, %v3769
      %v3810 = vpack.c.b16 %v3770, %v3770
      %v3811 = vpack.c.b16 %v3771, %v3771
      %v3812 = vpack.c.b16 %v3772, %v3772
      %v3813 = vpack.c.b16 %v3773, %v3773
      %v3814 = vpack.c.b16 %v3774, %v3774
      %v3815 = vpack.c.b16 %v3775, %v3775
      %v3816 = vpack.c.b16 %v3776, %v3776
      %v3817 = vpack.c.b16 %v3777, %v3777
      %v3818 = vpack.c.b16 %v3778, %v3778
      %v3819 = vpack.c.b16 %v3779, %v3779
      %v3820 = vpack.c.b16 %v3780, %v3780
      %v3821 = vpack.c.b16 %v3781, %v3781
      %v3822 = vpack.c.b16 %v3782, %v3782
      %v3823 = vpack.c.b16 %v3783, %v3783
      %v3824 = vpack.c.b16 %v3784, %v3784
      %v3825 = vpack.c.b16 %v3785, %v3785
      %v3826 = vpack.c.b16 %v3786, %v3786
      %v3827 = vpack.c.b16 %v3787, %v3787
      %v3828 = vpack.c.b16 %v3788, %v3788
      %v3829 = vpack.c.b16 %v3789, %v3789
      %v3830 = vpack.c.b16 %v3790, %v3790
      %v3831 = vpack.c.b16 %v3791, %v3791
      %v3832 = vpack.c.b16 %v3792, %v3792
      %v3833 = vpack.c.b16 %v3793, %v3793
      %v3834 = vpack.c.b16 %v3794, %v3794
      %v3835 = vpack.c.b16 %v3795, %v3795
      %v3836 = vpack.c.b16 %v3796, %v3796
      %v3837 = vpack.c.b16 %v3797, %v3797
      %v3838 = vpack.c.b16 %v3798, %v3798
      %v3839 = vpack.c.b16 %v3799, %v3799
      %v3840 = vpack.c.b16 %v3800, %v3800
      %v3841 = vpack.c.b16 %v3801, %v3801
      %v3842 = vpack.c.b16 %v3802, %v3802
      %v3843 = vpack.c.b16 %v3803, %v3803
      %3884 = vst [vmem:[%s351] sm:$0xf] %v3804
      %3885 = vst [vmem:[%s351 + $0x4] sm:$0xf] %v3805
      %3886 = vst [vmem:[%s351 + $0x8] sm:$0xf] %v3806
      %3887 = vst [vmem:[%s351 + $0xc] sm:$0xf] %v3807
      %3888 = vst [vmem:[%s351 + $0x10] sm:$0xf] %v3808
      %3889 = vst [vmem:[%s351 + $0x14] sm:$0xf] %v3809
      %3890 = vst [vmem:[%s351 + $0x18] sm:$0xf] %v3810
      %3891 = vst [vmem:[%s351 + $0x1c] sm:$0xf] %v3811
      %3892 = vst [vmem:[%s351 + $0x20] sm:$0xf] %v3812
      %3893 = vst [vmem:[%s351 + $0x24] sm:$0xf] %v3813
      %3894 = vst [vmem:[%s351 + $0x28] sm:$0xf] %v3814
      %3895 = vst [vmem:[%s351 + $0x2c] sm:$0xf] %v3815
      %3896 = vst [vmem:[%s351 + $0x30] sm:$0xf] %v3816
      %3897 = vst [vmem:[%s351 + $0x34] sm:$0xf] %v3817
      %3898 = vst [vmem:[%s351 + $0x38] sm:$0xf] %v3818
      %3899 = vst [vmem:[%s351 + $0x3c] sm:$0xf] %v3819
      %3900 = vst [vmem:[%s351 + $0x40] sm:$0xf] %v3820
      %3901 = vst [vmem:[%s351 + $0x44] sm:$0xf] %v3821
      %3902 = vst [vmem:[%s351 + $0x48] sm:$0xf] %v3822
      %3903 = vst [vmem:[%s351 + $0x4c] sm:$0xf] %v3823
      %3904 = vst [vmem:[%s351 + $0x50] sm:$0xf] %v3824
      %3905 = vst [vmem:[%s351 + $0x54] sm:$0xf] %v3825
      %3906 = vst [vmem:[%s351 + $0x58] sm:$0xf] %v3826
      %3907 = vst [vmem:[%s351 + $0x5c] sm:$0xf] %v3827
      %3908 = vst [vmem:[%s351 + $0x60] sm:$0xf] %v3828
      %3909 = vst [vmem:[%s351 + $0x64] sm:$0xf] %v3829
      %3910 = vst [vmem:[%s351 + $0x68] sm:$0xf] %v3830
      %3911 = vst [vmem:[%s351 + $0x6c] sm:$0xf] %v3831
      %3912 = vst [vmem:[%s351 + $0x70] sm:$0xf] %v3832
      %3913 = vst [vmem:[%s351 + $0x74] sm:$0xf] %v3833
      %3914 = vst [vmem:[%s351 + $0x78] sm:$0xf] %v3834
      %3915 = vst [vmem:[%s351 + $0x7c] sm:$0xf] %v3835
      %3916 = vst [vmem:[%s351 + $0x80] sm:$0xf] %v3836
      %3917 = vst [vmem:[%s351 + $0x84] sm:$0xf] %v3837
      %3918 = vst [vmem:[%s351 + $0x88] sm:$0xf] %v3838
      %3919 = vst [vmem:[%s351 + $0x8c] sm:$0xf] %v3839
      %3920 = vst [vmem:[%s351 + $0x90] sm:$0xf] %v3840
      %3921 = vst [vmem:[%s351 + $0x94] sm:$0xf] %v3841
      %3922 = vst [vmem:[%s351 + $0x98] sm:$0xf] %v3842
      %3923 = vst [vmem:[%s351 + $0x9c] sm:$0xf] %v3843
      %s3924 = smul.u32 40, %s21
      %p3925 = scmp.lt.s32.totalorder %s20, 1
      %s3926 = scalar_select %p3925, %s20, 1
      %p3927 = scmp.lt.s32.totalorder %s3924, 39
      %s3928 = scalar_select %p3927, %s3924, 39
      %p3929 = scmp.lt.s32.totalorder %s22, 0
      %s3930 = scalar_select %p3929, %s22, 0
      %s3931 = sadd.s32 %s3930, %s3928
      %s3932 = smul.addr %s3926, 40
      %s3933 = sadd.s32 %s3931, %s3932
      %s3934 = smul.addr %s3933, 4
      %s3935 = scalar_lea.vmem %s4, %s3934
      // Predicated region
      $region41: #{block_forward.1} parent=35 // pred_check
        %p3936 = pneg %p168
      $region42: #{block_forward.1} parent=35 // pred_check_branch
        %3938 = sbr.rel (%p3936) target = $region44
      $region43: #{block_forward.1} parent=35 // pred_region
        %s3939 = smul.u32 40, %s21
      $region44: #{block_forward.1} parent=35 // pred_fallthru
        _
    $region36: #{block_forward.1} parent=5 // pred_fallthru
      _
    %p3940 = scmp.le.s32.totalorder 2, %s10
    // Predicated region
    $region45: #{block_forward.1} parent=5 // pred_check
      %p3941 = pneg %p3940
    $region46: #{block_forward.1} parent=5 // pred_check_branch
      %3943 = sbr.rel (%p3941) target = $region48
    $region47: #{block_forward.1} parent=5 // pred_region
      %s3944 = ssub.s32 %s10, 2
      // Predicated region
      $region49: #{block_forward.1} parent=47 // pred_check
        %p3945 = pneg %p174
      $region50: #{block_forward.1} parent=47 // pred_check_branch
        %3947 = sbr.rel (%p3945) target = $region52
      $region51: #{block_forward.1} parent=47 // pred_region
        %s3948 = smul.u32 40, %s24
        %p3949 = scmp.lt.s32.totalorder %s23, 1
        %s3950 = scalar_select %p3949, %s23, 1
        %p3951 = scmp.lt.s32.totalorder %s3948, 39
        %s3952 = scalar_select %p3951, %s3948, 39
        %p3953 = scmp.lt.s32.totalorder %s25, 0
        %s3954 = scalar_select %p3953, %s25, 0
        %s3955 = sadd.s32 %s3954, %s3952
        %s3956 = smul.addr %s3950, 40
        %s3957 = sadd.s32 %s3955, %s3956
        %s3958 = smul.addr %s3957, 4
        %s3959 = scalar_lea.vmem %s4, %s3958
      $region52: #{block_forward.1} parent=47 // pred_fallthru
        _
    $region48: #{block_forward.1} parent=5 // pred_fallthru
      _
  $region6: #{block_forward.1} parent=0 // loop_footer
    %s14 = sadd.s32 1, %s10
  $region7: #{block_forward.1} parent=0 // loop_footer_branch
    %9 = sbr.rel target = $region3
  $region8: #{block_forward.1} parent=0 // loop_exit
    _

</llo_original>
